<compile_context>
chip_gen: v7x
topology: tpu7x:2x2x1
jax: 0.10.0
libtpu: 0.0.40
codegen_flags: <defaults>
</compile_context>

<pallas_src>
import functools

import jax
import jax.numpy as jnp
from jax.experimental import pallas as pl
from jax.experimental.pallas import tpu as pltpu


# Which 3x3-kernel taps fold onto each (phase_offset, 2x2-window position).
_SEL = {(0, 0): (0,), (0, 1): (1, 2), (1, 0): (0, 1), (1, 1): (2,)}


def _fold_weights(weight_oihw):
    """(Cout, Cin, 3, 3) -> (4, 4, Cin, Cout): [phase p=2*dy+dx, tap t=2*a+b]."""
    w_hwio = jnp.transpose(weight_oihw, (2, 3, 1, 0))        # (3, 3, Cin, Cout)
    phases = []
    for dy in (0, 1):
        for dx in (0, 1):
            taps = []
            for a in (0, 1):
                for b in (0, 1):
                    acc = jnp.zeros_like(w_hwio[0, 0])
                    for kh in _SEL[(dy, a)]:
                        for kw in _SEL[(dx, b)]:
                            acc = acc + w_hwio[kh, kw]
                    taps.append(acc)                          # (Cin, Cout)
            phases.append(jnp.stack(taps, axis=0))            # (4, Cin, Cout)
    return jnp.stack(phases, axis=0)                          # (4, 4, Cin, Cout)


def _upsample_conv_kernel(xm_ref, xh_ref, w_ref, b_ref, o_ref, *,
                          th, w_img, cin, cout, split_store):
    """One (batch, row-tile) step of the fused upsample + 3x3 conv.

    xm_ref: (1, th, W+2, C)    main padded-input slab (padded rows [r*th, r*th+th))
    xh_ref: (1, 2,  W+2, C)    2-row halo directly below the main slab
    w_ref : (4, 4, Cin, Cout)  folded per-(phase, tap) 2x2 weights
    b_ref : (1, Cout)          bias (f32)
    o_ref : (1, th, 2, W, 2C)  output tile laid out as [row, dy, col, dx*C + c]
    """
    bias = b_ref[...]                                         # (1, Cout) f32, hoisted

    # Hoist the 3 column-shifted slabs (sublane shifts) out of the phase loop;
    # all later row shifts are pure addressing on the leading (untiled) dim.
    cs = []
    for v in range(3):
        top = xm_ref[0, :, v:v + w_img, :]                    # (th, W, C)
        bot = xh_ref[0, :, v:v + w_img, :]                    # (2,  W, C)
        cs.append(jnp.concatenate([top, bot], axis=0)
                  .reshape((th + 2) * w_img, cin))            # ((th+2)*W, C)

    # The 9 distinct (row-shift u, col-shift v) matmul operands (cheap views).
    lhs = {(u, v): cs[v][u * w_img:(u + th) * w_img]          # (th*W, C)
           for v in range(3) for u in range(3)}

    for dy in range(2):
        outs = []
        for dx in range(2):
            p = 2 * dy + dx
            acc = None
            for a in range(2):
                for b in range(2):
                    t = 2 * a + b
                    d = jnp.dot(lhs[(dy + a, dx + b)], w_ref[p, t],
                                preferred_element_type=jnp.float32)
                    acc = d if acc is None else acc + d       # f32 accumulator
            acc = acc + bias                                  # (th*W, Cout)
            outs.append(acc.reshape(th, w_img, cout).astype(o_ref.dtype))
        if split_store:
            # C % 128 == 0: two fully lane-aligned stores at offsets 0 and C.
            o_ref[0, :, dy, :, 0:cout] = outs[0]
            o_ref[0, :, dy, :, cout:2 * cout] = outs[1]
        else:
            # Small C: fold both dx phases into one lane-dense (th, W, 2C) store.
            o_ref[0, :, dy, :, :] = jnp.concatenate(outs, axis=-1)


def _vmem_capacity_bytes():
    try:
        return int(pltpu.get_tpu_info().vmem_capacity_bytes)
    except Exception:
        return 64 * 1024 * 1024    # conservative fallback: v7x per-TensorCore VMEM


def _pick_row_tile(h, w, c, itemsize, target_bytes):
    """Even row tile whose per-step output block (th*2*W*2C bytes) fits target_bytes."""
    per_row = 4 * w * c * itemsize                  # output bytes per original row
    th = max(2, int(target_bytes // max(per_row, 1)))
    th = min(th, h)
    if th >= 8:
        th = (th // 8) * 8
    else:
        th = th + (th % 2)                          # halo spec needs an even tile
    return max(th, 2)


@functools.partial(jax.jit, static_argnames=("row_tile",))
def upsample_forward(x_nchw, weight_oihw, bias, *, row_tile=None):
    """UpSample.forward: nearest 2x upsample + Conv2d(C, C, 3, padding=1). NCHW in/out."""
    B, C, H, W = x_nchw.shape
    dtype = x_nchw.dtype
    itemsize = jnp.dtype(dtype).itemsize

    vmem_cap = _vmem_capacity_bytes()
    # ~48 MiB on 64-MiB parts (v7x), ~96 MiB on 128-MiB parts (v5e/v6e).
    vmem_limit = min(int(vmem_cap * 3 // 4), 100 * 1024 * 1024)
    if row_tile is None:
        th = _pick_row_tile(H, W, C, itemsize, target_bytes=vmem_cap // 12)
    else:
        th = max(2, row_tile + (row_tile % 2))
    n_r = pl.cdiv(H, th)

    # Boundary glue at ORIGINAL resolution only: NCHW -> NHWC + halo zero pad.  Rows
    # are padded up to n_r*th+2 so every (main + 2-row halo) block is in-bounds, even
    # for ragged H / non-divisor row tiles.
    # TODO(synk): if the surrounding model runs NHWC end-to-end, drop this transpose
    # (and the final one below); the kernel itself is layout-native NHWC.
    x_nhwc = jnp.transpose(x_nchw, (0, 2, 3, 1))                     # (B, H, W, C)
    pad_bot = n_r * th - H + 1
    xpad = jnp.pad(x_nhwc, ((0, 0), (1, pad_bot), (1, 1), (0, 0)))   # (B, n_r*th+2, W+2, C)

    wfold = _fold_weights(weight_oihw).astype(dtype)                 # (4, 4, C, C)
    b2 = bias.reshape(1, C).astype(jnp.float32)

    split_store = (C % 128 == 0)
    kernel = functools.partial(_upsample_conv_kernel, th=th, w_img=W,
                               cin=C, cout=C, split_store=split_store)

    out5 = pl.pallas_call(
        kernel,
        out_shape=jax.ShapeDtypeStruct((B, H, 2, W, 2 * C), dtype),
        grid=(B, n_r),
        in_specs=[
            # Main row slab: padded rows [r*th, r*th+th)  (O(th) VMEM, pipelined).
            pl.BlockSpec((1, th, W + 2, C), lambda b, r: (b, r, 0, 0)),
            # 2-row halo below the slab: padded rows [(r+1)*th, (r+1)*th+2).
            pl.BlockSpec((1, 2, W + 2, C),
                         lambda b, r: (b, (r + 1) * (th // 2), 0, 0)),
            # Folded weights / bias: constant index maps -> single-buffered.
            pl.BlockSpec((4, 4, C, C), lambda b, r: (0, 0, 0, 0),
                         pipeline_mode=pl.Buffered(1)),
            pl.BlockSpec((1, C), lambda b, r: (0, 0),
                         pipeline_mode=pl.Buffered(1)),
        ],
        out_specs=pl.BlockSpec((1, th, 2, W, 2 * C), lambda b, r: (b, r, 0, 0, 0)),
        compiler_params=pltpu.CompilerParams(
            dimension_semantics=("parallel", "parallel"),
            vmem_limit_bytes=vmem_limit),
    )(xpad, xpad, wfold, b2)

    # (B, H, 2, W, 2C) is exactly NHWC (B, 2H, 2W, C) of the result; the only wrapper
    # work left is the NCHW boundary transpose required by the module contract.
    out = out5.reshape(B, H, 2, W, 2, C)
    out = jnp.transpose(out, (0, 5, 1, 2, 3, 4)).reshape(B, C, 2 * H, 2 * W)
    return out


def _reference(x_nchw, weight_oihw, bias):
    """Pure-JAX reference mirroring the PyTorch module (NCHW / OIHW)."""
    B, C, H, W = x_nchw.shape
    xu = jnp.repeat(jnp.repeat(x_nchw, 2, axis=2), 2, axis=3)
    out = jax.lax.conv_general_dilated(
        xu, weight_oihw, window_strides=(1, 1), padding=((1, 1), (1, 1)),
        dimension_numbers=("NCHW", "OIHW", "NCHW"))
    return out + bias.reshape(1, C, 1, 1)


if __name__ == "__main__":
    B, C, H, W = 2, 4, 16, 16
    key = jax.random.PRNGKey(0)
    kx, kw, kb = jax.random.split(key, 3)

    x = jax.random.normal(kx, (B, C, H, W), dtype=jnp.float32)
    # Conv2d(C, C, kernel_size=3) parameters (OIHW), deterministic in-script init.
    bound = 1.0 / (C * 3 * 3) ** 0.5
    weight = jax.random.uniform(kw, (C, C, 3, 3), jnp.float32, -bound, bound)
    bias = jax.random.uniform(kb, (C,), jnp.float32, -bound, bound)

    ref = _reference(x, weight, bias)

    # Auto row tile (single tile at this small shape).
    out = jax.block_until_ready(upsample_forward(x, weight, bias))
    assert out.shape == (B, C, 2 * H, 2 * W), out.shape
    err = float(jnp.max(jnp.abs(out - ref)))
    assert jnp.allclose(out, ref, atol=1e-4, rtol=1e-4), err

    # Multi-row-tile path (exercises the 2-row halo block at r > 0).
    out2 = jax.block_until_ready(upsample_forward(x, weight, bias, row_tile=8))
    err2 = float(jnp.max(jnp.abs(out2 - ref)))
    assert jnp.allclose(out2, ref, atol=1e-4, rtol=1e-4), err2

    print("KERNEL_OK")
</pallas_src>

<mosaic_0001>
module attributes {stable_mosaic.version = 11 : i64} {
  func.func @_upsample_conv_kernel(%arg0: i32, %arg1: i32, %arg2: memref<1x16x18x4xf32, #tpu.memory_space<vmem>>, %arg3: memref<1x2x18x4xf32, #tpu.memory_space<vmem>>, %arg4: memref<4x4x4x4xf32, #tpu.memory_space<vmem>>, %arg5: memref<1x4xf32, #tpu.memory_space<vmem>>, %arg6: memref<1x16x2x16x8xf32, #tpu.memory_space<vmem>>) attributes {dimension_semantics = [#tpu.dimension_semantics<parallel>, #tpu.dimension_semantics<parallel>], iteration_bounds = array<i64: 2, 1>, scalar_prefetch = 0 : i64, scratch_operands = 0 : i64, tpu.core_type = #tpu.core_type<tc>, window_params = [{transform_indices = @transform_0, window_bounds = array<i64: 1, 16, 18, 4>}, {transform_indices = @transform_1, window_bounds = array<i64: 1, 2, 18, 4>}, {pipeline_mode = #tpu.pipeline_mode<synchronous>, transform_indices = @transform_2, window_bounds = array<i64: 4, 4, 4, 4>}, {pipeline_mode = #tpu.pipeline_mode<synchronous>, transform_indices = @transform_3, window_bounds = array<i64: 1, 4>}, {transform_indices = @transform_4, window_bounds = array<i64: 1, 16, 2, 16, 8>}]} {
    %c0 = arith.constant 0 : index
    %c0_0 = arith.constant 0 : index
    %0 = vector.load %arg5[%c0, %c0_0] : memref<1x4xf32, #tpu.memory_space<vmem>>, vector<1x4xf32>
    %c0_1 = arith.constant 0 : index
    %c0_2 = arith.constant 0 : index
    %c0_3 = arith.constant 0 : index
    %c0_4 = arith.constant 0 : index
    %1 = vector.load %arg2[%c0_1, %c0_2, %c0_3, %c0_4] : memref<1x16x18x4xf32, #tpu.memory_space<vmem>>, vector<1x16x16x4xf32>
    %2 = vector.shape_cast %1 : vector<1x16x16x4xf32> to vector<16x16x4xf32>
    %c0_5 = arith.constant 0 : index
    %c0_6 = arith.constant 0 : index
    %c0_7 = arith.constant 0 : index
    %c0_8 = arith.constant 0 : index
    %3 = vector.load %arg3[%c0_5, %c0_6, %c0_7, %c0_8] : memref<1x2x18x4xf32, #tpu.memory_space<vmem>>, vector<1x2x16x4xf32>
    %4 = vector.shape_cast %3 : vector<1x2x16x4xf32> to vector<2x16x4xf32>
    %5 = tpu.concatenate %2, %4 in 0 : vector<16x16x4xf32>, vector<2x16x4xf32> -> vector<18x16x4xf32>
    %6 = vector.shape_cast %5 : vector<18x16x4xf32> to vector<288x4xf32>
    %c0_9 = arith.constant 0 : index
    %c0_10 = arith.constant 0 : index
    %c1 = arith.constant 1 : index
    %c0_11 = arith.constant 0 : index
    %7 = vector.load %arg2[%c0_9, %c0_10, %c1, %c0_11] : memref<1x16x18x4xf32, #tpu.memory_space<vmem>>, vector<1x16x16x4xf32>
    %8 = vector.shape_cast %7 : vector<1x16x16x4xf32> to vector<16x16x4xf32>
    %c0_12 = arith.constant 0 : index
    %c0_13 = arith.constant 0 : index
    %c1_14 = arith.constant 1 : index
    %c0_15 = arith.constant 0 : index
    %9 = vector.load %arg3[%c0_12, %c0_13, %c1_14, %c0_15] : memref<1x2x18x4xf32, #tpu.memory_space<vmem>>, vector<1x2x16x4xf32>
    %10 = vector.shape_cast %9 : vector<1x2x16x4xf32> to vector<2x16x4xf32>
    %11 = tpu.concatenate %8, %10 in 0 : vector<16x16x4xf32>, vector<2x16x4xf32> -> vector<18x16x4xf32>
    %12 = vector.shape_cast %11 : vector<18x16x4xf32> to vector<288x4xf32>
    %c0_16 = arith.constant 0 : index
    %c0_17 = arith.constant 0 : index
    %c2 = arith.constant 2 : index
    %c0_18 = arith.constant 0 : index
    %13 = vector.load %arg2[%c0_16, %c0_17, %c2, %c0_18] : memref<1x16x18x4xf32, #tpu.memory_space<vmem>>, vector<1x16x16x4xf32>
    %14 = vector.shape_cast %13 : vector<1x16x16x4xf32> to vector<16x16x4xf32>
    %c0_19 = arith.constant 0 : index
    %c0_20 = arith.constant 0 : index
    %c2_21 = arith.constant 2 : index
    %c0_22 = arith.constant 0 : index
    %15 = vector.load %arg3[%c0_19, %c0_20, %c2_21, %c0_22] : memref<1x2x18x4xf32, #tpu.memory_space<vmem>>, vector<1x2x16x4xf32>
    %16 = vector.shape_cast %15 : vector<1x2x16x4xf32> to vector<2x16x4xf32>
    %17 = tpu.concatenate %14, %16 in 0 : vector<16x16x4xf32>, vector<2x16x4xf32> -> vector<18x16x4xf32>
    %18 = vector.shape_cast %17 : vector<18x16x4xf32> to vector<288x4xf32>
    %19 = vector.extract_strided_slice %6 {offsets = [0, 0], sizes = [256, 4], strides = [1, 1]} : vector<288x4xf32> to vector<256x4xf32>
    %20 = vector.extract_strided_slice %6 {offsets = [16, 0], sizes = [256, 4], strides = [1, 1]} : vector<288x4xf32> to vector<256x4xf32>
    %21 = vector.extract_strided_slice %6 {offsets = [32, 0], sizes = [256, 4], strides = [1, 1]} : vector<288x4xf32> to vector<256x4xf32>
    %22 = vector.extract_strided_slice %12 {offsets = [0, 0], sizes = [256, 4], strides = [1, 1]} : vector<288x4xf32> to vector<256x4xf32>
    %23 = vector.extract_strided_slice %12 {offsets = [16, 0], sizes = [256, 4], strides = [1, 1]} : vector<288x4xf32> to vector<256x4xf32>
    %24 = vector.extract_strided_slice %12 {offsets = [32, 0], sizes = [256, 4], strides = [1, 1]} : vector<288x4xf32> to vector<256x4xf32>
    %25 = vector.extract_strided_slice %18 {offsets = [0, 0], sizes = [256, 4], strides = [1, 1]} : vector<288x4xf32> to vector<256x4xf32>
    %26 = vector.extract_strided_slice %18 {offsets = [16, 0], sizes = [256, 4], strides = [1, 1]} : vector<288x4xf32> to vector<256x4xf32>
    %27 = vector.extract_strided_slice %18 {offsets = [32, 0], sizes = [256, 4], strides = [1, 1]} : vector<288x4xf32> to vector<256x4xf32>
    %c0_23 = arith.constant 0 : index
    %c0_24 = arith.constant 0 : index
    %c0_25 = arith.constant 0 : index
    %c0_26 = arith.constant 0 : index
    %28 = vector.load %arg4[%c0_23, %c0_24, %c0_25, %c0_26] : memref<4x4x4x4xf32, #tpu.memory_space<vmem>>, vector<1x1x4x4xf32>
    %29 = vector.shape_cast %28 : vector<1x1x4x4xf32> to vector<4x4xf32>
    %cst = arith.constant dense<0.000000e+00> : vector<256x4xf32>
    %30 = tpu.matmul %19, %29, %cst {dimension_numbers = #tpu.dot_dimension_numbers<[1], [0], [0], [1], [0, 0, 1, 1], [], []>} : vector<256x4xf32>, vector<4x4xf32>, vector<256x4xf32> -> vector<256x4xf32>
    %c0_27 = arith.constant 0 : index
    %c1_28 = arith.constant 1 : index
    %c0_29 = arith.constant 0 : index
    %c0_30 = arith.constant 0 : index
    %31 = vector.load %arg4[%c0_27, %c1_28, %c0_29, %c0_30] : memref<4x4x4x4xf32, #tpu.memory_space<vmem>>, vector<1x1x4x4xf32>
    %32 = vector.shape_cast %31 : vector<1x1x4x4xf32> to vector<4x4xf32>
    %cst_31 = arith.constant dense<0.000000e+00> : vector<256x4xf32>
    %33 = tpu.matmul %22, %32, %cst_31 {dimension_numbers = #tpu.dot_dimension_numbers<[1], [0], [0], [1], [0, 0, 1, 1], [], []>} : vector<256x4xf32>, vector<4x4xf32>, vector<256x4xf32> -> vector<256x4xf32>
    %34 = arith.addf %30, %33 : vector<256x4xf32>
    %c0_32 = arith.constant 0 : index
    %c2_33 = arith.constant 2 : index
    %c0_34 = arith.constant 0 : index
    %c0_35 = arith.constant 0 : index
    %35 = vector.load %arg4[%c0_32, %c2_33, %c0_34, %c0_35] : memref<4x4x4x4xf32, #tpu.memory_space<vmem>>, vector<1x1x4x4xf32>
    %36 = vector.shape_cast %35 : vector<1x1x4x4xf32> to vector<4x4xf32>
    %cst_36 = arith.constant dense<0.000000e+00> : vector<256x4xf32>
    %37 = tpu.matmul %20, %36, %cst_36 {dimension_numbers = #tpu.dot_dimension_numbers<[1], [0], [0], [1], [0, 0, 1, 1], [], []>} : vector<256x4xf32>, vector<4x4xf32>, vector<256x4xf32> -> vector<256x4xf32>
    %38 = arith.addf %34, %37 : vector<256x4xf32>
    %c0_37 = arith.constant 0 : index
    %c3 = arith.constant 3 : index
    %c0_38 = arith.constant 0 : index
    %c0_39 = arith.constant 0 : index
    %39 = vector.load %arg4[%c0_37, %c3, %c0_38, %c0_39] : memref<4x4x4x4xf32, #tpu.memory_space<vmem>>, vector<1x1x4x4xf32>
    %40 = vector.shape_cast %39 : vector<1x1x4x4xf32> to vector<4x4xf32>
    %cst_40 = arith.constant dense<0.000000e+00> : vector<256x4xf32>
    %41 = tpu.matmul %23, %40, %cst_40 {dimension_numbers = #tpu.dot_dimension_numbers<[1], [0], [0], [1], [0, 0, 1, 1], [], []>} : vector<256x4xf32>, vector<4x4xf32>, vector<256x4xf32> -> vector<256x4xf32>
    %42 = arith.addf %38, %41 : vector<256x4xf32>
    %43 = vector.broadcast %0 : vector<1x4xf32> to vector<256x4xf32>
    %44 = arith.addf %42, %43 : vector<256x4xf32>
    %45 = vector.shape_cast %44 : vector<256x4xf32> to vector<16x16x4xf32>
    %c1_41 = arith.constant 1 : index
    %c0_42 = arith.constant 0 : index
    %c0_43 = arith.constant 0 : index
    %c0_44 = arith.constant 0 : index
    %46 = vector.load %arg4[%c1_41, %c0_42, %c0_43, %c0_44] : memref<4x4x4x4xf32, #tpu.memory_space<vmem>>, vector<1x1x4x4xf32>
    %47 = vector.shape_cast %46 : vector<1x1x4x4xf32> to vector<4x4xf32>
    %cst_45 = arith.constant dense<0.000000e+00> : vector<256x4xf32>
    %48 = tpu.matmul %22, %47, %cst_45 {dimension_numbers = #tpu.dot_dimension_numbers<[1], [0], [0], [1], [0, 0, 1, 1], [], []>} : vector<256x4xf32>, vector<4x4xf32>, vector<256x4xf32> -> vector<256x4xf32>
    %c1_46 = arith.constant 1 : index
    %c1_47 = arith.constant 1 : index
    %c0_48 = arith.constant 0 : index
    %c0_49 = arith.constant 0 : index
    %49 = vector.load %arg4[%c1_46, %c1_47, %c0_48, %c0_49] : memref<4x4x4x4xf32, #tpu.memory_space<vmem>>, vector<1x1x4x4xf32>
    %50 = vector.shape_cast %49 : vector<1x1x4x4xf32> to vector<4x4xf32>
    %cst_50 = arith.constant dense<0.000000e+00> : vector<256x4xf32>
    %51 = tpu.matmul %25, %50, %cst_50 {dimension_numbers = #tpu.dot_dimension_numbers<[1], [0], [0], [1], [0, 0, 1, 1], [], []>} : vector<256x4xf32>, vector<4x4xf32>, vector<256x4xf32> -> vector<256x4xf32>
    %52 = arith.addf %48, %51 : vector<256x4xf32>
    %c1_51 = arith.constant 1 : index
    %c2_52 = arith.constant 2 : index
    %c0_53 = arith.constant 0 : index
    %c0_54 = arith.constant 0 : index
    %53 = vector.load %arg4[%c1_51, %c2_52, %c0_53, %c0_54] : memref<4x4x4x4xf32, #tpu.memory_space<vmem>>, vector<1x1x4x4xf32>
    %54 = vector.shape_cast %53 : vector<1x1x4x4xf32> to vector<4x4xf32>
    %cst_55 = arith.constant dense<0.000000e+00> : vector<256x4xf32>
    %55 = tpu.matmul %23, %54, %cst_55 {dimension_numbers = #tpu.dot_dimension_numbers<[1], [0], [0], [1], [0, 0, 1, 1], [], []>} : vector<256x4xf32>, vector<4x4xf32>, vector<256x4xf32> -> vector<256x4xf32>
    %56 = arith.addf %52, %55 : vector<256x4xf32>
    %c1_56 = arith.constant 1 : index
    %c3_57 = arith.constant 3 : index
    %c0_58 = arith.constant 0 : index
    %c0_59 = arith.constant 0 : index
    %57 = vector.load %arg4[%c1_56, %c3_57, %c0_58, %c0_59] : memref<4x4x4x4xf32, #tpu.memory_space<vmem>>, vector<1x1x4x4xf32>
    %58 = vector.shape_cast %57 : vector<1x1x4x4xf32> to vector<4x4xf32>
    %cst_60 = arith.constant dense<0.000000e+00> : vector<256x4xf32>
    %59 = tpu.matmul %26, %58, %cst_60 {dimension_numbers = #tpu.dot_dimension_numbers<[1], [0], [0], [1], [0, 0, 1, 1], [], []>} : vector<256x4xf32>, vector<4x4xf32>, vector<256x4xf32> -> vector<256x4xf32>
    %60 = arith.addf %56, %59 : vector<256x4xf32>
    %61 = vector.broadcast %0 : vector<1x4xf32> to vector<256x4xf32>
    %62 = arith.addf %60, %61 : vector<256x4xf32>
    %63 = vector.shape_cast %62 : vector<256x4xf32> to vector<16x16x4xf32>
    %64 = tpu.concatenate %45, %63 in 2 : vector<16x16x4xf32>, vector<16x16x4xf32> -> vector<16x16x8xf32>
    %c0_61 = arith.constant 0 : index
    %c0_62 = arith.constant 0 : index
    %c0_63 = arith.constant 0 : index
    %c0_64 = arith.constant 0 : index
    %c0_65 = arith.constant 0 : index
    %65 = vector.load %arg6[%c0_61, %c0_62, %c0_63, %c0_64, %c0_65] : memref<1x16x2x16x8xf32, #tpu.memory_space<vmem>>, vector<1x16x1x16x8xf32>
    %66 = vector.shape_cast %65 : vector<1x16x1x16x8xf32> to vector<16x16x8xf32>
    %67 = vector.shape_cast %64 : vector<16x16x8xf32> to vector<1x16x1x16x8xf32>
    tpu.vector_store %arg6[%c0_61, %c0_62, %c0_63, %c0_64, %c0_65], %67 {strides = array<i32>} : memref<1x16x2x16x8xf32, #tpu.memory_space<vmem>>, vector<1x16x1x16x8xf32>,
    %c2_66 = arith.constant 2 : index
    %c0_67 = arith.constant 0 : index
    %c0_68 = arith.constant 0 : index
    %c0_69 = arith.constant 0 : index
    %68 = vector.load %arg4[%c2_66, %c0_67, %c0_68, %c0_69] : memref<4x4x4x4xf32, #tpu.memory_space<vmem>>, vector<1x1x4x4xf32>
    %69 = vector.shape_cast %68 : vector<1x1x4x4xf32> to vector<4x4xf32>
    %cst_70 = arith.constant dense<0.000000e+00> : vector<256x4xf32>
    %70 = tpu.matmul %20, %69, %cst_70 {dimension_numbers = #tpu.dot_dimension_numbers<[1], [0], [0], [1], [0, 0, 1, 1], [], []>} : vector<256x4xf32>, vector<4x4xf32>, vector<256x4xf32> -> vector<256x4xf32>
    %c2_71 = arith.constant 2 : index
    %c1_72 = arith.constant 1 : index
    %c0_73 = arith.constant 0 : index
    %c0_74 = arith.constant 0 : index
    %71 = vector.load %arg4[%c2_71, %c1_72, %c0_73, %c0_74] : memref<4x4x4x4xf32, #tpu.memory_space<vmem>>, vector<1x1x4x4xf32>
    %72 = vector.shape_cast %71 : vector<1x1x4x4xf32> to vector<4x4xf32>
    %cst_75 = arith.constant dense<0.000000e+00> : vector<256x4xf32>
    %73 = tpu.matmul %23, %72, %cst_75 {dimension_numbers = #tpu.dot_dimension_numbers<[1], [0], [0], [1], [0, 0, 1, 1], [], []>} : vector<256x4xf32>, vector<4x4xf32>, vector<256x4xf32> -> vector<256x4xf32>
    %74 = arith.addf %70, %73 : vector<256x4xf32>
    %c2_76 = arith.constant 2 : index
    %c2_77 = arith.constant 2 : index
    %c0_78 = arith.constant 0 : index
    %c0_79 = arith.constant 0 : index
    %75 = vector.load %arg4[%c2_76, %c2_77, %c0_78, %c0_79] : memref<4x4x4x4xf32, #tpu.memory_space<vmem>>, vector<1x1x4x4xf32>
    %76 = vector.shape_cast %75 : vector<1x1x4x4xf32> to vector<4x4xf32>
    %cst_80 = arith.constant dense<0.000000e+00> : vector<256x4xf32>
    %77 = tpu.matmul %21, %76, %cst_80 {dimension_numbers = #tpu.dot_dimension_numbers<[1], [0], [0], [1], [0, 0, 1, 1], [], []>} : vector<256x4xf32>, vector<4x4xf32>, vector<256x4xf32> -> vector<256x4xf32>
    %78 = arith.addf %74, %77 : vector<256x4xf32>
    %c2_81 = arith.constant 2 : index
    %c3_82 = arith.constant 3 : index
    %c0_83 = arith.constant 0 : index
    %c0_84 = arith.constant 0 : index
    %79 = vector.load %arg4[%c2_81, %c3_82, %c0_83, %c0_84] : memref<4x4x4x4xf32, #tpu.memory_space<vmem>>, vector<1x1x4x4xf32>
    %80 = vector.shape_cast %79 : vector<1x1x4x4xf32> to vector<4x4xf32>
    %cst_85 = arith.constant dense<0.000000e+00> : vector<256x4xf32>
    %81 = tpu.matmul %24, %80, %cst_85 {dimension_numbers = #tpu.dot_dimension_numbers<[1], [0], [0], [1], [0, 0, 1, 1], [], []>} : vector<256x4xf32>, vector<4x4xf32>, vector<256x4xf32> -> vector<256x4xf32>
    %82 = arith.addf %78, %81 : vector<256x4xf32>
    %83 = vector.broadcast %0 : vector<1x4xf32> to vector<256x4xf32>
    %84 = arith.addf %82, %83 : vector<256x4xf32>
    %85 = vector.shape_cast %84 : vector<256x4xf32> to vector<16x16x4xf32>
    %c3_86 = arith.constant 3 : index
    %c0_87 = arith.constant 0 : index
    %c0_88 = arith.constant 0 : index
    %c0_89 = arith.constant 0 : index
    %86 = vector.load %arg4[%c3_86, %c0_87, %c0_88, %c0_89] : memref<4x4x4x4xf32, #tpu.memory_space<vmem>>, vector<1x1x4x4xf32>
    %87 = vector.shape_cast %86 : vector<1x1x4x4xf32> to vector<4x4xf32>
    %cst_90 = arith.constant dense<0.000000e+00> : vector<256x4xf32>
    %88 = tpu.matmul %23, %87, %cst_90 {dimension_numbers = #tpu.dot_dimension_numbers<[1], [0], [0], [1], [0, 0, 1, 1], [], []>} : vector<256x4xf32>, vector<4x4xf32>, vector<256x4xf32> -> vector<256x4xf32>
    %c3_91 = arith.constant 3 : index
    %c1_92 = arith.constant 1 : index
    %c0_93 = arith.constant 0 : index
    %c0_94 = arith.constant 0 : index
    %89 = vector.load %arg4[%c3_91, %c1_92, %c0_93, %c0_94] : memref<4x4x4x4xf32, #tpu.memory_space<vmem>>, vector<1x1x4x4xf32>
    %90 = vector.shape_cast %89 : vector<1x1x4x4xf32> to vector<4x4xf32>
    %cst_95 = arith.constant dense<0.000000e+00> : vector<256x4xf32>
    %91 = tpu.matmul %26, %90, %cst_95 {dimension_numbers = #tpu.dot_dimension_numbers<[1], [0], [0], [1], [0, 0, 1, 1], [], []>} : vector<256x4xf32>, vector<4x4xf32>, vector<256x4xf32> -> vector<256x4xf32>
    %92 = arith.addf %88, %91 : vector<256x4xf32>
    %c3_96 = arith.constant 3 : index
    %c2_97 = arith.constant 2 : index
    %c0_98 = arith.constant 0 : index
    %c0_99 = arith.constant 0 : index
    %93 = vector.load %arg4[%c3_96, %c2_97, %c0_98, %c0_99] : memref<4x4x4x4xf32, #tpu.memory_space<vmem>>, vector<1x1x4x4xf32>
    %94 = vector.shape_cast %93 : vector<1x1x4x4xf32> to vector<4x4xf32>
    %cst_100 = arith.constant dense<0.000000e+00> : vector<256x4xf32>
    %95 = tpu.matmul %24, %94, %cst_100 {dimension_numbers = #tpu.dot_dimension_numbers<[1], [0], [0], [1], [0, 0, 1, 1], [], []>} : vector<256x4xf32>, vector<4x4xf32>, vector<256x4xf32> -> vector<256x4xf32>
    %96 = arith.addf %92, %95 : vector<256x4xf32>
    %c3_101 = arith.constant 3 : index
    %c3_102 = arith.constant 3 : index
    %c0_103 = arith.constant 0 : index
    %c0_104 = arith.constant 0 : index
    %97 = vector.load %arg4[%c3_101, %c3_102, %c0_103, %c0_104] : memref<4x4x4x4xf32, #tpu.memory_space<vmem>>, vector<1x1x4x4xf32>
    %98 = vector.shape_cast %97 : vector<1x1x4x4xf32> to vector<4x4xf32>
    %cst_105 = arith.constant dense<0.000000e+00> : vector<256x4xf32>
    %99 = tpu.matmul %27, %98, %cst_105 {dimension_numbers = #tpu.dot_dimension_numbers<[1], [0], [0], [1], [0, 0, 1, 1], [], []>} : vector<256x4xf32>, vector<4x4xf32>, vector<256x4xf32> -> vector<256x4xf32>
    %100 = arith.addf %96, %99 : vector<256x4xf32>
    %101 = vector.broadcast %0 : vector<1x4xf32> to vector<256x4xf32>
    %102 = arith.addf %100, %101 : vector<256x4xf32>
    %103 = vector.shape_cast %102 : vector<256x4xf32> to vector<16x16x4xf32>
    %104 = tpu.concatenate %85, %103 in 2 : vector<16x16x4xf32>, vector<16x16x4xf32> -> vector<16x16x8xf32>
    %c0_106 = arith.constant 0 : index
    %c0_107 = arith.constant 0 : index
    %c1_108 = arith.constant 1 : index
    %c0_109 = arith.constant 0 : index
    %c0_110 = arith.constant 0 : index
    %105 = vector.load %arg6[%c0_106, %c0_107, %c1_108, %c0_109, %c0_110] : memref<1x16x2x16x8xf32, #tpu.memory_space<vmem>>, vector<1x16x1x16x8xf32>
    %106 = vector.shape_cast %105 : vector<1x16x1x16x8xf32> to vector<16x16x8xf32>
    %107 = vector.shape_cast %104 : vector<16x16x8xf32> to vector<1x16x1x16x8xf32>
    tpu.vector_store %arg6[%c0_106, %c0_107, %c1_108, %c0_109, %c0_110], %107 {strides = array<i32>} : memref<1x16x2x16x8xf32, #tpu.memory_space<vmem>>, vector<1x16x1x16x8xf32>,
    return
  }
  func.func @transform_0(%arg0: i32, %arg1: i32) -> (i32, i32, i32, i32) {
    %c0_i32 = arith.constant 0 : i32
    %c0_i32_0 = arith.constant 0 : i32
    %c0_i32_1 = arith.constant 0 : i32
    return %arg0, %arg1, %c0_i32, %c0_i32_0 : i32, i32, i32, i32
  }
  func.func @transform_1(%arg0: i32, %arg1: i32) -> (i32, i32, i32, i32) {
    %c1_i32 = arith.constant 1 : i32
    %0 = arith.addi %arg1, %c1_i32 : i32
    %c8_i32 = arith.constant 8 : i32
    %1 = arith.muli %0, %c8_i32 : i32
    %c0_i32 = arith.constant 0 : i32
    %c0_i32_0 = arith.constant 0 : i32
    %c0_i32_1 = arith.constant 0 : i32
    return %arg0, %1, %c0_i32, %c0_i32_0 : i32, i32, i32, i32
  }
  func.func @transform_2(%arg0: i32, %arg1: i32) -> (i32, i32, i32, i32) {
    %c0_i32 = arith.constant 0 : i32
    %c0_i32_0 = arith.constant 0 : i32
    %c0_i32_1 = arith.constant 0 : i32
    %c0_i32_2 = arith.constant 0 : i32
    %c0_i32_3 = arith.constant 0 : i32
    return %c0_i32, %c0_i32_0, %c0_i32_1, %c0_i32_2 : i32, i32, i32, i32
  }
  func.func @transform_3(%arg0: i32, %arg1: i32) -> (i32, i32) {
    %c0_i32 = arith.constant 0 : i32
    %c0_i32_0 = arith.constant 0 : i32
    %c0_i32_1 = arith.constant 0 : i32
    return %c0_i32, %c0_i32_0 : i32, i32
  }
  func.func @transform_4(%arg0: i32, %arg1: i32) -> (i32, i32, i32, i32, i32) {
    %c0_i32 = arith.constant 0 : i32
    %c0_i32_0 = arith.constant 0 : i32
    %c0_i32_1 = arith.constant 0 : i32
    %c0_i32_2 = arith.constant 0 : i32
    return %arg0, %arg1, %c0_i32, %c0_i32_0, %c0_i32_1 : i32, i32, i32, i32, i32
  }
}

</mosaic_0001>

<llo_original>
// kernel: upsample_forward.1
$region0: #{upsample_forward.1}
  #allocation0 [shape = 'u32[]', space=smem, size = 0x4, offset = 0x4, fixed_abs, tag = 'smem constant byte address 0x4 - core index']
  #allocation1 [shape = 'u32[144,128]{1,0:T(1,128)}', space=vmem, size = 0x12000, scoped, tag = 'internal scratch']
  %s0 = inlined_call_operand.vmem [shape: f32[2,18,18,4], index: 0, kind: input, shape index: {}, may-alias: {0,1}]
  %s1 = inlined_call_operand.vmem [shape: f32[2,18,18,4], index: 1, kind: input, shape index: {}, may-alias: {0,1}]
  %s2 = inlined_call_operand.vmem [shape: f32[4,4,4,4], index: 2, kind: input, shape index: {}]
  %s3 = inlined_call_operand.vmem [shape: f32[1,4], index: 3, kind: input, shape index: {}]
  %s4 = inlined_call_operand.vmem [shape: f32[2,16,2,16,8], index: 4, kind: output, shape index: {}]
  %s5 = sld [smem:[#allocation0]]
  $region49: #{upsample_forward.1} parent=0
    _
  %s7 = ssub.s32 1, %s5
  %s8 = scalar_select 0, %s7, %s5
  loop: start=0, step=1, limit=4
  $region2: #{upsample_forward.1} parent=0 // loop_pre_header
    _
  $region3: #{upsample_forward.1} parent=0 // loop_header
    %s10 = sphi 0, %s14
    %p11 = scmp.ge.s32.totalorder %s10, 4
    %s17 = sphi 0, %s29
    %s18 = sphi 0, %s25
    %s19 = sphi 0, %s17
    %s20 = sphi 0, %s18
    %s21 = sphi 0, %s19
    %s22 = sphi 0, %s20
    %s34 = sphi 0, %s36
    %s37 = sphi 0, %s34
    %s38 = sphi 0, %s37
    %s54 = sphi 0, %s38
    %s66 = sphi 0, %s68
    %s69 = sphi 0, %s66
    %s70 = sphi 0, %s69
    %s86 = sphi 0, %s70
    %s90 = sphi 0, %s90
    %s92 = sphi 0, %s90
    %s93 = sphi 0, %s92
    %s107 = sphi 0, %s93
    %s111 = sphi 0, %s111
    %s113 = sphi 0, %s111
    %s114 = sphi 0, %s113
    %s128 = sphi 0, %s114
    %s136 = sphi 0, %s138
    %s139 = sphi 0, %s136
    %s140 = sphi 0, %s139
    %s156 = sphi 0, %s140
  $region4: #{upsample_forward.1} parent=0 // loop_header_branch
    %13 = sbr.rel (%p11) target = $region8
  $region5: #{upsample_forward.1} parent=0 // loop_body
    %s15 = ssub.s32 %s10, 1
    %s16 = ssub.s32 %s10, 2
    %s23 = sadd.s32 1, %s18
    %p24 = scmp.ge.s32.totalorder %s23, 1
    %s25 = scalar_select %p24, 0, %s23
    %s26 = sadd.s32 1, %s17
    %s27 = scalar_select %p24, %s26, %s17
    %p28 = scmp.ge.s32.totalorder %s27, 2
    %s29 = scalar_select %p28, 0, %s27
    %s30 = ssub.s32 %s17, %s29
    %s31 = ssub.s32 %s18, %s25
    %s32 = sor.u32 %s30, %s31
    %p33 = scmp.eq.s32.totalorder %s32, 0
    %s35 = sadd.s32 %s34, 1
    %s36 = scalar_select %p33, %s34, %s35
    %p39 = pneg %p33
    %p40 = scmp.eq.s32.totalorder %s10, 1
    %p41 = por %p39, %p40
    %p42 = scmp.ne.s32.totalorder %s34, %s37
    %p43 = scmp.eq.s32.totalorder %s10, 0
    %p44 = por %p42, %p43
    %p45 = scmp.ne.s32.totalorder %s34, %s37
    %p46 = scmp.eq.s32.totalorder %s15, 1
    %p47 = por %p45, %p46
    %p48 = scmp.ne.s32.totalorder %s37, %s38
    %p49 = scmp.eq.s32.totalorder %s15, 0
    %p50 = por %p48, %p49
    %p51 = scmp.ne.s32.totalorder %s37, %s38
    %p52 = scmp.eq.s32.totalorder %s16, 1
    %p53 = por %p51, %p52
    %p55 = scmp.ne.s32.totalorder %s38, %s54
    %p56 = scmp.eq.s32.totalorder %s16, 0
    %p57 = por %p55, %p56
    %s58 = sadd.s32 %s18, 1
    %s59 = smul.u32 %s58, 8
    %s60 = sadd.s32 %s25, 1
    %s61 = smul.u32 %s60, 8
    %s62 = ssub.s32 %s17, %s29
    %s63 = ssub.s32 %s59, %s61
    %s64 = sor.u32 %s62, %s63
    %p65 = scmp.eq.s32.totalorder %s64, 0
    %s67 = sadd.s32 %s66, 1
    %s68 = scalar_select %p65, %s66, %s67
    %p71 = pneg %p65
    %p72 = scmp.eq.s32.totalorder %s10, 1
    %p73 = por %p71, %p72
    %p74 = scmp.ne.s32.totalorder %s66, %s69
    %p75 = scmp.eq.s32.totalorder %s10, 0
    %p76 = por %p74, %p75
    %p77 = scmp.ne.s32.totalorder %s66, %s69
    %p78 = scmp.eq.s32.totalorder %s15, 1
    %p79 = por %p77, %p78
    %p80 = scmp.ne.s32.totalorder %s69, %s70
    %p81 = scmp.eq.s32.totalorder %s15, 0
    %p82 = por %p80, %p81
    %p83 = scmp.ne.s32.totalorder %s69, %s70
    %p84 = scmp.eq.s32.totalorder %s16, 1
    %p85 = por %p83, %p84
    %p87 = scmp.ne.s32.totalorder %s70, %s86
    %p88 = scmp.eq.s32.totalorder %s16, 0
    %p89 = por %p87, %p88
    %s91 = sadd.s32 %s90, 1
    %p94 = scmp.eq.s32.totalorder %s10, 1
    %p95 = scmp.ne.s32.totalorder %s90, %s92
    %p96 = scmp.eq.s32.totalorder %s10, 0
    %p97 = por %p95, %p96
    %p98 = scmp.ne.s32.totalorder %s90, %s92
    %p99 = scmp.eq.s32.totalorder %s15, 1
    %p100 = por %p98, %p99
    %p101 = scmp.ne.s32.totalorder %s92, %s93
    %p102 = scmp.eq.s32.totalorder %s15, 0
    %p103 = por %p101, %p102
    %p104 = scmp.ne.s32.totalorder %s92, %s93
    %p105 = scmp.eq.s32.totalorder %s16, 1
    %p106 = por %p104, %p105
    %p108 = scmp.ne.s32.totalorder %s93, %s107
    %p109 = scmp.eq.s32.totalorder %s16, 0
    %p110 = por %p108, %p109
    %s112 = sadd.s32 %s111, 1
    %p115 = scmp.eq.s32.totalorder %s10, 1
    %p116 = scmp.ne.s32.totalorder %s111, %s113
    %p117 = scmp.eq.s32.totalorder %s10, 0
    %p118 = por %p116, %p117
    %p119 = scmp.ne.s32.totalorder %s111, %s113
    %p120 = scmp.eq.s32.totalorder %s15, 1
    %p121 = por %p119, %p120
    %p122 = scmp.ne.s32.totalorder %s113, %s114
    %p123 = scmp.eq.s32.totalorder %s15, 0
    %p124 = por %p122, %p123
    %p125 = scmp.ne.s32.totalorder %s113, %s114
    %p126 = scmp.eq.s32.totalorder %s16, 1
    %p127 = por %p125, %p126
    %p129 = scmp.ne.s32.totalorder %s114, %s128
    %p130 = scmp.eq.s32.totalorder %s16, 0
    %p131 = por %p129, %p130
    %s132 = ssub.s32 %s17, %s29
    %s133 = ssub.s32 %s18, %s25
    %s134 = sor.u32 %s132, %s133
    %p135 = scmp.eq.s32.totalorder %s134, 0
    %s137 = sadd.s32 %s136, 1
    %s138 = scalar_select %p135, %s136, %s137
    %p141 = pneg %p135
    %p142 = scmp.eq.s32.totalorder %s10, 1
    %p143 = por %p141, %p142
    %p144 = scmp.ne.s32.totalorder %s136, %s139
    %p145 = scmp.eq.s32.totalorder %s10, 0
    %p146 = por %p144, %p145
    %p147 = scmp.ne.s32.totalorder %s136, %s139
    %p148 = scmp.eq.s32.totalorder %s15, 1
    %p149 = por %p147, %p148
    %p150 = scmp.ne.s32.totalorder %s139, %s140
    %p151 = scmp.eq.s32.totalorder %s15, 0
    %p152 = por %p150, %p151
    %p153 = scmp.ne.s32.totalorder %s139, %s140
    %p154 = scmp.eq.s32.totalorder %s16, 1
    %p155 = por %p153, %p154
    %p157 = scmp.ne.s32.totalorder %s140, %s156
    %p158 = scmp.eq.s32.totalorder %s16, 0
    %p159 = por %p157, %p158
    %p160 = scmp.le.s32.totalorder 1, %s10
    %p161 = scmp.lt.s32.totalorder %s10, 3
    %p162 = pnand %p160, %p161
    %p163 = pneg %p162
    // Predicated region
    $region9: #{upsample_forward.1} parent=5 // pred_check
      _
    $region10: #{upsample_forward.1} parent=5 // pred_check_branch
      %165 = sbr.rel (%p162) target = $region12
    $region11: #{upsample_forward.1} parent=5 // pred_region
      %s166 = ssub.s32 %s10, 1
      // Predicated region
      $region13: #{upsample_forward.1} parent=11 // pred_check
        %p167 = pneg %p103
      $region14: #{upsample_forward.1} parent=11 // pred_check_branch
        %169 = sbr.rel (%p167) target = $region16
      $region15: #{upsample_forward.1} parent=11 // pred_region
        _
      $region16: #{upsample_forward.1} parent=11 // pred_fallthru
        _
      // Predicated region
      $region17: #{upsample_forward.1} parent=11 // pred_check
        %p170 = pneg %p124
      $region18: #{upsample_forward.1} parent=11 // pred_check_branch
        %172 = sbr.rel (%p170) target = $region20
      $region19: #{upsample_forward.1} parent=11 // pred_region
        _
      $region20: #{upsample_forward.1} parent=11 // pred_fallthru
        _
    $region12: #{upsample_forward.1} parent=5 // pred_fallthru
      _
    %p173 = scmp.lt.s32.totalorder %s10, 2
    // Predicated region
    $region21: #{upsample_forward.1} parent=5 // pred_check
      %p174 = pneg %p173
    $region22: #{upsample_forward.1} parent=5 // pred_check_branch
      %176 = sbr.rel (%p174) target = $region24
    $region23: #{upsample_forward.1} parent=5 // pred_region
      // Predicated region
      $region25: #{upsample_forward.1} parent=23 // pred_check
        %p177 = pneg %p44
      $region26: #{upsample_forward.1} parent=23 // pred_check_branch
        %179 = sbr.rel (%p177) target = $region28
      $region27: #{upsample_forward.1} parent=23 // pred_region
        %s180 = smul.u32 16, %s18
        %s181 = ssub.s32 18, %s180
        %p182 = scmp.lt.s32.totalorder %s181, 16
        %s183 = scalar_select %p182, %s181, 16
        %s184 = smul.u32 128, %s183
        %s185 = smul.u32 %s184, 3
        %p186 = scmp.lt.s32.totalorder %s17, 1
        %s187 = scalar_select %p186, %s17, 1
        %p188 = scmp.lt.s32.totalorder %s180, 17
        %s189 = scalar_select %p188, %s180, 17
        %s190 = smul.addr %s189, 3
        %s191 = smul.addr %s187, 54
        %s192 = sadd.s32 %s190, %s191
        %s193 = smul.addr %s192, 8
        %s194 = scalar_lea.vmem %s0, %s193
        %s195 = smul.u32 16, %s18
        %s196 = ssub.s32 18, %s195
        %p197 = scmp.lt.s32.totalorder %s196, 16
        %s198 = scalar_select %p197, %s196, 16
        %s199 = smul.u32 128, %s198
        %s200 = smul.u32 %s199, 3
      $region28: #{upsample_forward.1} parent=23 // pred_fallthru
        _
      // Predicated region
      $region29: #{upsample_forward.1} parent=23 // pred_check
        %p201 = pneg %p76
      $region30: #{upsample_forward.1} parent=23 // pred_check_branch
        %203 = sbr.rel (%p201) target = $region32
      $region31: #{upsample_forward.1} parent=23 // pred_region
        %s204 = sadd.s32 %s18, 1
        %s205 = smul.u32 %s204, 8
        %s206 = smul.u32 2, %s205
        %p207 = scmp.lt.s32.totalorder %s17, 1
        %s208 = scalar_select %p207, %s17, 1
        %p209 = scmp.lt.s32.totalorder %s206, 17
        %s210 = scalar_select %p209, %s206, 17
        %s211 = smul.addr %s210, 3
        %s212 = smul.addr %s208, 54
        %s213 = sadd.s32 %s211, %s212
        %s214 = smul.addr %s213, 8
        %s215 = scalar_lea.vmem %s1, %s214
        %s216 = sadd.s32 %s18, 1
        %s217 = smul.u32 %s216, 8
        %s218 = smul.u32 2, %s217
      $region32: #{upsample_forward.1} parent=23 // pred_fallthru
        _
    $region24: #{upsample_forward.1} parent=5 // pred_fallthru
      _
    %p219 = scmp.le.s32.totalorder 1, %s10
    %p220 = scmp.lt.s32.totalorder %s10, 3
    %p221 = pnand %p219, %p220
    %p222 = pneg %p221
    // Predicated region
    $region33: #{upsample_forward.1} parent=5 // pred_check
      _
    $region34: #{upsample_forward.1} parent=5 // pred_check_branch
      %224 = sbr.rel (%p221) target = $region36
    $region35: #{upsample_forward.1} parent=5 // pred_region
      %s225 = ssub.s32 %s10, 1
      %s226 = smul.u32 16, %s20
      %s227 = ssub.s32 18, %s226
      %p228 = scmp.lt.s32.totalorder %s227, 16
      %s229 = scalar_select %p228, %s227, 16
      %s230 = smul.u32 128, %s229
      %s231 = smul.u32 %s230, 3
      %p232 = scmp.lt.s32.totalorder %s19, 1
      %s233 = scalar_select %p232, %s19, 1
      %p234 = scmp.lt.s32.totalorder %s226, 17
      %s235 = scalar_select %p234, %s226, 17
      %s236 = smul.addr %s235, 3
      %s237 = smul.addr %s233, 54
      %s238 = sadd.s32 %s236, %s237
      %s239 = smul.addr %s238, 8
      %s240 = scalar_lea.vmem %s0, %s239
      %p241 = pneg %p50
      %p242 = pneg %p47
      %s243 = sadd.s32 %s20, 1
      %s244 = smul.u32 %s243, 8
      %s245 = smul.u32 2, %s244
      %p246 = scmp.lt.s32.totalorder %s19, 1
      %s247 = scalar_select %p246, %s19, 1
      %p248 = scmp.lt.s32.totalorder %s245, 17
      %s249 = scalar_select %p248, %s245, 17
      %s250 = smul.addr %s249, 3
      %s251 = smul.addr %s247, 54
      %s252 = sadd.s32 %s250, %s251
      %s253 = smul.addr %s252, 8
      %s254 = scalar_lea.vmem %s1, %s253
      %p255 = pneg %p82
      %p256 = pneg %p79
      %p257 = pneg %p103
      %p258 = pneg %p100
      %p259 = pneg %p124
      %p260 = pneg %p121
      %p261 = pneg %p152
      %p262 = pneg %p149
      %s263 = smul.u32 16, %s20
      %p264 = scmp.lt.s32.totalorder %s19, 1
      %s265 = scalar_select %p264, %s19, 1
      %p266 = scmp.lt.s32.totalorder %s263, 15
      %s267 = scalar_select %p266, %s263, 15
      %s268 = smul.addr %s267, 4
      %s269 = smul.addr %s265, 64
      %s270 = sadd.s32 %s268, %s269
      %s271 = smul.addr %s270, 8
      %s272 = scalar_lea.vmem %s4, %s271
      %s273 = smul.u32 16, %s20
      %s274 = ssub.s32 18, %s273
      %p275 = scmp.lt.s32.totalorder %s274, 16
      %s276 = scalar_select %p275, %s274, 16
      %s277 = smul.u32 128, %s276
      %s278 = smul.u32 %s277, 3
      %p279 = scmp.lt.s32.totalorder %s19, 1
      %s280 = scalar_select %p279, %s19, 1
      %p281 = scmp.lt.s32.totalorder %s273, 17
      %s282 = scalar_select %p281, %s273, 17
      %s283 = smul.addr %s282, 3
      %s284 = smul.addr %s280, 54
      %s285 = sadd.s32 %s283, %s284
      %s286 = smul.addr %s285, 8
      %s287 = scalar_lea.vmem %s0, %s286
      %s288 = smul.u32 16, %s20
      %s289 = ssub.s32 18, %s288
      %p290 = scmp.lt.s32.totalorder %s289, 16
      %s291 = scalar_select %p290, %s289, 16
      %s292 = smul.u32 128, %s291
      %s293 = smul.u32 %s292, 3
      %s294 = sadd.s32 %s20, 1
      %s295 = smul.u32 %s294, 8
      %s296 = smul.u32 2, %s295
      %p297 = scmp.lt.s32.totalorder %s19, 1
      %s298 = scalar_select %p297, %s19, 1
      %p299 = scmp.lt.s32.totalorder %s296, 17
      %s300 = scalar_select %p299, %s296, 17
      %s301 = smul.addr %s300, 3
      %s302 = smul.addr %s298, 54
      %s303 = sadd.s32 %s301, %s302
      %s304 = smul.addr %s303, 8
      %s305 = scalar_lea.vmem %s1, %s304
      %s306 = sadd.s32 %s20, 1
      %s307 = smul.u32 %s306, 8
      %s308 = smul.u32 2, %s307
      %s309 = smul.u32 16, %s20
      %p310 = scmp.lt.s32.totalorder %s19, 1
      %s311 = scalar_select %p310, %s19, 1
      %p312 = scmp.lt.s32.totalorder %s309, 15
      %s313 = scalar_select %p312, %s309, 15
      %s314 = smul.addr %s313, 4
      %s315 = smul.addr %s311, 64
      %s316 = sadd.s32 %s314, %s315
      %s317 = smul.addr %s316, 8
      %s318 = scalar_lea.vmem %s4, %s317
      %s319 = smul.u32 16, %s20
      %v320 = vld [vmem:[%s3] sm:$0x1]
      %v321 = vld [vmem:[%s287] sm:$0xff]
      %v322 = vld [vmem:[%s287 + $0x8] sm:$0xff]
      %v323 = vld [vmem:[%s287 + $0x18] sm:$0xff]
      %v324 = vld [vmem:[%s287 + $0x20] sm:$0xff]
      %v325 = vld [vmem:[%s287 + $0x30] sm:$0xff]
      %v326 = vld [vmem:[%s287 + $0x38] sm:$0xff]
      %v327 = vld [vmem:[%s287 + $0x48] sm:$0xff]
      %v328 = vld [vmem:[%s287 + $0x50] sm:$0xff]
      %v329 = vld [vmem:[%s287 + $0x60] sm:$0xff]
      %v330 = vld [vmem:[%s287 + $0x68] sm:$0xff]
      %v331 = vld [vmem:[%s287 + $0x78] sm:$0xff]
      %v332 = vld [vmem:[%s287 + $0x80] sm:$0xff]
      %v333 = vld [vmem:[%s287 + $0x90] sm:$0xff]
      %v334 = vld [vmem:[%s287 + $0x98] sm:$0xff]
      %v335 = vld [vmem:[%s287 + $0xa8] sm:$0xff]
      %v336 = vld [vmem:[%s287 + $0xb0] sm:$0xff]
      %v337 = vld [vmem:[%s287 + $0xc0] sm:$0xff]
      %v338 = vld [vmem:[%s287 + $0xc8] sm:$0xff]
      %v339 = vld [vmem:[%s287 + $0xd8] sm:$0xff]
      %v340 = vld [vmem:[%s287 + $0xe0] sm:$0xff]
      %v341 = vld [vmem:[%s287 + $0xf0] sm:$0xff]
      %v342 = vld [vmem:[%s287 + $0xf8] sm:$0xff]
      %v343 = vld [vmem:[%s287 + $0x108] sm:$0xff]
      %v344 = vld [vmem:[%s287 + $0x110] sm:$0xff]
      %v345 = vld [vmem:[%s287 + $0x120] sm:$0xff]
      %v346 = vld [vmem:[%s287 + $0x128] sm:$0xff]
      %v347 = vld [vmem:[%s287 + $0x138] sm:$0xff]
      %v348 = vld [vmem:[%s287 + $0x140] sm:$0xff]
      %v349 = vld [vmem:[%s287 + $0x150] sm:$0xff]
      %v350 = vld [vmem:[%s287 + $0x158] sm:$0xff]
      %v351 = vld [vmem:[%s287 + $0x168] sm:$0xff]
      %v352 = vld [vmem:[%s287 + $0x170] sm:$0xff]
      %v353 = vld [vmem:[%s305] sm:$0xff]
      %v354 = vld [vmem:[%s305 + $0x8] sm:$0xff]
      %v355 = vld [vmem:[%s305 + $0x18] sm:$0xff]
      %v356 = vld [vmem:[%s305 + $0x20] sm:$0xff]
      %v357 = vld [vmem:[%s287 + $0x1] sm:$0xff]
      %v358 = vld [vmem:[%s287 + $0x9] sm:$0xff]
      %v359 = vld [vmem:[%s287 + $0x19] sm:$0xff]
      %v360 = vld [vmem:[%s287 + $0x21] sm:$0xff]
      %v361 = vld [vmem:[%s287 + $0x31] sm:$0xff]
      %v362 = vld [vmem:[%s287 + $0x39] sm:$0xff]
      %v363 = vld [vmem:[%s287 + $0x49] sm:$0xff]
      %v364 = vld [vmem:[%s287 + $0x51] sm:$0xff]
      %v365 = vld [vmem:[%s287 + $0x61] sm:$0xff]
      %v366 = vld [vmem:[%s287 + $0x69] sm:$0xff]
      %v367 = vld [vmem:[%s287 + $0x79] sm:$0xff]
      %v368 = vld [vmem:[%s287 + $0x81] sm:$0xff]
      %v369 = vld [vmem:[%s287 + $0x91] sm:$0xff]
      %v370 = vld [vmem:[%s287 + $0x99] sm:$0xff]
      %v371 = vld [vmem:[%s287 + $0xa9] sm:$0xff]
      %v372 = vld [vmem:[%s287 + $0xb1] sm:$0xff]
      %v373 = vld [vmem:[%s287 + $0xc1] sm:$0xff]
      %v374 = vld [vmem:[%s287 + $0xc9] sm:$0xff]
      %v375 = vld [vmem:[%s287 + $0xd9] sm:$0xff]
      %v376 = vld [vmem:[%s287 + $0xe1] sm:$0xff]
      %v377 = vld [vmem:[%s287 + $0xf1] sm:$0xff]
      %v378 = vld [vmem:[%s287 + $0xf9] sm:$0xff]
      %v379 = vld [vmem:[%s287 + $0x109] sm:$0xff]
      %v380 = vld [vmem:[%s287 + $0x111] sm:$0xff]
      %v381 = vld [vmem:[%s287 + $0x121] sm:$0xff]
      %v382 = vld [vmem:[%s287 + $0x129] sm:$0xff]
      %v383 = vld [vmem:[%s287 + $0x139] sm:$0xff]
      %v384 = vld [vmem:[%s287 + $0x141] sm:$0xff]
      %v385 = vld [vmem:[%s287 + $0x151] sm:$0xff]
      %v386 = vld [vmem:[%s287 + $0x159] sm:$0xff]
      %v387 = vld [vmem:[%s287 + $0x169] sm:$0xff]
      %v388 = vld [vmem:[%s287 + $0x171] sm:$0xff]
      %v389 = vld [vmem:[%s305 + $0x1] sm:$0xff]
      %v390 = vld [vmem:[%s305 + $0x9] sm:$0xff]
      %v391 = vld [vmem:[%s305 + $0x19] sm:$0xff]
      %v392 = vld [vmem:[%s305 + $0x21] sm:$0xff]
      %v393 = vld [vmem:[%s287 + $0x2] sm:$0xff]
      %v394 = vld [vmem:[%s287 + $0xa] sm:$0xff]
      %v395 = vld [vmem:[%s287 + $0x1a] sm:$0xff]
      %v396 = vld [vmem:[%s287 + $0x22] sm:$0xff]
      %v397 = vld [vmem:[%s287 + $0x32] sm:$0xff]
      %v398 = vld [vmem:[%s287 + $0x3a] sm:$0xff]
      %v399 = vld [vmem:[%s287 + $0x4a] sm:$0xff]
      %v400 = vld [vmem:[%s287 + $0x52] sm:$0xff]
      %v401 = vld [vmem:[%s287 + $0x62] sm:$0xff]
      %v402 = vld [vmem:[%s287 + $0x6a] sm:$0xff]
      %v403 = vld [vmem:[%s287 + $0x7a] sm:$0xff]
      %v404 = vld [vmem:[%s287 + $0x82] sm:$0xff]
      %v405 = vld [vmem:[%s287 + $0x92] sm:$0xff]
      %v406 = vld [vmem:[%s287 + $0x9a] sm:$0xff]
      %v407 = vld [vmem:[%s287 + $0xaa] sm:$0xff]
      %v408 = vld [vmem:[%s287 + $0xb2] sm:$0xff]
      %v409 = vld [vmem:[%s287 + $0xc2] sm:$0xff]
      %v410 = vld [vmem:[%s287 + $0xca] sm:$0xff]
      %v411 = vld [vmem:[%s287 + $0xda] sm:$0xff]
      %v412 = vld [vmem:[%s287 + $0xe2] sm:$0xff]
      %v413 = vld [vmem:[%s287 + $0xf2] sm:$0xff]
      %v414 = vld [vmem:[%s287 + $0xfa] sm:$0xff]
      %v415 = vld [vmem:[%s287 + $0x10a] sm:$0xff]
      %v416 = vld [vmem:[%s287 + $0x112] sm:$0xff]
      %v417 = vld [vmem:[%s287 + $0x122] sm:$0xff]
      %v418 = vld [vmem:[%s287 + $0x12a] sm:$0xff]
      %v419 = vld [vmem:[%s287 + $0x13a] sm:$0xff]
      %v420 = vld [vmem:[%s287 + $0x142] sm:$0xff]
      %v421 = vld [vmem:[%s287 + $0x152] sm:$0xff]
      %v422 = vld [vmem:[%s287 + $0x15a] sm:$0xff]
      %v423 = vld [vmem:[%s287 + $0x16a] sm:$0xff]
      %v424 = vld [vmem:[%s287 + $0x172] sm:$0xff]
      %v425 = vld [vmem:[%s305 + $0x2] sm:$0xff]
      %v426 = vld [vmem:[%s305 + $0xa] sm:$0xff]
      %v427 = vld [vmem:[%s305 + $0x1a] sm:$0xff]
      %v428 = vld [vmem:[%s305 + $0x22] sm:$0xff]
      %v429 = vld [vmem:[%s2] sm:$0xf]
      %s430 = scalar_lea.vmem %s2, 4
      %v431 = vld [vmem:[%s430] sm:$0xf]
      %vm432 = vcmask 31744
      %v434 = vsel %vm432, %v357, 0
      %v437 = vsel %vm432, %v358, 0
      %v440 = vsel %vm432, %v359, 0
      %v443 = vsel %vm432, %v360, 0
      %v446 = vsel %vm432, %v361, 0
      %v449 = vsel %vm432, %v362, 0
      %v452 = vsel %vm432, %v363, 0
      %v455 = vsel %vm432, %v364, 0
      %v458 = vsel %vm432, %v365, 0
      %v461 = vsel %vm432, %v366, 0
      %v464 = vsel %vm432, %v367, 0
      %v467 = vsel %vm432, %v368, 0
      %v470 = vsel %vm432, %v369, 0
      %v473 = vsel %vm432, %v370, 0
      %v476 = vsel %vm432, %v371, 0
      %v479 = vsel %vm432, %v372, 0
      %v482 = vsel %vm432, %v373, 0
      %v485 = vsel %vm432, %v374, 0
      %v488 = vsel %vm432, %v375, 0
      %v491 = vsel %vm432, %v376, 0
      %v494 = vsel %vm432, %v377, 0
      %v497 = vsel %vm432, %v378, 0
      %v500 = vsel %vm432, %v379, 0
      %v503 = vsel %vm432, %v380, 0
      %v506 = vsel %vm432, %v381, 0
      %v509 = vsel %vm432, %v382, 0
      %v512 = vsel %vm432, %v383, 0
      %v515 = vsel %vm432, %v384, 0
      %v518 = vsel %vm432, %v385, 0
      %v521 = vsel %vm432, %v386, 0
      %v524 = vsel %vm432, %v387, 0
      %v527 = vsel %vm432, %v388, 0
      %vm529 = vcmask 1043456
      %v531 = vsel %vm529, %v431, 0
      %533 = vmatprep.subr.mxu0 0.0
      %534 = vmatpush1.msra.mxu0 %v531
      %535 = vmatprep.subr.mxu0 0.0
      %536 = vmatpush1.msra.mxu0 0.0
      %537 = vmatprep.subr.mxu0 0.0
      %538 = vmatpush1.msra.mxu0 0.0
      %539 = vmatprep.subr.mxu0 0.0
      %540 = vmatpush1.msra.mxu0 0.0
      %541 = vmatprep.subr.mxu0 0.0
      %542 = vmatpush1.msra.mxu0 0.0
      %543 = vmatprep.subr.mxu0 0.0
      %544 = vmatpush1.msra.mxu0 0.0
      %545 = vmatprep.subr.mxu0 0.0
      %546 = vmatpush1.msra.mxu0 0.0
      %547 = vmatprep.subr.mxu0 0.0
      %548 = vmatpush1.msra.mxu0 0.0
      %549 = vmatprep.subr.mxu0 0.0
      %550 = vmatpush1.msra.mxu0 0.0
      %551 = vmatprep.subr.mxu0 0.0
      %552 = vmatpush1.msra.mxu0 0.0
      %553 = vmatprep.subr.mxu0 0.0
      %554 = vmatpush1.msra.mxu0 0.0
      %555 = vmatprep.subr.mxu0 0.0
      %556 = vmatpush1.msra.mxu0 0.0
      %557 = vmatprep.subr.mxu0 0.0
      %558 = vmatpush1.msra.mxu0 0.0
      %559 = vmatprep.subr.mxu0 0.0
      %560 = vmatpush1.msra.mxu0 0.0
      %561 = vmatprep.subr.mxu0 0.0
      %562 = vmatpush1.msra.mxu0 0.0
      %563 = vmatprep.subr.mxu0 0.0
      %564 = vmatpush1.msra.mxu0 0.0
      %565 = vmatprep.subr.mxu0 0.0
      %566 = vmatpush1.msra.mxu0 0.0
      %567 = vmatprep.subr.mxu0 0.0
      %568 = vmatpush1.msra.mxu0 0.0
      %569 = vmatprep.subr.mxu0 0.0
      %570 = vmatpush1.msra.mxu0 0.0
      %571 = vmatprep.subr.mxu0 0.0
      %572 = vmatpush1.msra.mxu0 0.0
      %573 = vmatprep.subr.mxu0 0.0
      %574 = vmatpush1.msra.mxu0 0.0
      %575 = vmatprep.subr.mxu0 0.0
      %576 = vmatpush1.msra.mxu0 0.0
      %577 = vmatprep.subr.mxu0 0.0
      %578 = vmatpush1.msra.mxu0 0.0
      %579 = vmatprep.subr.mxu0 0.0
      %580 = vmatpush1.msra.mxu0 0.0
      %581 = vmatprep.subr.mxu0 0.0
      %582 = vmatpush1.msra.mxu0 0.0
      %583 = vmatprep.subr.mxu0 0.0
      %584 = vmatpush1.msra.mxu0 0.0
      %585 = vmatprep.subr.mxu0 0.0
      %586 = vmatpush1.msra.mxu0 0.0
      %587 = vmatprep.subr.mxu0 0.0
      %588 = vmatpush1.msra.mxu0 0.0
      %589 = vmatprep.subr.mxu0 0.0
      %590 = vmatpush1.msra.mxu0 0.0
      %591 = vmatprep.subr.mxu0 0.0
      %592 = vmatpush1.msra.mxu0 0.0
      %593 = vmatprep.subr.mxu0 0.0
      %594 = vmatpush1.msra.mxu0 0.0
      %595 = vmatprep.subr.mxu0 0.0
      %596 = vmatpush1.msra.mxu0 0.0
      %597 = vmatprep.mubr.f32.mxu0 0.0
      %598 = vmatmul.mubr.f32.gmra.mrb[0].mxu0 %v434
      %v599 = vpop.f32.mrb[0].mxu0
      %v600 = vadd.f32 0.0, %v599
      %v601 = vpop.f32.mrb[0].mxu0
      %602 = vmatprep.mubr.f32.mxu0 0.0
      %603 = vmatmul.mubr.f32.gmra.mrb[0].mxu0 %v437
      %v604 = vpop.f32.mrb[0].mxu0
      %v605 = vadd.f32 0.0, %v604
      %v606 = vpop.f32.mrb[0].mxu0
      %607 = vmatprep.mubr.f32.mxu0 0.0
      %608 = vmatmul.mubr.f32.gmra.mrb[0].mxu0 %v440
      %v609 = vpop.f32.mrb[0].mxu0
      %v610 = vadd.f32 0.0, %v609
      %v611 = vpop.f32.mrb[0].mxu0
      %612 = vmatprep.mubr.f32.mxu0 0.0
      %613 = vmatmul.mubr.f32.gmra.mrb[0].mxu0 %v443
      %v614 = vpop.f32.mrb[0].mxu0
      %v615 = vadd.f32 0.0, %v614
      %v616 = vpop.f32.mrb[0].mxu0
      %617 = vmatprep.mubr.f32.mxu0 0.0
      %618 = vmatmul.mubr.f32.gmra.mrb[0].mxu0 %v446
      %v619 = vpop.f32.mrb[0].mxu0
      %v620 = vadd.f32 0.0, %v619
      %v621 = vpop.f32.mrb[0].mxu0
      %622 = vmatprep.mubr.f32.mxu0 0.0
      %623 = vmatmul.mubr.f32.gmra.mrb[0].mxu0 %v449
      %v624 = vpop.f32.mrb[0].mxu0
      %v625 = vadd.f32 0.0, %v624
      %v626 = vpop.f32.mrb[0].mxu0
      %627 = vmatprep.mubr.f32.mxu0 0.0
      %628 = vmatmul.mubr.f32.gmra.mrb[0].mxu0 %v452
      %v629 = vpop.f32.mrb[0].mxu0
      %v630 = vadd.f32 0.0, %v629
      %v631 = vpop.f32.mrb[0].mxu0
      %632 = vmatprep.mubr.f32.mxu0 0.0
      %633 = vmatmul.mubr.f32.gmra.mrb[0].mxu0 %v455
      %v634 = vpop.f32.mrb[0].mxu0
      %v635 = vadd.f32 0.0, %v634
      %v636 = vpop.f32.mrb[0].mxu0
      %637 = vmatprep.mubr.f32.mxu0 0.0
      %638 = vmatmul.mubr.f32.gmra.mrb[0].mxu0 %v458
      %v639 = vpop.f32.mrb[0].mxu0
      %v640 = vadd.f32 0.0, %v639
      %v641 = vpop.f32.mrb[0].mxu0
      %642 = vmatprep.mubr.f32.mxu0 0.0
      %643 = vmatmul.mubr.f32.gmra.mrb[0].mxu0 %v461
      %v644 = vpop.f32.mrb[0].mxu0
      %v645 = vadd.f32 0.0, %v644
      %v646 = vpop.f32.mrb[0].mxu0
      %647 = vmatprep.mubr.f32.mxu0 0.0
      %648 = vmatmul.mubr.f32.gmra.mrb[0].mxu0 %v464
      %v649 = vpop.f32.mrb[0].mxu0
      %v650 = vadd.f32 0.0, %v649
      %v651 = vpop.f32.mrb[0].mxu0
      %652 = vmatprep.mubr.f32.mxu0 0.0
      %653 = vmatmul.mubr.f32.gmra.mrb[0].mxu0 %v467
      %v654 = vpop.f32.mrb[0].mxu0
      %v655 = vadd.f32 0.0, %v654
      %v656 = vpop.f32.mrb[0].mxu0
      %657 = vmatprep.mubr.f32.mxu0 0.0
      %658 = vmatmul.mubr.f32.gmra.mrb[0].mxu0 %v470
      %v659 = vpop.f32.mrb[0].mxu0
      %v660 = vadd.f32 0.0, %v659
      %v661 = vpop.f32.mrb[0].mxu0
      %662 = vmatprep.mubr.f32.mxu0 0.0
      %663 = vmatmul.mubr.f32.gmra.mrb[0].mxu0 %v473
      %v664 = vpop.f32.mrb[0].mxu0
      %v665 = vadd.f32 0.0, %v664
      %v666 = vpop.f32.mrb[0].mxu0
      %667 = vmatprep.mubr.f32.mxu0 0.0
      %668 = vmatmul.mubr.f32.gmra.mrb[0].mxu0 %v476
      %v669 = vpop.f32.mrb[0].mxu0
      %v670 = vadd.f32 0.0, %v669
      %v671 = vpop.f32.mrb[0].mxu0
      %672 = vmatprep.mubr.f32.mxu0 0.0
      %673 = vmatmul.mubr.f32.gmra.mrb[0].mxu0 %v479
      %v674 = vpop.f32.mrb[0].mxu0
      %v675 = vadd.f32 0.0, %v674
      %v676 = vpop.f32.mrb[0].mxu0
      %677 = vmatprep.mubr.f32.mxu0 0.0
      %678 = vmatmul.mubr.f32.gmra.mrb[0].mxu0 %v482
      %v679 = vpop.f32.mrb[0].mxu0
      %v680 = vadd.f32 0.0, %v679
      %v681 = vpop.f32.mrb[0].mxu0
      %682 = vmatprep.mubr.f32.mxu0 0.0
      %683 = vmatmul.mubr.f32.gmra.mrb[0].mxu0 %v485
      %v684 = vpop.f32.mrb[0].mxu0
      %v685 = vadd.f32 0.0, %v684
      %v686 = vpop.f32.mrb[0].mxu0
      %687 = vmatprep.mubr.f32.mxu0 0.0
      %688 = vmatmul.mubr.f32.gmra.mrb[0].mxu0 %v488
      %v689 = vpop.f32.mrb[0].mxu0
      %v690 = vadd.f32 0.0, %v689
      %v691 = vpop.f32.mrb[0].mxu0
      %692 = vmatprep.mubr.f32.mxu0 0.0
      %693 = vmatmul.mubr.f32.gmra.mrb[0].mxu0 %v491
      %v694 = vpop.f32.mrb[0].mxu0
      %v695 = vadd.f32 0.0, %v694
      %v696 = vpop.f32.mrb[0].mxu0
      %697 = vmatprep.mubr.f32.mxu0 0.0
      %698 = vmatmul.mubr.f32.gmra.mrb[0].mxu0 %v494
      %v699 = vpop.f32.mrb[0].mxu0
      %v700 = vadd.f32 0.0, %v699
      %v701 = vpop.f32.mrb[0].mxu0
      %702 = vmatprep.mubr.f32.mxu0 0.0
      %703 = vmatmul.mubr.f32.gmra.mrb[0].mxu0 %v497
      %v704 = vpop.f32.mrb[0].mxu0
      %v705 = vadd.f32 0.0, %v704
      %v706 = vpop.f32.mrb[0].mxu0
      %707 = vmatprep.mubr.f32.mxu0 0.0
      %708 = vmatmul.mubr.f32.gmra.mrb[0].mxu0 %v500
      %v709 = vpop.f32.mrb[0].mxu0
      %v710 = vadd.f32 0.0, %v709
      %v711 = vpop.f32.mrb[0].mxu0
      %712 = vmatprep.mubr.f32.mxu0 0.0
      %713 = vmatmul.mubr.f32.gmra.mrb[0].mxu0 %v503
      %v714 = vpop.f32.mrb[0].mxu0
      %v715 = vadd.f32 0.0, %v714
      %v716 = vpop.f32.mrb[0].mxu0
      %717 = vmatprep.mubr.f32.mxu0 0.0
      %718 = vmatmul.mubr.f32.gmra.mrb[0].mxu0 %v506
      %v719 = vpop.f32.mrb[0].mxu0
      %v720 = vadd.f32 0.0, %v719
      %v721 = vpop.f32.mrb[0].mxu0
      %722 = vmatprep.mubr.f32.mxu0 0.0
      %723 = vmatmul.mubr.f32.gmra.mrb[0].mxu0 %v509
      %v724 = vpop.f32.mrb[0].mxu0
      %v725 = vadd.f32 0.0, %v724
      %v726 = vpop.f32.mrb[0].mxu0
      %727 = vmatprep.mubr.f32.mxu0 0.0
      %728 = vmatmul.mubr.f32.gmra.mrb[0].mxu0 %v512
      %v729 = vpop.f32.mrb[0].mxu0
      %v730 = vadd.f32 0.0, %v729
      %v731 = vpop.f32.mrb[0].mxu0
      %732 = vmatprep.mubr.f32.mxu0 0.0
      %733 = vmatmul.mubr.f32.gmra.mrb[0].mxu0 %v515
      %v734 = vpop.f32.mrb[0].mxu0
      %v735 = vadd.f32 0.0, %v734
      %v736 = vpop.f32.mrb[0].mxu0
      %737 = vmatprep.mubr.f32.mxu0 0.0
      %738 = vmatmul.mubr.f32.gmra.mrb[0].mxu0 %v518
      %v739 = vpop.f32.mrb[0].mxu0
      %v740 = vadd.f32 0.0, %v739
      %v741 = vpop.f32.mrb[0].mxu0
      %742 = vmatprep.mubr.f32.mxu0 0.0
      %743 = vmatmul.mubr.f32.gmra.mrb[0].mxu0 %v521
      %v744 = vpop.f32.mrb[0].mxu0
      %v745 = vadd.f32 0.0, %v744
      %v746 = vpop.f32.mrb[0].mxu0
      %747 = vmatprep.mubr.f32.mxu0 0.0
      %748 = vmatmul.mubr.f32.gmra.mrb[0].mxu0 %v524
      %v749 = vpop.f32.mrb[0].mxu0
      %v750 = vadd.f32 0.0, %v749
      %v751 = vpop.f32.mrb[0].mxu0
      %752 = vmatprep.mubr.f32.mxu0 0.0
      %753 = vmatmul.mubr.f32.gmra.mrb[0].mxu0 %v527
      %v754 = vpop.f32.mrb[0].mxu0
      %v755 = vadd.f32 0.0, %v754
      %v756 = vpop.f32.mrb[0].mxu0
      %757 = vdwg.mxu0
      %v759 = vsel %vm432, %v321, 0
      %v762 = vsel %vm432, %v322, 0
      %v765 = vsel %vm432, %v323, 0
      %v768 = vsel %vm432, %v324, 0
      %v771 = vsel %vm432, %v325, 0
      %v774 = vsel %vm432, %v326, 0
      %v777 = vsel %vm432, %v327, 0
      %v780 = vsel %vm432, %v328, 0
      %v783 = vsel %vm432, %v329, 0
      %v786 = vsel %vm432, %v330, 0
      %v789 = vsel %vm432, %v331, 0
      %v792 = vsel %vm432, %v332, 0
      %v795 = vsel %vm432, %v333, 0
      %v798 = vsel %vm432, %v334, 0
      %v801 = vsel %vm432, %v335, 0
      %v804 = vsel %vm432, %v336, 0
      %v807 = vsel %vm432, %v337, 0
      %v810 = vsel %vm432, %v338, 0
      %v813 = vsel %vm432, %v339, 0
      %v816 = vsel %vm432, %v340, 0
      %v819 = vsel %vm432, %v341, 0
      %v822 = vsel %vm432, %v342, 0
      %v825 = vsel %vm432, %v343, 0
      %v828 = vsel %vm432, %v344, 0
      %v831 = vsel %vm432, %v345, 0
      %v834 = vsel %vm432, %v346, 0
      %v837 = vsel %vm432, %v347, 0
      %v840 = vsel %vm432, %v348, 0
      %v843 = vsel %vm432, %v349, 0
      %v846 = vsel %vm432, %v350, 0
      %v849 = vsel %vm432, %v351, 0
      %v852 = vsel %vm432, %v352, 0
      %v855 = vsel %vm529, %v429, 0
      %857 = vmatprep.subr.mxu0 0.0
      %858 = vmatpush1.msra.mxu0 %v855
      %859 = vmatprep.subr.mxu0 0.0
      %860 = vmatpush1.msra.mxu0 0.0
      %861 = vmatprep.subr.mxu0 0.0
      %862 = vmatpush1.msra.mxu0 0.0
      %863 = vmatprep.subr.mxu0 0.0
      %864 = vmatpush1.msra.mxu0 0.0
      %865 = vmatprep.subr.mxu0 0.0
      %866 = vmatpush1.msra.mxu0 0.0
      %867 = vmatprep.subr.mxu0 0.0
      %868 = vmatpush1.msra.mxu0 0.0
      %869 = vmatprep.subr.mxu0 0.0
      %870 = vmatpush1.msra.mxu0 0.0
      %871 = vmatprep.subr.mxu0 0.0
      %872 = vmatpush1.msra.mxu0 0.0
      %873 = vmatprep.subr.mxu0 0.0
      %874 = vmatpush1.msra.mxu0 0.0
      %875 = vmatprep.subr.mxu0 0.0
      %876 = vmatpush1.msra.mxu0 0.0
      %877 = vmatprep.subr.mxu0 0.0
      %878 = vmatpush1.msra.mxu0 0.0
      %879 = vmatprep.subr.mxu0 0.0
      %880 = vmatpush1.msra.mxu0 0.0
      %881 = vmatprep.subr.mxu0 0.0
      %882 = vmatpush1.msra.mxu0 0.0
      %883 = vmatprep.subr.mxu0 0.0
      %884 = vmatpush1.msra.mxu0 0.0
      %885 = vmatprep.subr.mxu0 0.0
      %886 = vmatpush1.msra.mxu0 0.0
      %887 = vmatprep.subr.mxu0 0.0
      %888 = vmatpush1.msra.mxu0 0.0
      %889 = vmatprep.subr.mxu0 0.0
      %890 = vmatpush1.msra.mxu0 0.0
      %891 = vmatprep.subr.mxu0 0.0
      %892 = vmatpush1.msra.mxu0 0.0
      %893 = vmatprep.subr.mxu0 0.0
      %894 = vmatpush1.msra.mxu0 0.0
      %895 = vmatprep.subr.mxu0 0.0
      %896 = vmatpush1.msra.mxu0 0.0
      %897 = vmatprep.subr.mxu0 0.0
      %898 = vmatpush1.msra.mxu0 0.0
      %899 = vmatprep.subr.mxu0 0.0
      %900 = vmatpush1.msra.mxu0 0.0
      %901 = vmatprep.subr.mxu0 0.0
      %902 = vmatpush1.msra.mxu0 0.0
      %903 = vmatprep.subr.mxu0 0.0
      %904 = vmatpush1.msra.mxu0 0.0
      %905 = vmatprep.subr.mxu0 0.0
      %906 = vmatpush1.msra.mxu0 0.0
      %907 = vmatprep.subr.mxu0 0.0
      %908 = vmatpush1.msra.mxu0 0.0
      %909 = vmatprep.subr.mxu0 0.0
      %910 = vmatpush1.msra.mxu0 0.0
      %911 = vmatprep.subr.mxu0 0.0
      %912 = vmatpush1.msra.mxu0 0.0
      %913 = vmatprep.subr.mxu0 0.0
      %914 = vmatpush1.msra.mxu0 0.0
      %915 = vmatprep.subr.mxu0 0.0
      %916 = vmatpush1.msra.mxu0 0.0
      %917 = vmatprep.subr.mxu0 0.0
      %918 = vmatpush1.msra.mxu0 0.0
      %919 = vmatprep.subr.mxu0 0.0
      %920 = vmatpush1.msra.mxu0 0.0
      %921 = vmatprep.mubr.f32.mxu0 0.0
      %922 = vmatmul.mubr.f32.gmra.mrb[0].mxu0 %v759
      %v923 = vpop.f32.mrb[0].mxu0
      %v924 = vadd.f32 %v600, %v923
      %v925 = vpop.f32.mrb[0].mxu0
      %926 = vmatprep.mubr.f32.mxu0 0.0
      %927 = vmatmul.mubr.f32.gmra.mrb[0].mxu0 %v762
      %v928 = vpop.f32.mrb[0].mxu0
      %v929 = vadd.f32 %v605, %v928
      %v930 = vpop.f32.mrb[0].mxu0
      %931 = vmatprep.mubr.f32.mxu0 0.0
      %932 = vmatmul.mubr.f32.gmra.mrb[0].mxu0 %v765
      %v933 = vpop.f32.mrb[0].mxu0
      %v934 = vadd.f32 %v610, %v933
      %v935 = vpop.f32.mrb[0].mxu0
      %936 = vmatprep.mubr.f32.mxu0 0.0
      %937 = vmatmul.mubr.f32.gmra.mrb[0].mxu0 %v768
      %v938 = vpop.f32.mrb[0].mxu0
      %v939 = vadd.f32 %v615, %v938
      %v940 = vpop.f32.mrb[0].mxu0
      %941 = vmatprep.mubr.f32.mxu0 0.0
      %942 = vmatmul.mubr.f32.gmra.mrb[0].mxu0 %v771
      %v943 = vpop.f32.mrb[0].mxu0
      %v944 = vadd.f32 %v620, %v943
      %v945 = vpop.f32.mrb[0].mxu0
      %946 = vmatprep.mubr.f32.mxu0 0.0
      %947 = vmatmul.mubr.f32.gmra.mrb[0].mxu0 %v774
      %v948 = vpop.f32.mrb[0].mxu0
      %v949 = vadd.f32 %v625, %v948
      %v950 = vpop.f32.mrb[0].mxu0
      %951 = vmatprep.mubr.f32.mxu0 0.0
      %952 = vmatmul.mubr.f32.gmra.mrb[0].mxu0 %v777
      %v953 = vpop.f32.mrb[0].mxu0
      %v954 = vadd.f32 %v630, %v953
      %v955 = vpop.f32.mrb[0].mxu0
      %956 = vmatprep.mubr.f32.mxu0 0.0
      %957 = vmatmul.mubr.f32.gmra.mrb[0].mxu0 %v780
      %v958 = vpop.f32.mrb[0].mxu0
      %v959 = vadd.f32 %v635, %v958
      %v960 = vpop.f32.mrb[0].mxu0
      %961 = vmatprep.mubr.f32.mxu0 0.0
      %962 = vmatmul.mubr.f32.gmra.mrb[0].mxu0 %v783
      %v963 = vpop.f32.mrb[0].mxu0
      %v964 = vadd.f32 %v640, %v963
      %v965 = vpop.f32.mrb[0].mxu0
      %966 = vmatprep.mubr.f32.mxu0 0.0
      %967 = vmatmul.mubr.f32.gmra.mrb[0].mxu0 %v786
      %v968 = vpop.f32.mrb[0].mxu0
      %v969 = vadd.f32 %v645, %v968
      %v970 = vpop.f32.mrb[0].mxu0
      %971 = vmatprep.mubr.f32.mxu0 0.0
      %972 = vmatmul.mubr.f32.gmra.mrb[0].mxu0 %v789
      %v973 = vpop.f32.mrb[0].mxu0
      %v974 = vadd.f32 %v650, %v973
      %v975 = vpop.f32.mrb[0].mxu0
      %976 = vmatprep.mubr.f32.mxu0 0.0
      %977 = vmatmul.mubr.f32.gmra.mrb[0].mxu0 %v792
      %v978 = vpop.f32.mrb[0].mxu0
      %v979 = vadd.f32 %v655, %v978
      %v980 = vpop.f32.mrb[0].mxu0
      %981 = vmatprep.mubr.f32.mxu0 0.0
      %982 = vmatmul.mubr.f32.gmra.mrb[0].mxu0 %v795
      %v983 = vpop.f32.mrb[0].mxu0
      %v984 = vadd.f32 %v660, %v983
      %v985 = vpop.f32.mrb[0].mxu0
      %986 = vmatprep.mubr.f32.mxu0 0.0
      %987 = vmatmul.mubr.f32.gmra.mrb[0].mxu0 %v798
      %v988 = vpop.f32.mrb[0].mxu0
      %v989 = vadd.f32 %v665, %v988
      %v990 = vpop.f32.mrb[0].mxu0
      %991 = vmatprep.mubr.f32.mxu0 0.0
      %992 = vmatmul.mubr.f32.gmra.mrb[0].mxu0 %v801
      %v993 = vpop.f32.mrb[0].mxu0
      %v994 = vadd.f32 %v670, %v993
      %v995 = vpop.f32.mrb[0].mxu0
      %996 = vmatprep.mubr.f32.mxu0 0.0
      %997 = vmatmul.mubr.f32.gmra.mrb[0].mxu0 %v804
      %v998 = vpop.f32.mrb[0].mxu0
      %v999 = vadd.f32 %v675, %v998
      %v1000 = vpop.f32.mrb[0].mxu0
      %1001 = vmatprep.mubr.f32.mxu0 0.0
      %1002 = vmatmul.mubr.f32.gmra.mrb[0].mxu0 %v807
      %v1003 = vpop.f32.mrb[0].mxu0
      %v1004 = vadd.f32 %v680, %v1003
      %v1005 = vpop.f32.mrb[0].mxu0
      %1006 = vmatprep.mubr.f32.mxu0 0.0
      %1007 = vmatmul.mubr.f32.gmra.mrb[0].mxu0 %v810
      %v1008 = vpop.f32.mrb[0].mxu0
      %v1009 = vadd.f32 %v685, %v1008
      %v1010 = vpop.f32.mrb[0].mxu0
      %1011 = vmatprep.mubr.f32.mxu0 0.0
      %1012 = vmatmul.mubr.f32.gmra.mrb[0].mxu0 %v813
      %v1013 = vpop.f32.mrb[0].mxu0
      %v1014 = vadd.f32 %v690, %v1013
      %v1015 = vpop.f32.mrb[0].mxu0
      %1016 = vmatprep.mubr.f32.mxu0 0.0
      %1017 = vmatmul.mubr.f32.gmra.mrb[0].mxu0 %v816
      %v1018 = vpop.f32.mrb[0].mxu0
      %v1019 = vadd.f32 %v695, %v1018
      %v1020 = vpop.f32.mrb[0].mxu0
      %1021 = vmatprep.mubr.f32.mxu0 0.0
      %1022 = vmatmul.mubr.f32.gmra.mrb[0].mxu0 %v819
      %v1023 = vpop.f32.mrb[0].mxu0
      %v1024 = vadd.f32 %v700, %v1023
      %v1025 = vpop.f32.mrb[0].mxu0
      %1026 = vmatprep.mubr.f32.mxu0 0.0
      %1027 = vmatmul.mubr.f32.gmra.mrb[0].mxu0 %v822
      %v1028 = vpop.f32.mrb[0].mxu0
      %v1029 = vadd.f32 %v705, %v1028
      %v1030 = vpop.f32.mrb[0].mxu0
      %1031 = vmatprep.mubr.f32.mxu0 0.0
      %1032 = vmatmul.mubr.f32.gmra.mrb[0].mxu0 %v825
      %v1033 = vpop.f32.mrb[0].mxu0
      %v1034 = vadd.f32 %v710, %v1033
      %v1035 = vpop.f32.mrb[0].mxu0
      %1036 = vmatprep.mubr.f32.mxu0 0.0
      %1037 = vmatmul.mubr.f32.gmra.mrb[0].mxu0 %v828
      %v1038 = vpop.f32.mrb[0].mxu0
      %v1039 = vadd.f32 %v715, %v1038
      %v1040 = vpop.f32.mrb[0].mxu0
      %1041 = vmatprep.mubr.f32.mxu0 0.0
      %1042 = vmatmul.mubr.f32.gmra.mrb[0].mxu0 %v831
      %v1043 = vpop.f32.mrb[0].mxu0
      %v1044 = vadd.f32 %v720, %v1043
      %v1045 = vpop.f32.mrb[0].mxu0
      %1046 = vmatprep.mubr.f32.mxu0 0.0
      %1047 = vmatmul.mubr.f32.gmra.mrb[0].mxu0 %v834
      %v1048 = vpop.f32.mrb[0].mxu0
      %v1049 = vadd.f32 %v725, %v1048
      %v1050 = vpop.f32.mrb[0].mxu0
      %1051 = vmatprep.mubr.f32.mxu0 0.0
      %1052 = vmatmul.mubr.f32.gmra.mrb[0].mxu0 %v837
      %v1053 = vpop.f32.mrb[0].mxu0
      %v1054 = vadd.f32 %v730, %v1053
      %v1055 = vpop.f32.mrb[0].mxu0
      %1056 = vmatprep.mubr.f32.mxu0 0.0
      %1057 = vmatmul.mubr.f32.gmra.mrb[0].mxu0 %v840
      %v1058 = vpop.f32.mrb[0].mxu0
      %v1059 = vadd.f32 %v735, %v1058
      %v1060 = vpop.f32.mrb[0].mxu0
      %1061 = vmatprep.mubr.f32.mxu0 0.0
      %1062 = vmatmul.mubr.f32.gmra.mrb[0].mxu0 %v843
      %v1063 = vpop.f32.mrb[0].mxu0
      %v1064 = vadd.f32 %v740, %v1063
      %v1065 = vpop.f32.mrb[0].mxu0
      %1066 = vmatprep.mubr.f32.mxu0 0.0
      %1067 = vmatmul.mubr.f32.gmra.mrb[0].mxu0 %v846
      %v1068 = vpop.f32.mrb[0].mxu0
      %v1069 = vadd.f32 %v745, %v1068
      %v1070 = vpop.f32.mrb[0].mxu0
      %1071 = vmatprep.mubr.f32.mxu0 0.0
      %1072 = vmatmul.mubr.f32.gmra.mrb[0].mxu0 %v849
      %v1073 = vpop.f32.mrb[0].mxu0
      %v1074 = vadd.f32 %v750, %v1073
      %v1075 = vpop.f32.mrb[0].mxu0
      %1076 = vmatprep.mubr.f32.mxu0 0.0
      %1077 = vmatmul.mubr.f32.gmra.mrb[0].mxu0 %v852
      %v1078 = vpop.f32.mrb[0].mxu0
      %v1079 = vadd.f32 %v755, %v1078
      %v1080 = vpop.f32.mrb[0].mxu0
      %1081 = vdwg.mxu0
      %s1082 = scalar_lea.vmem %s2, 8
      %v1083 = vld [vmem:[%s1082] sm:$0xf]
      %v1085 = vsel %vm432, %v353, 0
      %v1088 = vsel %vm432, %v354, 0
      %v1091 = vsel %vm529, %v1083, 0
      %1093 = vmatprep.subr.mxu0 0.0
      %1094 = vmatpush1.msra.mxu0 %v1091
      %1095 = vmatprep.subr.mxu0 0.0
      %1096 = vmatpush1.msra.mxu0 0.0
      %1097 = vmatprep.subr.mxu0 0.0
      %1098 = vmatpush1.msra.mxu0 0.0
      %1099 = vmatprep.subr.mxu0 0.0
      %1100 = vmatpush1.msra.mxu0 0.0
      %1101 = vmatprep.subr.mxu0 0.0
      %1102 = vmatpush1.msra.mxu0 0.0
      %1103 = vmatprep.subr.mxu0 0.0
      %1104 = vmatpush1.msra.mxu0 0.0
      %1105 = vmatprep.subr.mxu0 0.0
      %1106 = vmatpush1.msra.mxu0 0.0
      %1107 = vmatprep.subr.mxu0 0.0
      %1108 = vmatpush1.msra.mxu0 0.0
      %1109 = vmatprep.subr.mxu0 0.0
      %1110 = vmatpush1.msra.mxu0 0.0
      %1111 = vmatprep.subr.mxu0 0.0
      %1112 = vmatpush1.msra.mxu0 0.0
      %1113 = vmatprep.subr.mxu0 0.0
      %1114 = vmatpush1.msra.mxu0 0.0
      %1115 = vmatprep.subr.mxu0 0.0
      %1116 = vmatpush1.msra.mxu0 0.0
      %1117 = vmatprep.subr.mxu0 0.0
      %1118 = vmatpush1.msra.mxu0 0.0
      %1119 = vmatprep.subr.mxu0 0.0
      %1120 = vmatpush1.msra.mxu0 0.0
      %1121 = vmatprep.subr.mxu0 0.0
      %1122 = vmatpush1.msra.mxu0 0.0
      %1123 = vmatprep.subr.mxu0 0.0
      %1124 = vmatpush1.msra.mxu0 0.0
      %1125 = vmatprep.subr.mxu0 0.0
      %1126 = vmatpush1.msra.mxu0 0.0
      %1127 = vmatprep.subr.mxu0 0.0
      %1128 = vmatpush1.msra.mxu0 0.0
      %1129 = vmatprep.subr.mxu0 0.0
      %1130 = vmatpush1.msra.mxu0 0.0
      %1131 = vmatprep.subr.mxu0 0.0
      %1132 = vmatpush1.msra.mxu0 0.0
      %1133 = vmatprep.subr.mxu0 0.0
      %1134 = vmatpush1.msra.mxu0 0.0
      %1135 = vmatprep.subr.mxu0 0.0
      %1136 = vmatpush1.msra.mxu0 0.0
      %1137 = vmatprep.subr.mxu0 0.0
      %1138 = vmatpush1.msra.mxu0 0.0
      %1139 = vmatprep.subr.mxu0 0.0
      %1140 = vmatpush1.msra.mxu0 0.0
      %1141 = vmatprep.subr.mxu0 0.0
      %1142 = vmatpush1.msra.mxu0 0.0
      %1143 = vmatprep.subr.mxu0 0.0
      %1144 = vmatpush1.msra.mxu0 0.0
      %1145 = vmatprep.subr.mxu0 0.0
      %1146 = vmatpush1.msra.mxu0 0.0
      %1147 = vmatprep.subr.mxu0 0.0
      %1148 = vmatpush1.msra.mxu0 0.0
      %1149 = vmatprep.subr.mxu0 0.0
      %1150 = vmatpush1.msra.mxu0 0.0
      %1151 = vmatprep.subr.mxu0 0.0
      %1152 = vmatpush1.msra.mxu0 0.0
      %1153 = vmatprep.subr.mxu0 0.0
      %1154 = vmatpush1.msra.mxu0 0.0
      %1155 = vmatprep.subr.mxu0 0.0
      %1156 = vmatpush1.msra.mxu0 0.0
      %1157 = vmatprep.mubr.f32.mxu0 0.0
      %1158 = vmatmul.mubr.f32.gmra.mrb[0].mxu0 %v765
      %v1159 = vpop.f32.mrb[0].mxu0
      %v1160 = vadd.f32 0.0, %v1159
      %v1161 = vpop.f32.mrb[0].mxu0
      %1162 = vmatprep.mubr.f32.mxu0 0.0
      %1163 = vmatmul.mubr.f32.gmra.mrb[0].mxu0 %v768
      %v1164 = vpop.f32.mrb[0].mxu0
      %v1165 = vadd.f32 0.0, %v1164
      %v1166 = vpop.f32.mrb[0].mxu0
      %1167 = vmatprep.mubr.f32.mxu0 0.0
      %1168 = vmatmul.mubr.f32.gmra.mrb[0].mxu0 %v771
      %v1169 = vpop.f32.mrb[0].mxu0
      %v1170 = vadd.f32 0.0, %v1169
      %v1171 = vpop.f32.mrb[0].mxu0
      %1172 = vmatprep.mubr.f32.mxu0 0.0
      %1173 = vmatmul.mubr.f32.gmra.mrb[0].mxu0 %v774
      %v1174 = vpop.f32.mrb[0].mxu0
      %v1175 = vadd.f32 0.0, %v1174
      %v1176 = vpop.f32.mrb[0].mxu0
      %1177 = vmatprep.mubr.f32.mxu0 0.0
      %1178 = vmatmul.mubr.f32.gmra.mrb[0].mxu0 %v777
      %v1179 = vpop.f32.mrb[0].mxu0
      %v1180 = vadd.f32 0.0, %v1179
      %v1181 = vpop.f32.mrb[0].mxu0
      %1182 = vmatprep.mubr.f32.mxu0 0.0
      %1183 = vmatmul.mubr.f32.gmra.mrb[0].mxu0 %v780
      %v1184 = vpop.f32.mrb[0].mxu0
      %v1185 = vadd.f32 0.0, %v1184
      %v1186 = vpop.f32.mrb[0].mxu0
      %1187 = vmatprep.mubr.f32.mxu0 0.0
      %1188 = vmatmul.mubr.f32.gmra.mrb[0].mxu0 %v783
      %v1189 = vpop.f32.mrb[0].mxu0
      %v1190 = vadd.f32 0.0, %v1189
      %v1191 = vpop.f32.mrb[0].mxu0
      %1192 = vmatprep.mubr.f32.mxu0 0.0
      %1193 = vmatmul.mubr.f32.gmra.mrb[0].mxu0 %v786
      %v1194 = vpop.f32.mrb[0].mxu0
      %v1195 = vadd.f32 0.0, %v1194
      %v1196 = vpop.f32.mrb[0].mxu0
      %1197 = vmatprep.mubr.f32.mxu0 0.0
      %1198 = vmatmul.mubr.f32.gmra.mrb[0].mxu0 %v789
      %v1199 = vpop.f32.mrb[0].mxu0
      %v1200 = vadd.f32 0.0, %v1199
      %v1201 = vpop.f32.mrb[0].mxu0
      %1202 = vmatprep.mubr.f32.mxu0 0.0
      %1203 = vmatmul.mubr.f32.gmra.mrb[0].mxu0 %v792
      %v1204 = vpop.f32.mrb[0].mxu0
      %v1205 = vadd.f32 0.0, %v1204
      %v1206 = vpop.f32.mrb[0].mxu0
      %1207 = vmatprep.mubr.f32.mxu0 0.0
      %1208 = vmatmul.mubr.f32.gmra.mrb[0].mxu0 %v795
      %v1209 = vpop.f32.mrb[0].mxu0
      %v1210 = vadd.f32 0.0, %v1209
      %v1211 = vpop.f32.mrb[0].mxu0
      %1212 = vmatprep.mubr.f32.mxu0 0.0
      %1213 = vmatmul.mubr.f32.gmra.mrb[0].mxu0 %v798
      %v1214 = vpop.f32.mrb[0].mxu0
      %v1215 = vadd.f32 0.0, %v1214
      %v1216 = vpop.f32.mrb[0].mxu0
      %1217 = vmatprep.mubr.f32.mxu0 0.0
      %1218 = vmatmul.mubr.f32.gmra.mrb[0].mxu0 %v801
      %v1219 = vpop.f32.mrb[0].mxu0
      %v1220 = vadd.f32 0.0, %v1219
      %v1221 = vpop.f32.mrb[0].mxu0
      %1222 = vmatprep.mubr.f32.mxu0 0.0
      %1223 = vmatmul.mubr.f32.gmra.mrb[0].mxu0 %v804
      %v1224 = vpop.f32.mrb[0].mxu0
      %v1225 = vadd.f32 0.0, %v1224
      %v1226 = vpop.f32.mrb[0].mxu0
      %1227 = vmatprep.mubr.f32.mxu0 0.0
      %1228 = vmatmul.mubr.f32.gmra.mrb[0].mxu0 %v807
      %v1229 = vpop.f32.mrb[0].mxu0
      %v1230 = vadd.f32 0.0, %v1229
      %v1231 = vpop.f32.mrb[0].mxu0
      %1232 = vmatprep.mubr.f32.mxu0 0.0
      %1233 = vmatmul.mubr.f32.gmra.mrb[0].mxu0 %v810
      %v1234 = vpop.f32.mrb[0].mxu0
      %v1235 = vadd.f32 0.0, %v1234
      %v1236 = vpop.f32.mrb[0].mxu0
      %1237 = vmatprep.mubr.f32.mxu0 0.0
      %1238 = vmatmul.mubr.f32.gmra.mrb[0].mxu0 %v813
      %v1239 = vpop.f32.mrb[0].mxu0
      %v1240 = vadd.f32 0.0, %v1239
      %v1241 = vpop.f32.mrb[0].mxu0
      %1242 = vmatprep.mubr.f32.mxu0 0.0
      %1243 = vmatmul.mubr.f32.gmra.mrb[0].mxu0 %v816
      %v1244 = vpop.f32.mrb[0].mxu0
      %v1245 = vadd.f32 0.0, %v1244
      %v1246 = vpop.f32.mrb[0].mxu0
      %1247 = vmatprep.mubr.f32.mxu0 0.0
      %1248 = vmatmul.mubr.f32.gmra.mrb[0].mxu0 %v819
      %v1249 = vpop.f32.mrb[0].mxu0
      %v1250 = vadd.f32 0.0, %v1249
      %v1251 = vpop.f32.mrb[0].mxu0
      %1252 = vmatprep.mubr.f32.mxu0 0.0
      %1253 = vmatmul.mubr.f32.gmra.mrb[0].mxu0 %v822
      %v1254 = vpop.f32.mrb[0].mxu0
      %v1255 = vadd.f32 0.0, %v1254
      %v1256 = vpop.f32.mrb[0].mxu0
      %1257 = vmatprep.mubr.f32.mxu0 0.0
      %1258 = vmatmul.mubr.f32.gmra.mrb[0].mxu0 %v825
      %v1259 = vpop.f32.mrb[0].mxu0
      %v1260 = vadd.f32 0.0, %v1259
      %v1261 = vpop.f32.mrb[0].mxu0
      %1262 = vmatprep.mubr.f32.mxu0 0.0
      %1263 = vmatmul.mubr.f32.gmra.mrb[0].mxu0 %v828
      %v1264 = vpop.f32.mrb[0].mxu0
      %v1265 = vadd.f32 0.0, %v1264
      %v1266 = vpop.f32.mrb[0].mxu0
      %1267 = vmatprep.mubr.f32.mxu0 0.0
      %1268 = vmatmul.mubr.f32.gmra.mrb[0].mxu0 %v831
      %v1269 = vpop.f32.mrb[0].mxu0
      %v1270 = vadd.f32 0.0, %v1269
      %v1271 = vpop.f32.mrb[0].mxu0
      %1272 = vmatprep.mubr.f32.mxu0 0.0
      %1273 = vmatmul.mubr.f32.gmra.mrb[0].mxu0 %v834
      %v1274 = vpop.f32.mrb[0].mxu0
      %v1275 = vadd.f32 0.0, %v1274
      %v1276 = vpop.f32.mrb[0].mxu0
      %1277 = vmatprep.mubr.f32.mxu0 0.0
      %1278 = vmatmul.mubr.f32.gmra.mrb[0].mxu0 %v837
      %v1279 = vpop.f32.mrb[0].mxu0
      %v1280 = vadd.f32 0.0, %v1279
      %v1281 = vpop.f32.mrb[0].mxu0
      %1282 = vmatprep.mubr.f32.mxu0 0.0
      %1283 = vmatmul.mubr.f32.gmra.mrb[0].mxu0 %v840
      %v1284 = vpop.f32.mrb[0].mxu0
      %v1285 = vadd.f32 0.0, %v1284
      %v1286 = vpop.f32.mrb[0].mxu0
      %1287 = vmatprep.mubr.f32.mxu0 0.0
      %1288 = vmatmul.mubr.f32.gmra.mrb[0].mxu0 %v843
      %v1289 = vpop.f32.mrb[0].mxu0
      %v1290 = vadd.f32 0.0, %v1289
      %v1291 = vpop.f32.mrb[0].mxu0
      %1292 = vmatprep.mubr.f32.mxu0 0.0
      %1293 = vmatmul.mubr.f32.gmra.mrb[0].mxu0 %v846
      %v1294 = vpop.f32.mrb[0].mxu0
      %v1295 = vadd.f32 0.0, %v1294
      %v1296 = vpop.f32.mrb[0].mxu0
      %1297 = vmatprep.mubr.f32.mxu0 0.0
      %1298 = vmatmul.mubr.f32.gmra.mrb[0].mxu0 %v849
      %v1299 = vpop.f32.mrb[0].mxu0
      %v1300 = vadd.f32 0.0, %v1299
      %v1301 = vpop.f32.mrb[0].mxu0
      %1302 = vmatprep.mubr.f32.mxu0 0.0
      %1303 = vmatmul.mubr.f32.gmra.mrb[0].mxu0 %v852
      %v1304 = vpop.f32.mrb[0].mxu0
      %v1305 = vadd.f32 0.0, %v1304
      %v1306 = vpop.f32.mrb[0].mxu0
      %1307 = vmatprep.mubr.f32.mxu0 0.0
      %1308 = vmatmul.mubr.f32.gmra.mrb[0].mxu0 %v1085
      %v1309 = vpop.f32.mrb[0].mxu0
      %v1310 = vadd.f32 0.0, %v1309
      %v1311 = vpop.f32.mrb[0].mxu0
      %1312 = vmatprep.mubr.f32.mxu0 0.0
      %1313 = vmatmul.mubr.f32.gmra.mrb[0].mxu0 %v1088
      %v1314 = vpop.f32.mrb[0].mxu0
      %v1315 = vadd.f32 0.0, %v1314
      %v1316 = vpop.f32.mrb[0].mxu0
      %1317 = vdwg.mxu0
      %v1318 = vadd.f32 %v924, %v1160
      %v1319 = vadd.f32 %v929, %v1165
      %v1320 = vadd.f32 %v934, %v1170
      %v1321 = vadd.f32 %v939, %v1175
      %v1322 = vadd.f32 %v944, %v1180
      %v1323 = vadd.f32 %v949, %v1185
      %v1324 = vadd.f32 %v954, %v1190
      %v1325 = vadd.f32 %v959, %v1195
      %v1326 = vadd.f32 %v964, %v1200
      %v1327 = vadd.f32 %v969, %v1205
      %v1328 = vadd.f32 %v974, %v1210
      %v1329 = vadd.f32 %v979, %v1215
      %v1330 = vadd.f32 %v984, %v1220
      %v1331 = vadd.f32 %v989, %v1225
      %v1332 = vadd.f32 %v994, %v1230
      %v1333 = vadd.f32 %v999, %v1235
      %v1334 = vadd.f32 %v1004, %v1240
      %v1335 = vadd.f32 %v1009, %v1245
      %v1336 = vadd.f32 %v1014, %v1250
      %v1337 = vadd.f32 %v1019, %v1255
      %v1338 = vadd.f32 %v1024, %v1260
      %v1339 = vadd.f32 %v1029, %v1265
      %v1340 = vadd.f32 %v1034, %v1270
      %v1341 = vadd.f32 %v1039, %v1275
      %v1342 = vadd.f32 %v1044, %v1280
      %v1343 = vadd.f32 %v1049, %v1285
      %v1344 = vadd.f32 %v1054, %v1290
      %v1345 = vadd.f32 %v1059, %v1295
      %v1346 = vadd.f32 %v1064, %v1300
      %v1347 = vadd.f32 %v1069, %v1305
      %v1348 = vadd.f32 %v1074, %v1310
      %v1349 = vadd.f32 %v1079, %v1315
      %s1350 = scalar_lea.vmem %s2, 12
      %v1351 = vld [vmem:[%s1350] sm:$0xf]
      %v1353 = vsel %vm432, %v389, 0
      %v1356 = vsel %vm432, %v390, 0
      %v1359 = vsel %vm529, %v1351, 0
      %1361 = vmatprep.subr.mxu0 0.0
      %1362 = vmatpush1.msra.mxu0 %v1359
      %1363 = vmatprep.subr.mxu0 0.0
      %1364 = vmatpush1.msra.mxu0 0.0
      %1365 = vmatprep.subr.mxu0 0.0
      %1366 = vmatpush1.msra.mxu0 0.0
      %1367 = vmatprep.subr.mxu0 0.0
      %1368 = vmatpush1.msra.mxu0 0.0
      %1369 = vmatprep.subr.mxu0 0.0
      %1370 = vmatpush1.msra.mxu0 0.0
      %1371 = vmatprep.subr.mxu0 0.0
      %1372 = vmatpush1.msra.mxu0 0.0
      %1373 = vmatprep.subr.mxu0 0.0
      %1374 = vmatpush1.msra.mxu0 0.0
      %1375 = vmatprep.subr.mxu0 0.0
      %1376 = vmatpush1.msra.mxu0 0.0
      %1377 = vmatprep.subr.mxu0 0.0
      %1378 = vmatpush1.msra.mxu0 0.0
      %1379 = vmatprep.subr.mxu0 0.0
      %1380 = vmatpush1.msra.mxu0 0.0
      %1381 = vmatprep.subr.mxu0 0.0
      %1382 = vmatpush1.msra.mxu0 0.0
      %1383 = vmatprep.subr.mxu0 0.0
      %1384 = vmatpush1.msra.mxu0 0.0
      %1385 = vmatprep.subr.mxu0 0.0
      %1386 = vmatpush1.msra.mxu0 0.0
      %1387 = vmatprep.subr.mxu0 0.0
      %1388 = vmatpush1.msra.mxu0 0.0
      %1389 = vmatprep.subr.mxu0 0.0
      %1390 = vmatpush1.msra.mxu0 0.0
      %1391 = vmatprep.subr.mxu0 0.0
      %1392 = vmatpush1.msra.mxu0 0.0
      %1393 = vmatprep.subr.mxu0 0.0
      %1394 = vmatpush1.msra.mxu0 0.0
      %1395 = vmatprep.subr.mxu0 0.0
      %1396 = vmatpush1.msra.mxu0 0.0
      %1397 = vmatprep.subr.mxu0 0.0
      %1398 = vmatpush1.msra.mxu0 0.0
      %1399 = vmatprep.subr.mxu0 0.0
      %1400 = vmatpush1.msra.mxu0 0.0
      %1401 = vmatprep.subr.mxu0 0.0
      %1402 = vmatpush1.msra.mxu0 0.0
      %1403 = vmatprep.subr.mxu0 0.0
      %1404 = vmatpush1.msra.mxu0 0.0
      %1405 = vmatprep.subr.mxu0 0.0
      %1406 = vmatpush1.msra.mxu0 0.0
      %1407 = vmatprep.subr.mxu0 0.0
      %1408 = vmatpush1.msra.mxu0 0.0
      %1409 = vmatprep.subr.mxu0 0.0
      %1410 = vmatpush1.msra.mxu0 0.0
      %1411 = vmatprep.subr.mxu0 0.0
      %1412 = vmatpush1.msra.mxu0 0.0
      %1413 = vmatprep.subr.mxu0 0.0
      %1414 = vmatpush1.msra.mxu0 0.0
      %1415 = vmatprep.subr.mxu0 0.0
      %1416 = vmatpush1.msra.mxu0 0.0
      %1417 = vmatprep.subr.mxu0 0.0
      %1418 = vmatpush1.msra.mxu0 0.0
      %1419 = vmatprep.subr.mxu0 0.0
      %1420 = vmatpush1.msra.mxu0 0.0
      %1421 = vmatprep.subr.mxu0 0.0
      %1422 = vmatpush1.msra.mxu0 0.0
      %1423 = vmatprep.subr.mxu0 0.0
      %1424 = vmatpush1.msra.mxu0 0.0
      %1425 = vmatprep.mubr.f32.mxu0 0.0
      %1426 = vmatmul.mubr.f32.gmra.mrb[0].mxu0 %v440
      %v1427 = vpop.f32.mrb[0].mxu0
      %v1428 = vadd.f32 0.0, %v1427
      %v1429 = vpop.f32.mrb[0].mxu0
      %1430 = vmatprep.mubr.f32.mxu0 0.0
      %1431 = vmatmul.mubr.f32.gmra.mrb[0].mxu0 %v443
      %v1432 = vpop.f32.mrb[0].mxu0
      %v1433 = vadd.f32 0.0, %v1432
      %v1434 = vpop.f32.mrb[0].mxu0
      %1435 = vmatprep.mubr.f32.mxu0 0.0
      %1436 = vmatmul.mubr.f32.gmra.mrb[0].mxu0 %v446
      %v1437 = vpop.f32.mrb[0].mxu0
      %v1438 = vadd.f32 0.0, %v1437
      %v1439 = vpop.f32.mrb[0].mxu0
      %1440 = vmatprep.mubr.f32.mxu0 0.0
      %1441 = vmatmul.mubr.f32.gmra.mrb[0].mxu0 %v449
      %v1442 = vpop.f32.mrb[0].mxu0
      %v1443 = vadd.f32 0.0, %v1442
      %v1444 = vpop.f32.mrb[0].mxu0
      %1445 = vmatprep.mubr.f32.mxu0 0.0
      %1446 = vmatmul.mubr.f32.gmra.mrb[0].mxu0 %v452
      %v1447 = vpop.f32.mrb[0].mxu0
      %v1448 = vadd.f32 0.0, %v1447
      %v1449 = vpop.f32.mrb[0].mxu0
      %1450 = vmatprep.mubr.f32.mxu0 0.0
      %1451 = vmatmul.mubr.f32.gmra.mrb[0].mxu0 %v455
      %v1452 = vpop.f32.mrb[0].mxu0
      %v1453 = vadd.f32 0.0, %v1452
      %v1454 = vpop.f32.mrb[0].mxu0
      %1455 = vmatprep.mubr.f32.mxu0 0.0
      %1456 = vmatmul.mubr.f32.gmra.mrb[0].mxu0 %v458
      %v1457 = vpop.f32.mrb[0].mxu0
      %v1458 = vadd.f32 0.0, %v1457
      %v1459 = vpop.f32.mrb[0].mxu0
      %1460 = vmatprep.mubr.f32.mxu0 0.0
      %1461 = vmatmul.mubr.f32.gmra.mrb[0].mxu0 %v461
      %v1462 = vpop.f32.mrb[0].mxu0
      %v1463 = vadd.f32 0.0, %v1462
      %v1464 = vpop.f32.mrb[0].mxu0
      %1465 = vmatprep.mubr.f32.mxu0 0.0
      %1466 = vmatmul.mubr.f32.gmra.mrb[0].mxu0 %v464
      %v1467 = vpop.f32.mrb[0].mxu0
      %v1468 = vadd.f32 0.0, %v1467
      %v1469 = vpop.f32.mrb[0].mxu0
      %1470 = vmatprep.mubr.f32.mxu0 0.0
      %1471 = vmatmul.mubr.f32.gmra.mrb[0].mxu0 %v467
      %v1472 = vpop.f32.mrb[0].mxu0
      %v1473 = vadd.f32 0.0, %v1472
      %v1474 = vpop.f32.mrb[0].mxu0
      %1475 = vmatprep.mubr.f32.mxu0 0.0
      %1476 = vmatmul.mubr.f32.gmra.mrb[0].mxu0 %v470
      %v1477 = vpop.f32.mrb[0].mxu0
      %v1478 = vadd.f32 0.0, %v1477
      %v1479 = vpop.f32.mrb[0].mxu0
      %1480 = vmatprep.mubr.f32.mxu0 0.0
      %1481 = vmatmul.mubr.f32.gmra.mrb[0].mxu0 %v473
      %v1482 = vpop.f32.mrb[0].mxu0
      %v1483 = vadd.f32 0.0, %v1482
      %v1484 = vpop.f32.mrb[0].mxu0
      %1485 = vmatprep.mubr.f32.mxu0 0.0
      %1486 = vmatmul.mubr.f32.gmra.mrb[0].mxu0 %v476
      %v1487 = vpop.f32.mrb[0].mxu0
      %v1488 = vadd.f32 0.0, %v1487
      %v1489 = vpop.f32.mrb[0].mxu0
      %1490 = vmatprep.mubr.f32.mxu0 0.0
      %1491 = vmatmul.mubr.f32.gmra.mrb[0].mxu0 %v479
      %v1492 = vpop.f32.mrb[0].mxu0
      %v1493 = vadd.f32 0.0, %v1492
      %v1494 = vpop.f32.mrb[0].mxu0
      %1495 = vmatprep.mubr.f32.mxu0 0.0
      %1496 = vmatmul.mubr.f32.gmra.mrb[0].mxu0 %v482
      %v1497 = vpop.f32.mrb[0].mxu0
      %v1498 = vadd.f32 0.0, %v1497
      %v1499 = vpop.f32.mrb[0].mxu0
      %1500 = vmatprep.mubr.f32.mxu0 0.0
      %1501 = vmatmul.mubr.f32.gmra.mrb[0].mxu0 %v485
      %v1502 = vpop.f32.mrb[0].mxu0
      %v1503 = vadd.f32 0.0, %v1502
      %v1504 = vpop.f32.mrb[0].mxu0
      %1505 = vmatprep.mubr.f32.mxu0 0.0
      %1506 = vmatmul.mubr.f32.gmra.mrb[0].mxu0 %v488
      %v1507 = vpop.f32.mrb[0].mxu0
      %v1508 = vadd.f32 0.0, %v1507
      %v1509 = vpop.f32.mrb[0].mxu0
      %1510 = vmatprep.mubr.f32.mxu0 0.0
      %1511 = vmatmul.mubr.f32.gmra.mrb[0].mxu0 %v491
      %v1512 = vpop.f32.mrb[0].mxu0
      %v1513 = vadd.f32 0.0, %v1512
      %v1514 = vpop.f32.mrb[0].mxu0
      %1515 = vmatprep.mubr.f32.mxu0 0.0
      %1516 = vmatmul.mubr.f32.gmra.mrb[0].mxu0 %v494
      %v1517 = vpop.f32.mrb[0].mxu0
      %v1518 = vadd.f32 0.0, %v1517
      %v1519 = vpop.f32.mrb[0].mxu0
      %1520 = vmatprep.mubr.f32.mxu0 0.0
      %1521 = vmatmul.mubr.f32.gmra.mrb[0].mxu0 %v497
      %v1522 = vpop.f32.mrb[0].mxu0
      %v1523 = vadd.f32 0.0, %v1522
      %v1524 = vpop.f32.mrb[0].mxu0
      %1525 = vmatprep.mubr.f32.mxu0 0.0
      %1526 = vmatmul.mubr.f32.gmra.mrb[0].mxu0 %v500
      %v1527 = vpop.f32.mrb[0].mxu0
      %v1528 = vadd.f32 0.0, %v1527
      %v1529 = vpop.f32.mrb[0].mxu0
      %1530 = vmatprep.mubr.f32.mxu0 0.0
      %1531 = vmatmul.mubr.f32.gmra.mrb[0].mxu0 %v503
      %v1532 = vpop.f32.mrb[0].mxu0
      %v1533 = vadd.f32 0.0, %v1532
      %v1534 = vpop.f32.mrb[0].mxu0
      %1535 = vmatprep.mubr.f32.mxu0 0.0
      %1536 = vmatmul.mubr.f32.gmra.mrb[0].mxu0 %v506
      %v1537 = vpop.f32.mrb[0].mxu0
      %v1538 = vadd.f32 0.0, %v1537
      %v1539 = vpop.f32.mrb[0].mxu0
      %1540 = vmatprep.mubr.f32.mxu0 0.0
      %1541 = vmatmul.mubr.f32.gmra.mrb[0].mxu0 %v509
      %v1542 = vpop.f32.mrb[0].mxu0
      %v1543 = vadd.f32 0.0, %v1542
      %v1544 = vpop.f32.mrb[0].mxu0
      %1545 = vmatprep.mubr.f32.mxu0 0.0
      %1546 = vmatmul.mubr.f32.gmra.mrb[0].mxu0 %v512
      %v1547 = vpop.f32.mrb[0].mxu0
      %v1548 = vadd.f32 0.0, %v1547
      %v1549 = vpop.f32.mrb[0].mxu0
      %1550 = vmatprep.mubr.f32.mxu0 0.0
      %1551 = vmatmul.mubr.f32.gmra.mrb[0].mxu0 %v515
      %v1552 = vpop.f32.mrb[0].mxu0
      %v1553 = vadd.f32 0.0, %v1552
      %v1554 = vpop.f32.mrb[0].mxu0
      %1555 = vmatprep.mubr.f32.mxu0 0.0
      %1556 = vmatmul.mubr.f32.gmra.mrb[0].mxu0 %v518
      %v1557 = vpop.f32.mrb[0].mxu0
      %v1558 = vadd.f32 0.0, %v1557
      %v1559 = vpop.f32.mrb[0].mxu0
      %1560 = vmatprep.mubr.f32.mxu0 0.0
      %1561 = vmatmul.mubr.f32.gmra.mrb[0].mxu0 %v521
      %v1562 = vpop.f32.mrb[0].mxu0
      %v1563 = vadd.f32 0.0, %v1562
      %v1564 = vpop.f32.mrb[0].mxu0
      %1565 = vmatprep.mubr.f32.mxu0 0.0
      %1566 = vmatmul.mubr.f32.gmra.mrb[0].mxu0 %v524
      %v1567 = vpop.f32.mrb[0].mxu0
      %v1568 = vadd.f32 0.0, %v1567
      %v1569 = vpop.f32.mrb[0].mxu0
      %1570 = vmatprep.mubr.f32.mxu0 0.0
      %1571 = vmatmul.mubr.f32.gmra.mrb[0].mxu0 %v527
      %v1572 = vpop.f32.mrb[0].mxu0
      %v1573 = vadd.f32 0.0, %v1572
      %v1574 = vpop.f32.mrb[0].mxu0
      %1575 = vmatprep.mubr.f32.mxu0 0.0
      %1576 = vmatmul.mubr.f32.gmra.mrb[0].mxu0 %v1353
      %v1577 = vpop.f32.mrb[0].mxu0
      %v1578 = vadd.f32 0.0, %v1577
      %v1579 = vpop.f32.mrb[0].mxu0
      %1580 = vmatprep.mubr.f32.mxu0 0.0
      %1581 = vmatmul.mubr.f32.gmra.mrb[0].mxu0 %v1356
      %v1582 = vpop.f32.mrb[0].mxu0
      %v1583 = vadd.f32 0.0, %v1582
      %v1584 = vpop.f32.mrb[0].mxu0
      %1585 = vdwg.mxu0
      %v1586 = vadd.f32 %v1318, %v1428
      %v1587 = vadd.f32 %v1319, %v1433
      %v1588 = vadd.f32 %v1320, %v1438
      %v1589 = vadd.f32 %v1321, %v1443
      %v1590 = vadd.f32 %v1322, %v1448
      %v1591 = vadd.f32 %v1323, %v1453
      %v1592 = vadd.f32 %v1324, %v1458
      %v1593 = vadd.f32 %v1325, %v1463
      %v1594 = vadd.f32 %v1326, %v1468
      %v1595 = vadd.f32 %v1327, %v1473
      %v1596 = vadd.f32 %v1328, %v1478
      %v1597 = vadd.f32 %v1329, %v1483
      %v1598 = vadd.f32 %v1330, %v1488
      %v1599 = vadd.f32 %v1331, %v1493
      %v1600 = vadd.f32 %v1332, %v1498
      %v1601 = vadd.f32 %v1333, %v1503
      %v1602 = vadd.f32 %v1334, %v1508
      %v1603 = vadd.f32 %v1335, %v1513
      %v1604 = vadd.f32 %v1336, %v1518
      %v1605 = vadd.f32 %v1337, %v1523
      %v1606 = vadd.f32 %v1338, %v1528
      %v1607 = vadd.f32 %v1339, %v1533
      %v1608 = vadd.f32 %v1340, %v1538
      %v1609 = vadd.f32 %v1341, %v1543
      %v1610 = vadd.f32 %v1342, %v1548
      %v1611 = vadd.f32 %v1343, %v1553
      %v1612 = vadd.f32 %v1344, %v1558
      %v1613 = vadd.f32 %v1345, %v1563
      %v1614 = vadd.f32 %v1346, %v1568
      %v1615 = vadd.f32 %v1347, %v1573
      %v1616 = vadd.f32 %v1348, %v1578
      %v1617 = vadd.f32 %v1349, %v1583
      %v1619 = vlaneseq
      %v1620 = vshrl.u32 %v1619, 7
      %v1621 = vsub.s32 0, %v1620
      %v1622 = vrot.slane %v320, %v1621
      %v1624 = vadd.f32 %v1586, %v1622
      %v1625 = vadd.f32 %v1587, %v1622
      %v1626 = vadd.f32 %v1588, %v1622
      %v1627 = vadd.f32 %v1589, %v1622
      %v1628 = vadd.f32 %v1590, %v1622
      %v1629 = vadd.f32 %v1591, %v1622
      %v1630 = vadd.f32 %v1592, %v1622
      %v1631 = vadd.f32 %v1593, %v1622
      %v1632 = vadd.f32 %v1594, %v1622
      %v1633 = vadd.f32 %v1595, %v1622
      %v1634 = vadd.f32 %v1596, %v1622
      %v1635 = vadd.f32 %v1597, %v1622
      %v1636 = vadd.f32 %v1598, %v1622
      %v1637 = vadd.f32 %v1599, %v1622
      %v1638 = vadd.f32 %v1600, %v1622
      %v1639 = vadd.f32 %v1601, %v1622
      %v1640 = vadd.f32 %v1602, %v1622
      %v1641 = vadd.f32 %v1603, %v1622
      %v1642 = vadd.f32 %v1604, %v1622
      %v1643 = vadd.f32 %v1605, %v1622
      %v1644 = vadd.f32 %v1606, %v1622
      %v1645 = vadd.f32 %v1607, %v1622
      %v1646 = vadd.f32 %v1608, %v1622
      %v1647 = vadd.f32 %v1609, %v1622
      %v1648 = vadd.f32 %v1610, %v1622
      %v1649 = vadd.f32 %v1611, %v1622
      %v1650 = vadd.f32 %v1612, %v1622
      %v1651 = vadd.f32 %v1613, %v1622
      %v1652 = vadd.f32 %v1614, %v1622
      %v1653 = vadd.f32 %v1615, %v1622
      %v1654 = vadd.f32 %v1616, %v1622
      %v1655 = vadd.f32 %v1617, %v1622
      %s1656 = scalar_lea.vmem %s2, 16
      %v1657 = vld [vmem:[%s1656] sm:$0xf]
      %s1658 = scalar_lea.vmem %s2, 20
      %v1659 = vld [vmem:[%s1658] sm:$0xf]
      %v1661 = vsel %vm432, %v393, 0
      %v1664 = vsel %vm432, %v394, 0
      %v1667 = vsel %vm432, %v395, 0
      %v1670 = vsel %vm432, %v396, 0
      %v1673 = vsel %vm432, %v397, 0
      %v1676 = vsel %vm432, %v398, 0
      %v1679 = vsel %vm432, %v399, 0
      %v1682 = vsel %vm432, %v400, 0
      %v1685 = vsel %vm432, %v401, 0
      %v1688 = vsel %vm432, %v402, 0
      %v1691 = vsel %vm432, %v403, 0
      %v1694 = vsel %vm432, %v404, 0
      %v1697 = vsel %vm432, %v405, 0
      %v1700 = vsel %vm432, %v406, 0
      %v1703 = vsel %vm432, %v407, 0
      %v1706 = vsel %vm432, %v408, 0
      %v1709 = vsel %vm432, %v409, 0
      %v1712 = vsel %vm432, %v410, 0
      %v1715 = vsel %vm432, %v411, 0
      %v1718 = vsel %vm432, %v412, 0
      %v1721 = vsel %vm432, %v413, 0
      %v1724 = vsel %vm432, %v414, 0
      %v1727 = vsel %vm432, %v415, 0
      %v1730 = vsel %vm432, %v416, 0
      %v1733 = vsel %vm432, %v417, 0
      %v1736 = vsel %vm432, %v418, 0
      %v1739 = vsel %vm432, %v419, 0
      %v1742 = vsel %vm432, %v420, 0
      %v1745 = vsel %vm432, %v421, 0
      %v1748 = vsel %vm432, %v422, 0
      %v1751 = vsel %vm432, %v423, 0
      %v1754 = vsel %vm432, %v424, 0
      %v1757 = vsel %vm529, %v1659, 0
      %1759 = vmatprep.subr.mxu0 0.0
      %1760 = vmatpush1.msra.mxu0 %v1757
      %1761 = vmatprep.subr.mxu0 0.0
      %1762 = vmatpush1.msra.mxu0 0.0
      %1763 = vmatprep.subr.mxu0 0.0
      %1764 = vmatpush1.msra.mxu0 0.0
      %1765 = vmatprep.subr.mxu0 0.0
      %1766 = vmatpush1.msra.mxu0 0.0
      %1767 = vmatprep.subr.mxu0 0.0
      %1768 = vmatpush1.msra.mxu0 0.0
      %1769 = vmatprep.subr.mxu0 0.0
      %1770 = vmatpush1.msra.mxu0 0.0
      %1771 = vmatprep.subr.mxu0 0.0
      %1772 = vmatpush1.msra.mxu0 0.0
      %1773 = vmatprep.subr.mxu0 0.0
      %1774 = vmatpush1.msra.mxu0 0.0
      %1775 = vmatprep.subr.mxu0 0.0
      %1776 = vmatpush1.msra.mxu0 0.0
      %1777 = vmatprep.subr.mxu0 0.0
      %1778 = vmatpush1.msra.mxu0 0.0
      %1779 = vmatprep.subr.mxu0 0.0
      %1780 = vmatpush1.msra.mxu0 0.0
      %1781 = vmatprep.subr.mxu0 0.0
      %1782 = vmatpush1.msra.mxu0 0.0
      %1783 = vmatprep.subr.mxu0 0.0
      %1784 = vmatpush1.msra.mxu0 0.0
      %1785 = vmatprep.subr.mxu0 0.0
      %1786 = vmatpush1.msra.mxu0 0.0
      %1787 = vmatprep.subr.mxu0 0.0
      %1788 = vmatpush1.msra.mxu0 0.0
      %1789 = vmatprep.subr.mxu0 0.0
      %1790 = vmatpush1.msra.mxu0 0.0
      %1791 = vmatprep.subr.mxu0 0.0
      %1792 = vmatpush1.msra.mxu0 0.0
      %1793 = vmatprep.subr.mxu0 0.0
      %1794 = vmatpush1.msra.mxu0 0.0
      %1795 = vmatprep.subr.mxu0 0.0
      %1796 = vmatpush1.msra.mxu0 0.0
      %1797 = vmatprep.subr.mxu0 0.0
      %1798 = vmatpush1.msra.mxu0 0.0
      %1799 = vmatprep.subr.mxu0 0.0
      %1800 = vmatpush1.msra.mxu0 0.0
      %1801 = vmatprep.subr.mxu0 0.0
      %1802 = vmatpush1.msra.mxu0 0.0
      %1803 = vmatprep.subr.mxu0 0.0
      %1804 = vmatpush1.msra.mxu0 0.0
      %1805 = vmatprep.subr.mxu0 0.0
      %1806 = vmatpush1.msra.mxu0 0.0
      %1807 = vmatprep.subr.mxu0 0.0
      %1808 = vmatpush1.msra.mxu0 0.0
      %1809 = vmatprep.subr.mxu0 0.0
      %1810 = vmatpush1.msra.mxu0 0.0
      %1811 = vmatprep.subr.mxu0 0.0
      %1812 = vmatpush1.msra.mxu0 0.0
      %1813 = vmatprep.subr.mxu0 0.0
      %1814 = vmatpush1.msra.mxu0 0.0
      %1815 = vmatprep.subr.mxu0 0.0
      %1816 = vmatpush1.msra.mxu0 0.0
      %1817 = vmatprep.subr.mxu0 0.0
      %1818 = vmatpush1.msra.mxu0 0.0
      %1819 = vmatprep.subr.mxu0 0.0
      %1820 = vmatpush1.msra.mxu0 0.0
      %1821 = vmatprep.subr.mxu0 0.0
      %1822 = vmatpush1.msra.mxu0 0.0
      %1823 = vmatprep.mubr.f32.mxu0 0.0
      %1824 = vmatmul.mubr.f32.gmra.mrb[0].mxu0 %v1661
      %v1825 = vpop.f32.mrb[0].mxu0
      %v1826 = vadd.f32 0.0, %v1825
      %v1827 = vpop.f32.mrb[0].mxu0
      %1828 = vmatprep.mubr.f32.mxu0 0.0
      %1829 = vmatmul.mubr.f32.gmra.mrb[0].mxu0 %v1664
      %v1830 = vpop.f32.mrb[0].mxu0
      %v1831 = vadd.f32 0.0, %v1830
      %v1832 = vpop.f32.mrb[0].mxu0
      %1833 = vmatprep.mubr.f32.mxu0 0.0
      %1834 = vmatmul.mubr.f32.gmra.mrb[0].mxu0 %v1667
      %v1835 = vpop.f32.mrb[0].mxu0
      %v1836 = vadd.f32 0.0, %v1835
      %v1837 = vpop.f32.mrb[0].mxu0
      %1838 = vmatprep.mubr.f32.mxu0 0.0
      %1839 = vmatmul.mubr.f32.gmra.mrb[0].mxu0 %v1670
      %v1840 = vpop.f32.mrb[0].mxu0
      %v1841 = vadd.f32 0.0, %v1840
      %v1842 = vpop.f32.mrb[0].mxu0
      %1843 = vmatprep.mubr.f32.mxu0 0.0
      %1844 = vmatmul.mubr.f32.gmra.mrb[0].mxu0 %v1673
      %v1845 = vpop.f32.mrb[0].mxu0
      %v1846 = vadd.f32 0.0, %v1845
      %v1847 = vpop.f32.mrb[0].mxu0
      %1848 = vmatprep.mubr.f32.mxu0 0.0
      %1849 = vmatmul.mubr.f32.gmra.mrb[0].mxu0 %v1676
      %v1850 = vpop.f32.mrb[0].mxu0
      %v1851 = vadd.f32 0.0, %v1850
      %v1852 = vpop.f32.mrb[0].mxu0
      %1853 = vmatprep.mubr.f32.mxu0 0.0
      %1854 = vmatmul.mubr.f32.gmra.mrb[0].mxu0 %v1679
      %v1855 = vpop.f32.mrb[0].mxu0
      %v1856 = vadd.f32 0.0, %v1855
      %v1857 = vpop.f32.mrb[0].mxu0
      %1858 = vmatprep.mubr.f32.mxu0 0.0
      %1859 = vmatmul.mubr.f32.gmra.mrb[0].mxu0 %v1682
      %v1860 = vpop.f32.mrb[0].mxu0
      %v1861 = vadd.f32 0.0, %v1860
      %v1862 = vpop.f32.mrb[0].mxu0
      %1863 = vmatprep.mubr.f32.mxu0 0.0
      %1864 = vmatmul.mubr.f32.gmra.mrb[0].mxu0 %v1685
      %v1865 = vpop.f32.mrb[0].mxu0
      %v1866 = vadd.f32 0.0, %v1865
      %v1867 = vpop.f32.mrb[0].mxu0
      %1868 = vmatprep.mubr.f32.mxu0 0.0
      %1869 = vmatmul.mubr.f32.gmra.mrb[0].mxu0 %v1688
      %v1870 = vpop.f32.mrb[0].mxu0
      %v1871 = vadd.f32 0.0, %v1870
      %v1872 = vpop.f32.mrb[0].mxu0
      %1873 = vmatprep.mubr.f32.mxu0 0.0
      %1874 = vmatmul.mubr.f32.gmra.mrb[0].mxu0 %v1691
      %v1875 = vpop.f32.mrb[0].mxu0
      %v1876 = vadd.f32 0.0, %v1875
      %v1877 = vpop.f32.mrb[0].mxu0
      %1878 = vmatprep.mubr.f32.mxu0 0.0
      %1879 = vmatmul.mubr.f32.gmra.mrb[0].mxu0 %v1694
      %v1880 = vpop.f32.mrb[0].mxu0
      %v1881 = vadd.f32 0.0, %v1880
      %v1882 = vpop.f32.mrb[0].mxu0
      %1883 = vmatprep.mubr.f32.mxu0 0.0
      %1884 = vmatmul.mubr.f32.gmra.mrb[0].mxu0 %v1697
      %v1885 = vpop.f32.mrb[0].mxu0
      %v1886 = vadd.f32 0.0, %v1885
      %v1887 = vpop.f32.mrb[0].mxu0
      %1888 = vmatprep.mubr.f32.mxu0 0.0
      %1889 = vmatmul.mubr.f32.gmra.mrb[0].mxu0 %v1700
      %v1890 = vpop.f32.mrb[0].mxu0
      %v1891 = vadd.f32 0.0, %v1890
      %v1892 = vpop.f32.mrb[0].mxu0
      %1893 = vmatprep.mubr.f32.mxu0 0.0
      %1894 = vmatmul.mubr.f32.gmra.mrb[0].mxu0 %v1703
      %v1895 = vpop.f32.mrb[0].mxu0
      %v1896 = vadd.f32 0.0, %v1895
      %v1897 = vpop.f32.mrb[0].mxu0
      %1898 = vmatprep.mubr.f32.mxu0 0.0
      %1899 = vmatmul.mubr.f32.gmra.mrb[0].mxu0 %v1706
      %v1900 = vpop.f32.mrb[0].mxu0
      %v1901 = vadd.f32 0.0, %v1900
      %v1902 = vpop.f32.mrb[0].mxu0
      %1903 = vmatprep.mubr.f32.mxu0 0.0
      %1904 = vmatmul.mubr.f32.gmra.mrb[0].mxu0 %v1709
      %v1905 = vpop.f32.mrb[0].mxu0
      %v1906 = vadd.f32 0.0, %v1905
      %v1907 = vpop.f32.mrb[0].mxu0
      %1908 = vmatprep.mubr.f32.mxu0 0.0
      %1909 = vmatmul.mubr.f32.gmra.mrb[0].mxu0 %v1712
      %v1910 = vpop.f32.mrb[0].mxu0
      %v1911 = vadd.f32 0.0, %v1910
      %v1912 = vpop.f32.mrb[0].mxu0
      %1913 = vmatprep.mubr.f32.mxu0 0.0
      %1914 = vmatmul.mubr.f32.gmra.mrb[0].mxu0 %v1715
      %v1915 = vpop.f32.mrb[0].mxu0
      %v1916 = vadd.f32 0.0, %v1915
      %v1917 = vpop.f32.mrb[0].mxu0
      %1918 = vmatprep.mubr.f32.mxu0 0.0
      %1919 = vmatmul.mubr.f32.gmra.mrb[0].mxu0 %v1718
      %v1920 = vpop.f32.mrb[0].mxu0
      %v1921 = vadd.f32 0.0, %v1920
      %v1922 = vpop.f32.mrb[0].mxu0
      %1923 = vmatprep.mubr.f32.mxu0 0.0
      %1924 = vmatmul.mubr.f32.gmra.mrb[0].mxu0 %v1721
      %v1925 = vpop.f32.mrb[0].mxu0
      %v1926 = vadd.f32 0.0, %v1925
      %v1927 = vpop.f32.mrb[0].mxu0
      %1928 = vmatprep.mubr.f32.mxu0 0.0
      %1929 = vmatmul.mubr.f32.gmra.mrb[0].mxu0 %v1724
      %v1930 = vpop.f32.mrb[0].mxu0
      %v1931 = vadd.f32 0.0, %v1930
      %v1932 = vpop.f32.mrb[0].mxu0
      %1933 = vmatprep.mubr.f32.mxu0 0.0
      %1934 = vmatmul.mubr.f32.gmra.mrb[0].mxu0 %v1727
      %v1935 = vpop.f32.mrb[0].mxu0
      %v1936 = vadd.f32 0.0, %v1935
      %v1937 = vpop.f32.mrb[0].mxu0
      %1938 = vmatprep.mubr.f32.mxu0 0.0
      %1939 = vmatmul.mubr.f32.gmra.mrb[0].mxu0 %v1730
      %v1940 = vpop.f32.mrb[0].mxu0
      %v1941 = vadd.f32 0.0, %v1940
      %v1942 = vpop.f32.mrb[0].mxu0
      %1943 = vmatprep.mubr.f32.mxu0 0.0
      %1944 = vmatmul.mubr.f32.gmra.mrb[0].mxu0 %v1733
      %v1945 = vpop.f32.mrb[0].mxu0
      %v1946 = vadd.f32 0.0, %v1945
      %v1947 = vpop.f32.mrb[0].mxu0
      %1948 = vmatprep.mubr.f32.mxu0 0.0
      %1949 = vmatmul.mubr.f32.gmra.mrb[0].mxu0 %v1736
      %v1950 = vpop.f32.mrb[0].mxu0
      %v1951 = vadd.f32 0.0, %v1950
      %v1952 = vpop.f32.mrb[0].mxu0
      %1953 = vmatprep.mubr.f32.mxu0 0.0
      %1954 = vmatmul.mubr.f32.gmra.mrb[0].mxu0 %v1739
      %v1955 = vpop.f32.mrb[0].mxu0
      %v1956 = vadd.f32 0.0, %v1955
      %v1957 = vpop.f32.mrb[0].mxu0
      %1958 = vmatprep.mubr.f32.mxu0 0.0
      %1959 = vmatmul.mubr.f32.gmra.mrb[0].mxu0 %v1742
      %v1960 = vpop.f32.mrb[0].mxu0
      %v1961 = vadd.f32 0.0, %v1960
      %v1962 = vpop.f32.mrb[0].mxu0
      %1963 = vmatprep.mubr.f32.mxu0 0.0
      %1964 = vmatmul.mubr.f32.gmra.mrb[0].mxu0 %v1745
      %v1965 = vpop.f32.mrb[0].mxu0
      %v1966 = vadd.f32 0.0, %v1965
      %v1967 = vpop.f32.mrb[0].mxu0
      %1968 = vmatprep.mubr.f32.mxu0 0.0
      %1969 = vmatmul.mubr.f32.gmra.mrb[0].mxu0 %v1748
      %v1970 = vpop.f32.mrb[0].mxu0
      %v1971 = vadd.f32 0.0, %v1970
      %v1972 = vpop.f32.mrb[0].mxu0
      %1973 = vmatprep.mubr.f32.mxu0 0.0
      %1974 = vmatmul.mubr.f32.gmra.mrb[0].mxu0 %v1751
      %v1975 = vpop.f32.mrb[0].mxu0
      %v1976 = vadd.f32 0.0, %v1975
      %v1977 = vpop.f32.mrb[0].mxu0
      %1978 = vmatprep.mubr.f32.mxu0 0.0
      %1979 = vmatmul.mubr.f32.gmra.mrb[0].mxu0 %v1754
      %v1980 = vpop.f32.mrb[0].mxu0
      %v1981 = vadd.f32 0.0, %v1980
      %v1982 = vpop.f32.mrb[0].mxu0
      %1983 = vdwg.mxu0
      %v1985 = vsel %vm529, %v1657, 0
      %1987 = vmatprep.subr.mxu0 0.0
      %1988 = vmatpush1.msra.mxu0 %v1985
      %1989 = vmatprep.subr.mxu0 0.0
      %1990 = vmatpush1.msra.mxu0 0.0
      %1991 = vmatprep.subr.mxu0 0.0
      %1992 = vmatpush1.msra.mxu0 0.0
      %1993 = vmatprep.subr.mxu0 0.0
      %1994 = vmatpush1.msra.mxu0 0.0
      %1995 = vmatprep.subr.mxu0 0.0
      %1996 = vmatpush1.msra.mxu0 0.0
      %1997 = vmatprep.subr.mxu0 0.0
      %1998 = vmatpush1.msra.mxu0 0.0
      %1999 = vmatprep.subr.mxu0 0.0
      %2000 = vmatpush1.msra.mxu0 0.0
      %2001 = vmatprep.subr.mxu0 0.0
      %2002 = vmatpush1.msra.mxu0 0.0
      %2003 = vmatprep.subr.mxu0 0.0
      %2004 = vmatpush1.msra.mxu0 0.0
      %2005 = vmatprep.subr.mxu0 0.0
      %2006 = vmatpush1.msra.mxu0 0.0
      %2007 = vmatprep.subr.mxu0 0.0
      %2008 = vmatpush1.msra.mxu0 0.0
      %2009 = vmatprep.subr.mxu0 0.0
      %2010 = vmatpush1.msra.mxu0 0.0
      %2011 = vmatprep.subr.mxu0 0.0
      %2012 = vmatpush1.msra.mxu0 0.0
      %2013 = vmatprep.subr.mxu0 0.0
      %2014 = vmatpush1.msra.mxu0 0.0
      %2015 = vmatprep.subr.mxu0 0.0
      %2016 = vmatpush1.msra.mxu0 0.0
      %2017 = vmatprep.subr.mxu0 0.0
      %2018 = vmatpush1.msra.mxu0 0.0
      %2019 = vmatprep.subr.mxu0 0.0
      %2020 = vmatpush1.msra.mxu0 0.0
      %2021 = vmatprep.subr.mxu0 0.0
      %2022 = vmatpush1.msra.mxu0 0.0
      %2023 = vmatprep.subr.mxu0 0.0
      %2024 = vmatpush1.msra.mxu0 0.0
      %2025 = vmatprep.subr.mxu0 0.0
      %2026 = vmatpush1.msra.mxu0 0.0
      %2027 = vmatprep.subr.mxu0 0.0
      %2028 = vmatpush1.msra.mxu0 0.0
      %2029 = vmatprep.subr.mxu0 0.0
      %2030 = vmatpush1.msra.mxu0 0.0
      %2031 = vmatprep.subr.mxu0 0.0
      %2032 = vmatpush1.msra.mxu0 0.0
      %2033 = vmatprep.subr.mxu0 0.0
      %2034 = vmatpush1.msra.mxu0 0.0
      %2035 = vmatprep.subr.mxu0 0.0
      %2036 = vmatpush1.msra.mxu0 0.0
      %2037 = vmatprep.subr.mxu0 0.0
      %2038 = vmatpush1.msra.mxu0 0.0
      %2039 = vmatprep.subr.mxu0 0.0
      %2040 = vmatpush1.msra.mxu0 0.0
      %2041 = vmatprep.subr.mxu0 0.0
      %2042 = vmatpush1.msra.mxu0 0.0
      %2043 = vmatprep.subr.mxu0 0.0
      %2044 = vmatpush1.msra.mxu0 0.0
      %2045 = vmatprep.subr.mxu0 0.0
      %2046 = vmatpush1.msra.mxu0 0.0
      %2047 = vmatprep.subr.mxu0 0.0
      %2048 = vmatpush1.msra.mxu0 0.0
      %2049 = vmatprep.subr.mxu0 0.0
      %2050 = vmatpush1.msra.mxu0 0.0
      %2051 = vmatprep.mubr.f32.mxu0 0.0
      %2052 = vmatmul.mubr.f32.gmra.mrb[0].mxu0 %v434
      %v2053 = vpop.f32.mrb[0].mxu0
      %v2054 = vadd.f32 %v1826, %v2053
      %v2055 = vpop.f32.mrb[0].mxu0
      %2056 = vmatprep.mubr.f32.mxu0 0.0
      %2057 = vmatmul.mubr.f32.gmra.mrb[0].mxu0 %v437
      %v2058 = vpop.f32.mrb[0].mxu0
      %v2059 = vadd.f32 %v1831, %v2058
      %v2060 = vpop.f32.mrb[0].mxu0
      %2061 = vmatprep.mubr.f32.mxu0 0.0
      %2062 = vmatmul.mubr.f32.gmra.mrb[0].mxu0 %v440
      %v2063 = vpop.f32.mrb[0].mxu0
      %v2064 = vadd.f32 %v1836, %v2063
      %v2065 = vpop.f32.mrb[0].mxu0
      %2066 = vmatprep.mubr.f32.mxu0 0.0
      %2067 = vmatmul.mubr.f32.gmra.mrb[0].mxu0 %v443
      %v2068 = vpop.f32.mrb[0].mxu0
      %v2069 = vadd.f32 %v1841, %v2068
      %v2070 = vpop.f32.mrb[0].mxu0
      %2071 = vmatprep.mubr.f32.mxu0 0.0
      %2072 = vmatmul.mubr.f32.gmra.mrb[0].mxu0 %v446
      %v2073 = vpop.f32.mrb[0].mxu0
      %v2074 = vadd.f32 %v1846, %v2073
      %v2075 = vpop.f32.mrb[0].mxu0
      %2076 = vmatprep.mubr.f32.mxu0 0.0
      %2077 = vmatmul.mubr.f32.gmra.mrb[0].mxu0 %v449
      %v2078 = vpop.f32.mrb[0].mxu0
      %v2079 = vadd.f32 %v1851, %v2078
      %v2080 = vpop.f32.mrb[0].mxu0
      %2081 = vmatprep.mubr.f32.mxu0 0.0
      %2082 = vmatmul.mubr.f32.gmra.mrb[0].mxu0 %v452
      %v2083 = vpop.f32.mrb[0].mxu0
      %v2084 = vadd.f32 %v1856, %v2083
      %v2085 = vpop.f32.mrb[0].mxu0
      %2086 = vmatprep.mubr.f32.mxu0 0.0
      %2087 = vmatmul.mubr.f32.gmra.mrb[0].mxu0 %v455
      %v2088 = vpop.f32.mrb[0].mxu0
      %v2089 = vadd.f32 %v1861, %v2088
      %v2090 = vpop.f32.mrb[0].mxu0
      %2091 = vmatprep.mubr.f32.mxu0 0.0
      %2092 = vmatmul.mubr.f32.gmra.mrb[0].mxu0 %v458
      %v2093 = vpop.f32.mrb[0].mxu0
      %v2094 = vadd.f32 %v1866, %v2093
      %v2095 = vpop.f32.mrb[0].mxu0
      %2096 = vmatprep.mubr.f32.mxu0 0.0
      %2097 = vmatmul.mubr.f32.gmra.mrb[0].mxu0 %v461
      %v2098 = vpop.f32.mrb[0].mxu0
      %v2099 = vadd.f32 %v1871, %v2098
      %v2100 = vpop.f32.mrb[0].mxu0
      %2101 = vmatprep.mubr.f32.mxu0 0.0
      %2102 = vmatmul.mubr.f32.gmra.mrb[0].mxu0 %v464
      %v2103 = vpop.f32.mrb[0].mxu0
      %v2104 = vadd.f32 %v1876, %v2103
      %v2105 = vpop.f32.mrb[0].mxu0
      %2106 = vmatprep.mubr.f32.mxu0 0.0
      %2107 = vmatmul.mubr.f32.gmra.mrb[0].mxu0 %v467
      %v2108 = vpop.f32.mrb[0].mxu0
      %v2109 = vadd.f32 %v1881, %v2108
      %v2110 = vpop.f32.mrb[0].mxu0
      %2111 = vmatprep.mubr.f32.mxu0 0.0
      %2112 = vmatmul.mubr.f32.gmra.mrb[0].mxu0 %v470
      %v2113 = vpop.f32.mrb[0].mxu0
      %v2114 = vadd.f32 %v1886, %v2113
      %v2115 = vpop.f32.mrb[0].mxu0
      %2116 = vmatprep.mubr.f32.mxu0 0.0
      %2117 = vmatmul.mubr.f32.gmra.mrb[0].mxu0 %v473
      %v2118 = vpop.f32.mrb[0].mxu0
      %v2119 = vadd.f32 %v1891, %v2118
      %v2120 = vpop.f32.mrb[0].mxu0
      %2121 = vmatprep.mubr.f32.mxu0 0.0
      %2122 = vmatmul.mubr.f32.gmra.mrb[0].mxu0 %v476
      %v2123 = vpop.f32.mrb[0].mxu0
      %v2124 = vadd.f32 %v1896, %v2123
      %v2125 = vpop.f32.mrb[0].mxu0
      %2126 = vmatprep.mubr.f32.mxu0 0.0
      %2127 = vmatmul.mubr.f32.gmra.mrb[0].mxu0 %v479
      %v2128 = vpop.f32.mrb[0].mxu0
      %v2129 = vadd.f32 %v1901, %v2128
      %v2130 = vpop.f32.mrb[0].mxu0
      %2131 = vmatprep.mubr.f32.mxu0 0.0
      %2132 = vmatmul.mubr.f32.gmra.mrb[0].mxu0 %v482
      %v2133 = vpop.f32.mrb[0].mxu0
      %v2134 = vadd.f32 %v1906, %v2133
      %v2135 = vpop.f32.mrb[0].mxu0
      %2136 = vmatprep.mubr.f32.mxu0 0.0
      %2137 = vmatmul.mubr.f32.gmra.mrb[0].mxu0 %v485
      %v2138 = vpop.f32.mrb[0].mxu0
      %v2139 = vadd.f32 %v1911, %v2138
      %v2140 = vpop.f32.mrb[0].mxu0
      %2141 = vmatprep.mubr.f32.mxu0 0.0
      %2142 = vmatmul.mubr.f32.gmra.mrb[0].mxu0 %v488
      %v2143 = vpop.f32.mrb[0].mxu0
      %v2144 = vadd.f32 %v1916, %v2143
      %v2145 = vpop.f32.mrb[0].mxu0
      %2146 = vmatprep.mubr.f32.mxu0 0.0
      %2147 = vmatmul.mubr.f32.gmra.mrb[0].mxu0 %v491
      %v2148 = vpop.f32.mrb[0].mxu0
      %v2149 = vadd.f32 %v1921, %v2148
      %v2150 = vpop.f32.mrb[0].mxu0
      %2151 = vmatprep.mubr.f32.mxu0 0.0
      %2152 = vmatmul.mubr.f32.gmra.mrb[0].mxu0 %v494
      %v2153 = vpop.f32.mrb[0].mxu0
      %v2154 = vadd.f32 %v1926, %v2153
      %v2155 = vpop.f32.mrb[0].mxu0
      %2156 = vmatprep.mubr.f32.mxu0 0.0
      %2157 = vmatmul.mubr.f32.gmra.mrb[0].mxu0 %v497
      %v2158 = vpop.f32.mrb[0].mxu0
      %v2159 = vadd.f32 %v1931, %v2158
      %v2160 = vpop.f32.mrb[0].mxu0
      %2161 = vmatprep.mubr.f32.mxu0 0.0
      %2162 = vmatmul.mubr.f32.gmra.mrb[0].mxu0 %v500
      %v2163 = vpop.f32.mrb[0].mxu0
      %v2164 = vadd.f32 %v1936, %v2163
      %v2165 = vpop.f32.mrb[0].mxu0
      %2166 = vmatprep.mubr.f32.mxu0 0.0
      %2167 = vmatmul.mubr.f32.gmra.mrb[0].mxu0 %v503
      %v2168 = vpop.f32.mrb[0].mxu0
      %v2169 = vadd.f32 %v1941, %v2168
      %v2170 = vpop.f32.mrb[0].mxu0
      %2171 = vmatprep.mubr.f32.mxu0 0.0
      %2172 = vmatmul.mubr.f32.gmra.mrb[0].mxu0 %v506
      %v2173 = vpop.f32.mrb[0].mxu0
      %v2174 = vadd.f32 %v1946, %v2173
      %v2175 = vpop.f32.mrb[0].mxu0
      %2176 = vmatprep.mubr.f32.mxu0 0.0
      %2177 = vmatmul.mubr.f32.gmra.mrb[0].mxu0 %v509
      %v2178 = vpop.f32.mrb[0].mxu0
      %v2179 = vadd.f32 %v1951, %v2178
      %v2180 = vpop.f32.mrb[0].mxu0
      %2181 = vmatprep.mubr.f32.mxu0 0.0
      %2182 = vmatmul.mubr.f32.gmra.mrb[0].mxu0 %v512
      %v2183 = vpop.f32.mrb[0].mxu0
      %v2184 = vadd.f32 %v1956, %v2183
      %v2185 = vpop.f32.mrb[0].mxu0
      %2186 = vmatprep.mubr.f32.mxu0 0.0
      %2187 = vmatmul.mubr.f32.gmra.mrb[0].mxu0 %v515
      %v2188 = vpop.f32.mrb[0].mxu0
      %v2189 = vadd.f32 %v1961, %v2188
      %v2190 = vpop.f32.mrb[0].mxu0
      %2191 = vmatprep.mubr.f32.mxu0 0.0
      %2192 = vmatmul.mubr.f32.gmra.mrb[0].mxu0 %v518
      %v2193 = vpop.f32.mrb[0].mxu0
      %v2194 = vadd.f32 %v1966, %v2193
      %v2195 = vpop.f32.mrb[0].mxu0
      %2196 = vmatprep.mubr.f32.mxu0 0.0
      %2197 = vmatmul.mubr.f32.gmra.mrb[0].mxu0 %v521
      %v2198 = vpop.f32.mrb[0].mxu0
      %v2199 = vadd.f32 %v1971, %v2198
      %v2200 = vpop.f32.mrb[0].mxu0
      %2201 = vmatprep.mubr.f32.mxu0 0.0
      %2202 = vmatmul.mubr.f32.gmra.mrb[0].mxu0 %v524
      %v2203 = vpop.f32.mrb[0].mxu0
      %v2204 = vadd.f32 %v1976, %v2203
      %v2205 = vpop.f32.mrb[0].mxu0
      %2206 = vmatprep.mubr.f32.mxu0 0.0
      %2207 = vmatmul.mubr.f32.gmra.mrb[0].mxu0 %v527
      %v2208 = vpop.f32.mrb[0].mxu0
      %v2209 = vadd.f32 %v1981, %v2208
      %v2210 = vpop.f32.mrb[0].mxu0
      %2211 = vdwg.mxu0
      %s2212 = scalar_lea.vmem %s2, 24
      %v2213 = vld [vmem:[%s2212] sm:$0xf]
      %v2215 = vsel %vm529, %v2213, 0
      %2217 = vmatprep.subr.mxu0 0.0
      %2218 = vmatpush1.msra.mxu0 %v2215
      %2219 = vmatprep.subr.mxu0 0.0
      %2220 = vmatpush1.msra.mxu0 0.0
      %2221 = vmatprep.subr.mxu0 0.0
      %2222 = vmatpush1.msra.mxu0 0.0
      %2223 = vmatprep.subr.mxu0 0.0
      %2224 = vmatpush1.msra.mxu0 0.0
      %2225 = vmatprep.subr.mxu0 0.0
      %2226 = vmatpush1.msra.mxu0 0.0
      %2227 = vmatprep.subr.mxu0 0.0
      %2228 = vmatpush1.msra.mxu0 0.0
      %2229 = vmatprep.subr.mxu0 0.0
      %2230 = vmatpush1.msra.mxu0 0.0
      %2231 = vmatprep.subr.mxu0 0.0
      %2232 = vmatpush1.msra.mxu0 0.0
      %2233 = vmatprep.subr.mxu0 0.0
      %2234 = vmatpush1.msra.mxu0 0.0
      %2235 = vmatprep.subr.mxu0 0.0
      %2236 = vmatpush1.msra.mxu0 0.0
      %2237 = vmatprep.subr.mxu0 0.0
      %2238 = vmatpush1.msra.mxu0 0.0
      %2239 = vmatprep.subr.mxu0 0.0
      %2240 = vmatpush1.msra.mxu0 0.0
      %2241 = vmatprep.subr.mxu0 0.0
      %2242 = vmatpush1.msra.mxu0 0.0
      %2243 = vmatprep.subr.mxu0 0.0
      %2244 = vmatpush1.msra.mxu0 0.0
      %2245 = vmatprep.subr.mxu0 0.0
      %2246 = vmatpush1.msra.mxu0 0.0
      %2247 = vmatprep.subr.mxu0 0.0
      %2248 = vmatpush1.msra.mxu0 0.0
      %2249 = vmatprep.subr.mxu0 0.0
      %2250 = vmatpush1.msra.mxu0 0.0
      %2251 = vmatprep.subr.mxu0 0.0
      %2252 = vmatpush1.msra.mxu0 0.0
      %2253 = vmatprep.subr.mxu0 0.0
      %2254 = vmatpush1.msra.mxu0 0.0
      %2255 = vmatprep.subr.mxu0 0.0
      %2256 = vmatpush1.msra.mxu0 0.0
      %2257 = vmatprep.subr.mxu0 0.0
      %2258 = vmatpush1.msra.mxu0 0.0
      %2259 = vmatprep.subr.mxu0 0.0
      %2260 = vmatpush1.msra.mxu0 0.0
      %2261 = vmatprep.subr.mxu0 0.0
      %2262 = vmatpush1.msra.mxu0 0.0
      %2263 = vmatprep.subr.mxu0 0.0
      %2264 = vmatpush1.msra.mxu0 0.0
      %2265 = vmatprep.subr.mxu0 0.0
      %2266 = vmatpush1.msra.mxu0 0.0
      %2267 = vmatprep.subr.mxu0 0.0
      %2268 = vmatpush1.msra.mxu0 0.0
      %2269 = vmatprep.subr.mxu0 0.0
      %2270 = vmatpush1.msra.mxu0 0.0
      %2271 = vmatprep.subr.mxu0 0.0
      %2272 = vmatpush1.msra.mxu0 0.0
      %2273 = vmatprep.subr.mxu0 0.0
      %2274 = vmatpush1.msra.mxu0 0.0
      %2275 = vmatprep.subr.mxu0 0.0
      %2276 = vmatpush1.msra.mxu0 0.0
      %2277 = vmatprep.subr.mxu0 0.0
      %2278 = vmatpush1.msra.mxu0 0.0
      %2279 = vmatprep.subr.mxu0 0.0
      %2280 = vmatpush1.msra.mxu0 0.0
      %2281 = vmatprep.mubr.f32.mxu0 0.0
      %2282 = vmatmul.mubr.f32.gmra.mrb[0].mxu0 %v440
      %v2283 = vpop.f32.mrb[0].mxu0
      %v2284 = vadd.f32 0.0, %v2283
      %v2285 = vpop.f32.mrb[0].mxu0
      %2286 = vmatprep.mubr.f32.mxu0 0.0
      %2287 = vmatmul.mubr.f32.gmra.mrb[0].mxu0 %v443
      %v2288 = vpop.f32.mrb[0].mxu0
      %v2289 = vadd.f32 0.0, %v2288
      %v2290 = vpop.f32.mrb[0].mxu0
      %2291 = vmatprep.mubr.f32.mxu0 0.0
      %2292 = vmatmul.mubr.f32.gmra.mrb[0].mxu0 %v446
      %v2293 = vpop.f32.mrb[0].mxu0
      %v2294 = vadd.f32 0.0, %v2293
      %v2295 = vpop.f32.mrb[0].mxu0
      %2296 = vmatprep.mubr.f32.mxu0 0.0
      %2297 = vmatmul.mubr.f32.gmra.mrb[0].mxu0 %v449
      %v2298 = vpop.f32.mrb[0].mxu0
      %v2299 = vadd.f32 0.0, %v2298
      %v2300 = vpop.f32.mrb[0].mxu0
      %2301 = vmatprep.mubr.f32.mxu0 0.0
      %2302 = vmatmul.mubr.f32.gmra.mrb[0].mxu0 %v452
      %v2303 = vpop.f32.mrb[0].mxu0
      %v2304 = vadd.f32 0.0, %v2303
      %v2305 = vpop.f32.mrb[0].mxu0
      %2306 = vmatprep.mubr.f32.mxu0 0.0
      %2307 = vmatmul.mubr.f32.gmra.mrb[0].mxu0 %v455
      %v2308 = vpop.f32.mrb[0].mxu0
      %v2309 = vadd.f32 0.0, %v2308
      %v2310 = vpop.f32.mrb[0].mxu0
      %2311 = vmatprep.mubr.f32.mxu0 0.0
      %2312 = vmatmul.mubr.f32.gmra.mrb[0].mxu0 %v458
      %v2313 = vpop.f32.mrb[0].mxu0
      %v2314 = vadd.f32 0.0, %v2313
      %v2315 = vpop.f32.mrb[0].mxu0
      %2316 = vmatprep.mubr.f32.mxu0 0.0
      %2317 = vmatmul.mubr.f32.gmra.mrb[0].mxu0 %v461
      %v2318 = vpop.f32.mrb[0].mxu0
      %v2319 = vadd.f32 0.0, %v2318
      %v2320 = vpop.f32.mrb[0].mxu0
      %2321 = vmatprep.mubr.f32.mxu0 0.0
      %2322 = vmatmul.mubr.f32.gmra.mrb[0].mxu0 %v464
      %v2323 = vpop.f32.mrb[0].mxu0
      %v2324 = vadd.f32 0.0, %v2323
      %v2325 = vpop.f32.mrb[0].mxu0
      %2326 = vmatprep.mubr.f32.mxu0 0.0
      %2327 = vmatmul.mubr.f32.gmra.mrb[0].mxu0 %v467
      %v2328 = vpop.f32.mrb[0].mxu0
      %v2329 = vadd.f32 0.0, %v2328
      %v2330 = vpop.f32.mrb[0].mxu0
      %2331 = vmatprep.mubr.f32.mxu0 0.0
      %2332 = vmatmul.mubr.f32.gmra.mrb[0].mxu0 %v470
      %v2333 = vpop.f32.mrb[0].mxu0
      %v2334 = vadd.f32 0.0, %v2333
      %v2335 = vpop.f32.mrb[0].mxu0
      %2336 = vmatprep.mubr.f32.mxu0 0.0
      %2337 = vmatmul.mubr.f32.gmra.mrb[0].mxu0 %v473
      %v2338 = vpop.f32.mrb[0].mxu0
      %v2339 = vadd.f32 0.0, %v2338
      %v2340 = vpop.f32.mrb[0].mxu0
      %2341 = vmatprep.mubr.f32.mxu0 0.0
      %2342 = vmatmul.mubr.f32.gmra.mrb[0].mxu0 %v476
      %v2343 = vpop.f32.mrb[0].mxu0
      %v2344 = vadd.f32 0.0, %v2343
      %v2345 = vpop.f32.mrb[0].mxu0
      %2346 = vmatprep.mubr.f32.mxu0 0.0
      %2347 = vmatmul.mubr.f32.gmra.mrb[0].mxu0 %v479
      %v2348 = vpop.f32.mrb[0].mxu0
      %v2349 = vadd.f32 0.0, %v2348
      %v2350 = vpop.f32.mrb[0].mxu0
      %2351 = vmatprep.mubr.f32.mxu0 0.0
      %2352 = vmatmul.mubr.f32.gmra.mrb[0].mxu0 %v482
      %v2353 = vpop.f32.mrb[0].mxu0
      %v2354 = vadd.f32 0.0, %v2353
      %v2355 = vpop.f32.mrb[0].mxu0
      %2356 = vmatprep.mubr.f32.mxu0 0.0
      %2357 = vmatmul.mubr.f32.gmra.mrb[0].mxu0 %v485
      %v2358 = vpop.f32.mrb[0].mxu0
      %v2359 = vadd.f32 0.0, %v2358
      %v2360 = vpop.f32.mrb[0].mxu0
      %2361 = vmatprep.mubr.f32.mxu0 0.0
      %2362 = vmatmul.mubr.f32.gmra.mrb[0].mxu0 %v488
      %v2363 = vpop.f32.mrb[0].mxu0
      %v2364 = vadd.f32 0.0, %v2363
      %v2365 = vpop.f32.mrb[0].mxu0
      %2366 = vmatprep.mubr.f32.mxu0 0.0
      %2367 = vmatmul.mubr.f32.gmra.mrb[0].mxu0 %v491
      %v2368 = vpop.f32.mrb[0].mxu0
      %v2369 = vadd.f32 0.0, %v2368
      %v2370 = vpop.f32.mrb[0].mxu0
      %2371 = vmatprep.mubr.f32.mxu0 0.0
      %2372 = vmatmul.mubr.f32.gmra.mrb[0].mxu0 %v494
      %v2373 = vpop.f32.mrb[0].mxu0
      %v2374 = vadd.f32 0.0, %v2373
      %v2375 = vpop.f32.mrb[0].mxu0
      %2376 = vmatprep.mubr.f32.mxu0 0.0
      %2377 = vmatmul.mubr.f32.gmra.mrb[0].mxu0 %v497
      %v2378 = vpop.f32.mrb[0].mxu0
      %v2379 = vadd.f32 0.0, %v2378
      %v2380 = vpop.f32.mrb[0].mxu0
      %2381 = vmatprep.mubr.f32.mxu0 0.0
      %2382 = vmatmul.mubr.f32.gmra.mrb[0].mxu0 %v500
      %v2383 = vpop.f32.mrb[0].mxu0
      %v2384 = vadd.f32 0.0, %v2383
      %v2385 = vpop.f32.mrb[0].mxu0
      %2386 = vmatprep.mubr.f32.mxu0 0.0
      %2387 = vmatmul.mubr.f32.gmra.mrb[0].mxu0 %v503
      %v2388 = vpop.f32.mrb[0].mxu0
      %v2389 = vadd.f32 0.0, %v2388
      %v2390 = vpop.f32.mrb[0].mxu0
      %2391 = vmatprep.mubr.f32.mxu0 0.0
      %2392 = vmatmul.mubr.f32.gmra.mrb[0].mxu0 %v506
      %v2393 = vpop.f32.mrb[0].mxu0
      %v2394 = vadd.f32 0.0, %v2393
      %v2395 = vpop.f32.mrb[0].mxu0
      %2396 = vmatprep.mubr.f32.mxu0 0.0
      %2397 = vmatmul.mubr.f32.gmra.mrb[0].mxu0 %v509
      %v2398 = vpop.f32.mrb[0].mxu0
      %v2399 = vadd.f32 0.0, %v2398
      %v2400 = vpop.f32.mrb[0].mxu0
      %2401 = vmatprep.mubr.f32.mxu0 0.0
      %2402 = vmatmul.mubr.f32.gmra.mrb[0].mxu0 %v512
      %v2403 = vpop.f32.mrb[0].mxu0
      %v2404 = vadd.f32 0.0, %v2403
      %v2405 = vpop.f32.mrb[0].mxu0
      %2406 = vmatprep.mubr.f32.mxu0 0.0
      %2407 = vmatmul.mubr.f32.gmra.mrb[0].mxu0 %v515
      %v2408 = vpop.f32.mrb[0].mxu0
      %v2409 = vadd.f32 0.0, %v2408
      %v2410 = vpop.f32.mrb[0].mxu0
      %2411 = vmatprep.mubr.f32.mxu0 0.0
      %2412 = vmatmul.mubr.f32.gmra.mrb[0].mxu0 %v518
      %v2413 = vpop.f32.mrb[0].mxu0
      %v2414 = vadd.f32 0.0, %v2413
      %v2415 = vpop.f32.mrb[0].mxu0
      %2416 = vmatprep.mubr.f32.mxu0 0.0
      %2417 = vmatmul.mubr.f32.gmra.mrb[0].mxu0 %v521
      %v2418 = vpop.f32.mrb[0].mxu0
      %v2419 = vadd.f32 0.0, %v2418
      %v2420 = vpop.f32.mrb[0].mxu0
      %2421 = vmatprep.mubr.f32.mxu0 0.0
      %2422 = vmatmul.mubr.f32.gmra.mrb[0].mxu0 %v524
      %v2423 = vpop.f32.mrb[0].mxu0
      %v2424 = vadd.f32 0.0, %v2423
      %v2425 = vpop.f32.mrb[0].mxu0
      %2426 = vmatprep.mubr.f32.mxu0 0.0
      %2427 = vmatmul.mubr.f32.gmra.mrb[0].mxu0 %v527
      %v2428 = vpop.f32.mrb[0].mxu0
      %v2429 = vadd.f32 0.0, %v2428
      %v2430 = vpop.f32.mrb[0].mxu0
      %2431 = vmatprep.mubr.f32.mxu0 0.0
      %2432 = vmatmul.mubr.f32.gmra.mrb[0].mxu0 %v1353
      %v2433 = vpop.f32.mrb[0].mxu0
      %v2434 = vadd.f32 0.0, %v2433
      %v2435 = vpop.f32.mrb[0].mxu0
      %2436 = vmatprep.mubr.f32.mxu0 0.0
      %2437 = vmatmul.mubr.f32.gmra.mrb[0].mxu0 %v1356
      %v2438 = vpop.f32.mrb[0].mxu0
      %v2439 = vadd.f32 0.0, %v2438
      %v2440 = vpop.f32.mrb[0].mxu0
      %2441 = vdwg.mxu0
      %v2442 = vadd.f32 %v2054, %v2284
      %v2443 = vadd.f32 %v2059, %v2289
      %v2444 = vadd.f32 %v2064, %v2294
      %v2445 = vadd.f32 %v2069, %v2299
      %v2446 = vadd.f32 %v2074, %v2304
      %v2447 = vadd.f32 %v2079, %v2309
      %v2448 = vadd.f32 %v2084, %v2314
      %v2449 = vadd.f32 %v2089, %v2319
      %v2450 = vadd.f32 %v2094, %v2324
      %v2451 = vadd.f32 %v2099, %v2329
      %v2452 = vadd.f32 %v2104, %v2334
      %v2453 = vadd.f32 %v2109, %v2339
      %v2454 = vadd.f32 %v2114, %v2344
      %v2455 = vadd.f32 %v2119, %v2349
      %v2456 = vadd.f32 %v2124, %v2354
      %v2457 = vadd.f32 %v2129, %v2359
      %v2458 = vadd.f32 %v2134, %v2364
      %v2459 = vadd.f32 %v2139, %v2369
      %v2460 = vadd.f32 %v2144, %v2374
      %v2461 = vadd.f32 %v2149, %v2379
      %v2462 = vadd.f32 %v2154, %v2384
      %v2463 = vadd.f32 %v2159, %v2389
      %v2464 = vadd.f32 %v2164, %v2394
      %v2465 = vadd.f32 %v2169, %v2399
      %v2466 = vadd.f32 %v2174, %v2404
      %v2467 = vadd.f32 %v2179, %v2409
      %v2468 = vadd.f32 %v2184, %v2414
      %v2469 = vadd.f32 %v2189, %v2419
      %v2470 = vadd.f32 %v2194, %v2424
      %v2471 = vadd.f32 %v2199, %v2429
      %v2472 = vadd.f32 %v2204, %v2434
      %v2473 = vadd.f32 %v2209, %v2439
      %s2474 = scalar_lea.vmem %s2, 28
      %v2475 = vld [vmem:[%s2474] sm:$0xf]
      %v2477 = vsel %vm432, %v425, 0
      %v2480 = vsel %vm432, %v426, 0
      %v2483 = vsel %vm529, %v2475, 0
      %2485 = vmatprep.subr.mxu0 0.0
      %2486 = vmatpush1.msra.mxu0 %v2483
      %2487 = vmatprep.subr.mxu0 0.0
      %2488 = vmatpush1.msra.mxu0 0.0
      %2489 = vmatprep.subr.mxu0 0.0
      %2490 = vmatpush1.msra.mxu0 0.0
      %2491 = vmatprep.subr.mxu0 0.0
      %2492 = vmatpush1.msra.mxu0 0.0
      %2493 = vmatprep.subr.mxu0 0.0
      %2494 = vmatpush1.msra.mxu0 0.0
      %2495 = vmatprep.subr.mxu0 0.0
      %2496 = vmatpush1.msra.mxu0 0.0
      %2497 = vmatprep.subr.mxu0 0.0
      %2498 = vmatpush1.msra.mxu0 0.0
      %2499 = vmatprep.subr.mxu0 0.0
      %2500 = vmatpush1.msra.mxu0 0.0
      %2501 = vmatprep.subr.mxu0 0.0
      %2502 = vmatpush1.msra.mxu0 0.0
      %2503 = vmatprep.subr.mxu0 0.0
      %2504 = vmatpush1.msra.mxu0 0.0
      %2505 = vmatprep.subr.mxu0 0.0
      %2506 = vmatpush1.msra.mxu0 0.0
      %2507 = vmatprep.subr.mxu0 0.0
      %2508 = vmatpush1.msra.mxu0 0.0
      %2509 = vmatprep.subr.mxu0 0.0
      %2510 = vmatpush1.msra.mxu0 0.0
      %2511 = vmatprep.subr.mxu0 0.0
      %2512 = vmatpush1.msra.mxu0 0.0
      %2513 = vmatprep.subr.mxu0 0.0
      %2514 = vmatpush1.msra.mxu0 0.0
      %2515 = vmatprep.subr.mxu0 0.0
      %2516 = vmatpush1.msra.mxu0 0.0
      %2517 = vmatprep.subr.mxu0 0.0
      %2518 = vmatpush1.msra.mxu0 0.0
      %2519 = vmatprep.subr.mxu0 0.0
      %2520 = vmatpush1.msra.mxu0 0.0
      %2521 = vmatprep.subr.mxu0 0.0
      %2522 = vmatpush1.msra.mxu0 0.0
      %2523 = vmatprep.subr.mxu0 0.0
      %2524 = vmatpush1.msra.mxu0 0.0
      %2525 = vmatprep.subr.mxu0 0.0
      %2526 = vmatpush1.msra.mxu0 0.0
      %2527 = vmatprep.subr.mxu0 0.0
      %2528 = vmatpush1.msra.mxu0 0.0
      %2529 = vmatprep.subr.mxu0 0.0
      %2530 = vmatpush1.msra.mxu0 0.0
      %2531 = vmatprep.subr.mxu0 0.0
      %2532 = vmatpush1.msra.mxu0 0.0
      %2533 = vmatprep.subr.mxu0 0.0
      %2534 = vmatpush1.msra.mxu0 0.0
      %2535 = vmatprep.subr.mxu0 0.0
      %2536 = vmatpush1.msra.mxu0 0.0
      %2537 = vmatprep.subr.mxu0 0.0
      %2538 = vmatpush1.msra.mxu0 0.0
      %2539 = vmatprep.subr.mxu0 0.0
      %2540 = vmatpush1.msra.mxu0 0.0
      %2541 = vmatprep.subr.mxu0 0.0
      %2542 = vmatpush1.msra.mxu0 0.0
      %2543 = vmatprep.subr.mxu0 0.0
      %2544 = vmatpush1.msra.mxu0 0.0
      %2545 = vmatprep.subr.mxu0 0.0
      %2546 = vmatpush1.msra.mxu0 0.0
      %2547 = vmatprep.subr.mxu0 0.0
      %2548 = vmatpush1.msra.mxu0 0.0
      %2549 = vmatprep.mubr.f32.mxu0 0.0
      %2550 = vmatmul.mubr.f32.gmra.mrb[0].mxu0 %v1667
      %v2551 = vpop.f32.mrb[0].mxu0
      %v2552 = vadd.f32 0.0, %v2551
      %v2553 = vpop.f32.mrb[0].mxu0
      %2554 = vmatprep.mubr.f32.mxu0 0.0
      %2555 = vmatmul.mubr.f32.gmra.mrb[0].mxu0 %v1670
      %v2556 = vpop.f32.mrb[0].mxu0
      %v2557 = vadd.f32 0.0, %v2556
      %v2558 = vpop.f32.mrb[0].mxu0
      %2559 = vmatprep.mubr.f32.mxu0 0.0
      %2560 = vmatmul.mubr.f32.gmra.mrb[0].mxu0 %v1673
      %v2561 = vpop.f32.mrb[0].mxu0
      %v2562 = vadd.f32 0.0, %v2561
      %v2563 = vpop.f32.mrb[0].mxu0
      %2564 = vmatprep.mubr.f32.mxu0 0.0
      %2565 = vmatmul.mubr.f32.gmra.mrb[0].mxu0 %v1676
      %v2566 = vpop.f32.mrb[0].mxu0
      %v2567 = vadd.f32 0.0, %v2566
      %v2568 = vpop.f32.mrb[0].mxu0
      %2569 = vmatprep.mubr.f32.mxu0 0.0
      %2570 = vmatmul.mubr.f32.gmra.mrb[0].mxu0 %v1679
      %v2571 = vpop.f32.mrb[0].mxu0
      %v2572 = vadd.f32 0.0, %v2571
      %v2573 = vpop.f32.mrb[0].mxu0
      %2574 = vmatprep.mubr.f32.mxu0 0.0
      %2575 = vmatmul.mubr.f32.gmra.mrb[0].mxu0 %v1682
      %v2576 = vpop.f32.mrb[0].mxu0
      %v2577 = vadd.f32 0.0, %v2576
      %v2578 = vpop.f32.mrb[0].mxu0
      %2579 = vmatprep.mubr.f32.mxu0 0.0
      %2580 = vmatmul.mubr.f32.gmra.mrb[0].mxu0 %v1685
      %v2581 = vpop.f32.mrb[0].mxu0
      %v2582 = vadd.f32 0.0, %v2581
      %v2583 = vpop.f32.mrb[0].mxu0
      %2584 = vmatprep.mubr.f32.mxu0 0.0
      %2585 = vmatmul.mubr.f32.gmra.mrb[0].mxu0 %v1688
      %v2586 = vpop.f32.mrb[0].mxu0
      %v2587 = vadd.f32 0.0, %v2586
      %v2588 = vpop.f32.mrb[0].mxu0
      %2589 = vmatprep.mubr.f32.mxu0 0.0
      %2590 = vmatmul.mubr.f32.gmra.mrb[0].mxu0 %v1691
      %v2591 = vpop.f32.mrb[0].mxu0
      %v2592 = vadd.f32 0.0, %v2591
      %v2593 = vpop.f32.mrb[0].mxu0
      %2594 = vmatprep.mubr.f32.mxu0 0.0
      %2595 = vmatmul.mubr.f32.gmra.mrb[0].mxu0 %v1694
      %v2596 = vpop.f32.mrb[0].mxu0
      %v2597 = vadd.f32 0.0, %v2596
      %v2598 = vpop.f32.mrb[0].mxu0
      %2599 = vmatprep.mubr.f32.mxu0 0.0
      %2600 = vmatmul.mubr.f32.gmra.mrb[0].mxu0 %v1697
      %v2601 = vpop.f32.mrb[0].mxu0
      %v2602 = vadd.f32 0.0, %v2601
      %v2603 = vpop.f32.mrb[0].mxu0
      %2604 = vmatprep.mubr.f32.mxu0 0.0
      %2605 = vmatmul.mubr.f32.gmra.mrb[0].mxu0 %v1700
      %v2606 = vpop.f32.mrb[0].mxu0
      %v2607 = vadd.f32 0.0, %v2606
      %v2608 = vpop.f32.mrb[0].mxu0
      %2609 = vmatprep.mubr.f32.mxu0 0.0
      %2610 = vmatmul.mubr.f32.gmra.mrb[0].mxu0 %v1703
      %v2611 = vpop.f32.mrb[0].mxu0
      %v2612 = vadd.f32 0.0, %v2611
      %v2613 = vpop.f32.mrb[0].mxu0
      %2614 = vmatprep.mubr.f32.mxu0 0.0
      %2615 = vmatmul.mubr.f32.gmra.mrb[0].mxu0 %v1706
      %v2616 = vpop.f32.mrb[0].mxu0
      %v2617 = vadd.f32 0.0, %v2616
      %v2618 = vpop.f32.mrb[0].mxu0
      %2619 = vmatprep.mubr.f32.mxu0 0.0
      %2620 = vmatmul.mubr.f32.gmra.mrb[0].mxu0 %v1709
      %v2621 = vpop.f32.mrb[0].mxu0
      %v2622 = vadd.f32 0.0, %v2621
      %v2623 = vpop.f32.mrb[0].mxu0
      %2624 = vmatprep.mubr.f32.mxu0 0.0
      %2625 = vmatmul.mubr.f32.gmra.mrb[0].mxu0 %v1712
      %v2626 = vpop.f32.mrb[0].mxu0
      %v2627 = vadd.f32 0.0, %v2626
      %v2628 = vpop.f32.mrb[0].mxu0
      %2629 = vmatprep.mubr.f32.mxu0 0.0
      %2630 = vmatmul.mubr.f32.gmra.mrb[0].mxu0 %v1715
      %v2631 = vpop.f32.mrb[0].mxu0
      %v2632 = vadd.f32 0.0, %v2631
      %v2633 = vpop.f32.mrb[0].mxu0
      %2634 = vmatprep.mubr.f32.mxu0 0.0
      %2635 = vmatmul.mubr.f32.gmra.mrb[0].mxu0 %v1718
      %v2636 = vpop.f32.mrb[0].mxu0
      %v2637 = vadd.f32 0.0, %v2636
      %v2638 = vpop.f32.mrb[0].mxu0
      %2639 = vmatprep.mubr.f32.mxu0 0.0
      %2640 = vmatmul.mubr.f32.gmra.mrb[0].mxu0 %v1721
      %v2641 = vpop.f32.mrb[0].mxu0
      %v2642 = vadd.f32 0.0, %v2641
      %v2643 = vpop.f32.mrb[0].mxu0
      %2644 = vmatprep.mubr.f32.mxu0 0.0
      %2645 = vmatmul.mubr.f32.gmra.mrb[0].mxu0 %v1724
      %v2646 = vpop.f32.mrb[0].mxu0
      %v2647 = vadd.f32 0.0, %v2646
      %v2648 = vpop.f32.mrb[0].mxu0
      %2649 = vmatprep.mubr.f32.mxu0 0.0
      %2650 = vmatmul.mubr.f32.gmra.mrb[0].mxu0 %v1727
      %v2651 = vpop.f32.mrb[0].mxu0
      %v2652 = vadd.f32 0.0, %v2651
      %v2653 = vpop.f32.mrb[0].mxu0
      %2654 = vmatprep.mubr.f32.mxu0 0.0
      %2655 = vmatmul.mubr.f32.gmra.mrb[0].mxu0 %v1730
      %v2656 = vpop.f32.mrb[0].mxu0
      %v2657 = vadd.f32 0.0, %v2656
      %v2658 = vpop.f32.mrb[0].mxu0
      %2659 = vmatprep.mubr.f32.mxu0 0.0
      %2660 = vmatmul.mubr.f32.gmra.mrb[0].mxu0 %v1733
      %v2661 = vpop.f32.mrb[0].mxu0
      %v2662 = vadd.f32 0.0, %v2661
      %v2663 = vpop.f32.mrb[0].mxu0
      %2664 = vmatprep.mubr.f32.mxu0 0.0
      %2665 = vmatmul.mubr.f32.gmra.mrb[0].mxu0 %v1736
      %v2666 = vpop.f32.mrb[0].mxu0
      %v2667 = vadd.f32 0.0, %v2666
      %v2668 = vpop.f32.mrb[0].mxu0
      %2669 = vmatprep.mubr.f32.mxu0 0.0
      %2670 = vmatmul.mubr.f32.gmra.mrb[0].mxu0 %v1739
      %v2671 = vpop.f32.mrb[0].mxu0
      %v2672 = vadd.f32 0.0, %v2671
      %v2673 = vpop.f32.mrb[0].mxu0
      %2674 = vmatprep.mubr.f32.mxu0 0.0
      %2675 = vmatmul.mubr.f32.gmra.mrb[0].mxu0 %v1742
      %v2676 = vpop.f32.mrb[0].mxu0
      %v2677 = vadd.f32 0.0, %v2676
      %v2678 = vpop.f32.mrb[0].mxu0
      %2679 = vmatprep.mubr.f32.mxu0 0.0
      %2680 = vmatmul.mubr.f32.gmra.mrb[0].mxu0 %v1745
      %v2681 = vpop.f32.mrb[0].mxu0
      %v2682 = vadd.f32 0.0, %v2681
      %v2683 = vpop.f32.mrb[0].mxu0
      %2684 = vmatprep.mubr.f32.mxu0 0.0
      %2685 = vmatmul.mubr.f32.gmra.mrb[0].mxu0 %v1748
      %v2686 = vpop.f32.mrb[0].mxu0
      %v2687 = vadd.f32 0.0, %v2686
      %v2688 = vpop.f32.mrb[0].mxu0
      %2689 = vmatprep.mubr.f32.mxu0 0.0
      %2690 = vmatmul.mubr.f32.gmra.mrb[0].mxu0 %v1751
      %v2691 = vpop.f32.mrb[0].mxu0
      %v2692 = vadd.f32 0.0, %v2691
      %v2693 = vpop.f32.mrb[0].mxu0
      %2694 = vmatprep.mubr.f32.mxu0 0.0
      %2695 = vmatmul.mubr.f32.gmra.mrb[0].mxu0 %v1754
      %v2696 = vpop.f32.mrb[0].mxu0
      %v2697 = vadd.f32 0.0, %v2696
      %v2698 = vpop.f32.mrb[0].mxu0
      %2699 = vmatprep.mubr.f32.mxu0 0.0
      %2700 = vmatmul.mubr.f32.gmra.mrb[0].mxu0 %v2477
      %v2701 = vpop.f32.mrb[0].mxu0
      %v2702 = vadd.f32 0.0, %v2701
      %v2703 = vpop.f32.mrb[0].mxu0
      %2704 = vmatprep.mubr.f32.mxu0 0.0
      %2705 = vmatmul.mubr.f32.gmra.mrb[0].mxu0 %v2480
      %v2706 = vpop.f32.mrb[0].mxu0
      %v2707 = vadd.f32 0.0, %v2706
      %v2708 = vpop.f32.mrb[0].mxu0
      %2709 = vdwg.mxu0
      %v2710 = vadd.f32 %v2442, %v2552
      %v2711 = vadd.f32 %v2443, %v2557
      %v2712 = vadd.f32 %v2444, %v2562
      %v2713 = vadd.f32 %v2445, %v2567
      %v2714 = vadd.f32 %v2446, %v2572
      %v2715 = vadd.f32 %v2447, %v2577
      %v2716 = vadd.f32 %v2448, %v2582
      %v2717 = vadd.f32 %v2449, %v2587
      %v2718 = vadd.f32 %v2450, %v2592
      %v2719 = vadd.f32 %v2451, %v2597
      %v2720 = vadd.f32 %v2452, %v2602
      %v2721 = vadd.f32 %v2453, %v2607
      %v2722 = vadd.f32 %v2454, %v2612
      %v2723 = vadd.f32 %v2455, %v2617
      %v2724 = vadd.f32 %v2456, %v2622
      %v2725 = vadd.f32 %v2457, %v2627
      %v2726 = vadd.f32 %v2458, %v2632
      %v2727 = vadd.f32 %v2459, %v2637
      %v2728 = vadd.f32 %v2460, %v2642
      %v2729 = vadd.f32 %v2461, %v2647
      %v2730 = vadd.f32 %v2462, %v2652
      %v2731 = vadd.f32 %v2463, %v2657
      %v2732 = vadd.f32 %v2464, %v2662
      %v2733 = vadd.f32 %v2465, %v2667
      %v2734 = vadd.f32 %v2466, %v2672
      %v2735 = vadd.f32 %v2467, %v2677
      %v2736 = vadd.f32 %v2468, %v2682
      %v2737 = vadd.f32 %v2469, %v2687
      %v2738 = vadd.f32 %v2470, %v2692
      %v2739 = vadd.f32 %v2471, %v2697
      %v2740 = vadd.f32 %v2472, %v2702
      %v2741 = vadd.f32 %v2473, %v2707
      %v2742 = vadd.f32 %v2710, %v1622
      %v2743 = vadd.f32 %v2711, %v1622
      %v2744 = vadd.f32 %v2712, %v1622
      %v2745 = vadd.f32 %v2713, %v1622
      %v2746 = vadd.f32 %v2714, %v1622
      %v2747 = vadd.f32 %v2715, %v1622
      %v2748 = vadd.f32 %v2716, %v1622
      %v2749 = vadd.f32 %v2717, %v1622
      %v2750 = vadd.f32 %v2718, %v1622
      %v2751 = vadd.f32 %v2719, %v1622
      %v2752 = vadd.f32 %v2720, %v1622
      %v2753 = vadd.f32 %v2721, %v1622
      %v2754 = vadd.f32 %v2722, %v1622
      %v2755 = vadd.f32 %v2723, %v1622
      %v2756 = vadd.f32 %v2724, %v1622
      %v2757 = vadd.f32 %v2725, %v1622
      %v2758 = vadd.f32 %v2726, %v1622
      %v2759 = vadd.f32 %v2727, %v1622
      %v2760 = vadd.f32 %v2728, %v1622
      %v2761 = vadd.f32 %v2729, %v1622
      %v2762 = vadd.f32 %v2730, %v1622
      %v2763 = vadd.f32 %v2731, %v1622
      %v2764 = vadd.f32 %v2732, %v1622
      %v2765 = vadd.f32 %v2733, %v1622
      %v2766 = vadd.f32 %v2734, %v1622
      %v2767 = vadd.f32 %v2735, %v1622
      %v2768 = vadd.f32 %v2736, %v1622
      %v2769 = vadd.f32 %v2737, %v1622
      %v2770 = vadd.f32 %v2738, %v1622
      %v2771 = vadd.f32 %v2739, %v1622
      %v2772 = vadd.f32 %v2740, %v1622
      %v2773 = vadd.f32 %v2741, %v1622
      %2806 = vrot.lane.b32.xlu0 %v2742, 4
      %v2807 = vpop.permute.xlu0 %2806
      %2808 = vrot.lane.b32.xlu0 %v2743, 4
      %v2809 = vpop.permute.xlu0 %2808
      %2810 = vrot.lane.b32.xlu0 %v2744, 4
      %v2811 = vpop.permute.xlu0 %2810
      %2812 = vrot.lane.b32.xlu0 %v2745, 4
      %v2813 = vpop.permute.xlu0 %2812
      %2814 = vrot.lane.b32.xlu0 %v2746, 4
      %v2815 = vpop.permute.xlu0 %2814
      %2816 = vrot.lane.b32.xlu0 %v2747, 4
      %v2817 = vpop.permute.xlu0 %2816
      %2818 = vrot.lane.b32.xlu0 %v2748, 4
      %v2819 = vpop.permute.xlu0 %2818
      %2820 = vrot.lane.b32.xlu0 %v2749, 4
      %v2821 = vpop.permute.xlu0 %2820
      %2822 = vrot.lane.b32.xlu0 %v2750, 4
      %v2823 = vpop.permute.xlu0 %2822
      %2824 = vrot.lane.b32.xlu0 %v2751, 4
      %v2825 = vpop.permute.xlu0 %2824
      %2826 = vrot.lane.b32.xlu0 %v2752, 4
      %v2827 = vpop.permute.xlu0 %2826
      %2828 = vrot.lane.b32.xlu0 %v2753, 4
      %v2829 = vpop.permute.xlu0 %2828
      %2830 = vrot.lane.b32.xlu0 %v2754, 4
      %v2831 = vpop.permute.xlu0 %2830
      %2832 = vrot.lane.b32.xlu0 %v2755, 4
      %v2833 = vpop.permute.xlu0 %2832
      %2834 = vrot.lane.b32.xlu0 %v2756, 4
      %v2835 = vpop.permute.xlu0 %2834
      %2836 = vrot.lane.b32.xlu0 %v2757, 4
      %v2837 = vpop.permute.xlu0 %2836
      %2838 = vrot.lane.b32.xlu0 %v2758, 4
      %v2839 = vpop.permute.xlu0 %2838
      %2840 = vrot.lane.b32.xlu0 %v2759, 4
      %v2841 = vpop.permute.xlu0 %2840
      %2842 = vrot.lane.b32.xlu0 %v2760, 4
      %v2843 = vpop.permute.xlu0 %2842
      %2844 = vrot.lane.b32.xlu0 %v2761, 4
      %v2845 = vpop.permute.xlu0 %2844
      %2846 = vrot.lane.b32.xlu0 %v2762, 4
      %v2847 = vpop.permute.xlu0 %2846
      %2848 = vrot.lane.b32.xlu0 %v2763, 4
      %v2849 = vpop.permute.xlu0 %2848
      %2850 = vrot.lane.b32.xlu0 %v2764, 4
      %v2851 = vpop.permute.xlu0 %2850
      %2852 = vrot.lane.b32.xlu0 %v2765, 4
      %v2853 = vpop.permute.xlu0 %2852
      %2854 = vrot.lane.b32.xlu0 %v2766, 4
      %v2855 = vpop.permute.xlu0 %2854
      %2856 = vrot.lane.b32.xlu0 %v2767, 4
      %v2857 = vpop.permute.xlu0 %2856
      %2858 = vrot.lane.b32.xlu0 %v2768, 4
      %v2859 = vpop.permute.xlu0 %2858
      %2860 = vrot.lane.b32.xlu0 %v2769, 4
      %v2861 = vpop.permute.xlu0 %2860
      %2862 = vrot.lane.b32.xlu0 %v2770, 4
      %v2863 = vpop.permute.xlu0 %2862
      %2864 = vrot.lane.b32.xlu0 %v2771, 4
      %v2865 = vpop.permute.xlu0 %2864
      %2866 = vrot.lane.b32.xlu0 %v2772, 4
      %v2867 = vpop.permute.xlu0 %2866
      %2868 = vrot.lane.b32.xlu0 %v2773, 4
      %v2869 = vpop.permute.xlu0 %2868
      %v2902 = vsel %vm432, %v1624, %v2807
      %v2903 = vsel %vm432, %v1625, %v2809
      %v2904 = vsel %vm432, %v1626, %v2811
      %v2905 = vsel %vm432, %v1627, %v2813
      %v2906 = vsel %vm432, %v1628, %v2815
      %v2907 = vsel %vm432, %v1629, %v2817
      %v2908 = vsel %vm432, %v1630, %v2819
      %v2909 = vsel %vm432, %v1631, %v2821
      %v2910 = vsel %vm432, %v1632, %v2823
      %v2911 = vsel %vm432, %v1633, %v2825
      %v2912 = vsel %vm432, %v1634, %v2827
      %v2913 = vsel %vm432, %v1635, %v2829
      %v2914 = vsel %vm432, %v1636, %v2831
      %v2915 = vsel %vm432, %v1637, %v2833
      %v2916 = vsel %vm432, %v1638, %v2835
      %v2917 = vsel %vm432, %v1639, %v2837
      %v2918 = vsel %vm432, %v1640, %v2839
      %v2919 = vsel %vm432, %v1641, %v2841
      %v2920 = vsel %vm432, %v1642, %v2843
      %v2921 = vsel %vm432, %v1643, %v2845
      %v2922 = vsel %vm432, %v1644, %v2847
      %v2923 = vsel %vm432, %v1645, %v2849
      %v2924 = vsel %vm432, %v1646, %v2851
      %v2925 = vsel %vm432, %v1647, %v2853
      %v2926 = vsel %vm432, %v1648, %v2855
      %v2927 = vsel %vm432, %v1649, %v2857
      %v2928 = vsel %vm432, %v1650, %v2859
      %v2929 = vsel %vm432, %v1651, %v2861
      %v2930 = vsel %vm432, %v1652, %v2863
      %v2931 = vsel %vm432, %v1653, %v2865
      %v2932 = vsel %vm432, %v1654, %v2867
      %v2933 = vsel %vm432, %v1655, %v2869
      %vm2934 = vcmask 64512
      %2935 = vst.msk [vmem:[%s318] sm:$0xff] %vm2934, %v2902
      %2936 = vst.msk [vmem:[%s318 + $0x8] sm:$0xff] %vm2934, %v2903
      %2937 = vst.msk [vmem:[%s318 + $0x20] sm:$0xff] %vm2934, %v2904
      %2938 = vst.msk [vmem:[%s318 + $0x28] sm:$0xff] %vm2934, %v2905
      %2939 = vst.msk [vmem:[%s318 + $0x40] sm:$0xff] %vm2934, %v2906
      %2940 = vst.msk [vmem:[%s318 + $0x48] sm:$0xff] %vm2934, %v2907
      %2941 = vst.msk [vmem:[%s318 + $0x60] sm:$0xff] %vm2934, %v2908
      %2942 = vst.msk [vmem:[%s318 + $0x68] sm:$0xff] %vm2934, %v2909
      %2943 = vst.msk [vmem:[%s318 + $0x80] sm:$0xff] %vm2934, %v2910
      %2944 = vst.msk [vmem:[%s318 + $0x88] sm:$0xff] %vm2934, %v2911
      %2945 = vst.msk [vmem:[%s318 + $0xa0] sm:$0xff] %vm2934, %v2912
      %2946 = vst.msk [vmem:[%s318 + $0xa8] sm:$0xff] %vm2934, %v2913
      %2947 = vst.msk [vmem:[%s318 + $0xc0] sm:$0xff] %vm2934, %v2914
      %2948 = vst.msk [vmem:[%s318 + $0xc8] sm:$0xff] %vm2934, %v2915
      %2949 = vst.msk [vmem:[%s318 + $0xe0] sm:$0xff] %vm2934, %v2916
      %2950 = vst.msk [vmem:[%s318 + $0xe8] sm:$0xff] %vm2934, %v2917
      %2951 = vst.msk [vmem:[%s318 + $0x100] sm:$0xff] %vm2934, %v2918
      %2952 = vst.msk [vmem:[%s318 + $0x108] sm:$0xff] %vm2934, %v2919
      %2953 = vst.msk [vmem:[%s318 + $0x120] sm:$0xff] %vm2934, %v2920
      %2954 = vst.msk [vmem:[%s318 + $0x128] sm:$0xff] %vm2934, %v2921
      %2955 = vst.msk [vmem:[%s318 + $0x140] sm:$0xff] %vm2934, %v2922
      %2956 = vst.msk [vmem:[%s318 + $0x148] sm:$0xff] %vm2934, %v2923
      %2957 = vst.msk [vmem:[%s318 + $0x160] sm:$0xff] %vm2934, %v2924
      %2958 = vst.msk [vmem:[%s318 + $0x168] sm:$0xff] %vm2934, %v2925
      %2959 = vst.msk [vmem:[%s318 + $0x180] sm:$0xff] %vm2934, %v2926
      %2960 = vst.msk [vmem:[%s318 + $0x188] sm:$0xff] %vm2934, %v2927
      %2961 = vst.msk [vmem:[%s318 + $0x1a0] sm:$0xff] %vm2934, %v2928
      %2962 = vst.msk [vmem:[%s318 + $0x1a8] sm:$0xff] %vm2934, %v2929
      %2963 = vst.msk [vmem:[%s318 + $0x1c0] sm:$0xff] %vm2934, %v2930
      %2964 = vst.msk [vmem:[%s318 + $0x1c8] sm:$0xff] %vm2934, %v2931
      %2965 = vst.msk [vmem:[%s318 + $0x1e0] sm:$0xff] %vm2934, %v2932
      %2966 = vst.msk [vmem:[%s318 + $0x1e8] sm:$0xff] %vm2934, %v2933
      %s2967 = scalar_lea.vmem %s2, 32
      %v2968 = vld [vmem:[%s2967] sm:$0xf]
      %s2969 = scalar_lea.vmem %s2, 36
      %v2970 = vld [vmem:[%s2969] sm:$0xf]
      %v2972 = vsel %vm529, %v2970, 0
      %2974 = vmatprep.subr.mxu0 0.0
      %2975 = vmatpush1.msra.mxu0 %v2972
      %2976 = vmatprep.subr.mxu0 0.0
      %2977 = vmatpush1.msra.mxu0 0.0
      %2978 = vmatprep.subr.mxu0 0.0
      %2979 = vmatpush1.msra.mxu0 0.0
      %2980 = vmatprep.subr.mxu0 0.0
      %2981 = vmatpush1.msra.mxu0 0.0
      %2982 = vmatprep.subr.mxu0 0.0
      %2983 = vmatpush1.msra.mxu0 0.0
      %2984 = vmatprep.subr.mxu0 0.0
      %2985 = vmatpush1.msra.mxu0 0.0
      %2986 = vmatprep.subr.mxu0 0.0
      %2987 = vmatpush1.msra.mxu0 0.0
      %2988 = vmatprep.subr.mxu0 0.0
      %2989 = vmatpush1.msra.mxu0 0.0
      %2990 = vmatprep.subr.mxu0 0.0
      %2991 = vmatpush1.msra.mxu0 0.0
      %2992 = vmatprep.subr.mxu0 0.0
      %2993 = vmatpush1.msra.mxu0 0.0
      %2994 = vmatprep.subr.mxu0 0.0
      %2995 = vmatpush1.msra.mxu0 0.0
      %2996 = vmatprep.subr.mxu0 0.0
      %2997 = vmatpush1.msra.mxu0 0.0
      %2998 = vmatprep.subr.mxu0 0.0
      %2999 = vmatpush1.msra.mxu0 0.0
      %3000 = vmatprep.subr.mxu0 0.0
      %3001 = vmatpush1.msra.mxu0 0.0
      %3002 = vmatprep.subr.mxu0 0.0
      %3003 = vmatpush1.msra.mxu0 0.0
      %3004 = vmatprep.subr.mxu0 0.0
      %3005 = vmatpush1.msra.mxu0 0.0
      %3006 = vmatprep.subr.mxu0 0.0
      %3007 = vmatpush1.msra.mxu0 0.0
      %3008 = vmatprep.subr.mxu0 0.0
      %3009 = vmatpush1.msra.mxu0 0.0
      %3010 = vmatprep.subr.mxu0 0.0
      %3011 = vmatpush1.msra.mxu0 0.0
      %3012 = vmatprep.subr.mxu0 0.0
      %3013 = vmatpush1.msra.mxu0 0.0
      %3014 = vmatprep.subr.mxu0 0.0
      %3015 = vmatpush1.msra.mxu0 0.0
      %3016 = vmatprep.subr.mxu0 0.0
      %3017 = vmatpush1.msra.mxu0 0.0
      %3018 = vmatprep.subr.mxu0 0.0
      %3019 = vmatpush1.msra.mxu0 0.0
      %3020 = vmatprep.subr.mxu0 0.0
      %3021 = vmatpush1.msra.mxu0 0.0
      %3022 = vmatprep.subr.mxu0 0.0
      %3023 = vmatpush1.msra.mxu0 0.0
      %3024 = vmatprep.subr.mxu0 0.0
      %3025 = vmatpush1.msra.mxu0 0.0
      %3026 = vmatprep.subr.mxu0 0.0
      %3027 = vmatpush1.msra.mxu0 0.0
      %3028 = vmatprep.subr.mxu0 0.0
      %3029 = vmatpush1.msra.mxu0 0.0
      %3030 = vmatprep.subr.mxu0 0.0
      %3031 = vmatpush1.msra.mxu0 0.0
      %3032 = vmatprep.subr.mxu0 0.0
      %3033 = vmatpush1.msra.mxu0 0.0
      %3034 = vmatprep.subr.mxu0 0.0
      %3035 = vmatpush1.msra.mxu0 0.0
      %3036 = vmatprep.subr.mxu0 0.0
      %3037 = vmatpush1.msra.mxu0 0.0
      %3038 = vmatprep.mubr.f32.mxu0 0.0
      %3039 = vmatmul.mubr.f32.gmra.mrb[0].mxu0 %v440
      %v3040 = vpop.f32.mrb[0].mxu0
      %v3041 = vadd.f32 0.0, %v3040
      %v3042 = vpop.f32.mrb[0].mxu0
      %3043 = vmatprep.mubr.f32.mxu0 0.0
      %3044 = vmatmul.mubr.f32.gmra.mrb[0].mxu0 %v443
      %v3045 = vpop.f32.mrb[0].mxu0
      %v3046 = vadd.f32 0.0, %v3045
      %v3047 = vpop.f32.mrb[0].mxu0
      %3048 = vmatprep.mubr.f32.mxu0 0.0
      %3049 = vmatmul.mubr.f32.gmra.mrb[0].mxu0 %v446
      %v3050 = vpop.f32.mrb[0].mxu0
      %v3051 = vadd.f32 0.0, %v3050
      %v3052 = vpop.f32.mrb[0].mxu0
      %3053 = vmatprep.mubr.f32.mxu0 0.0
      %3054 = vmatmul.mubr.f32.gmra.mrb[0].mxu0 %v449
      %v3055 = vpop.f32.mrb[0].mxu0
      %v3056 = vadd.f32 0.0, %v3055
      %v3057 = vpop.f32.mrb[0].mxu0
      %3058 = vmatprep.mubr.f32.mxu0 0.0
      %3059 = vmatmul.mubr.f32.gmra.mrb[0].mxu0 %v452
      %v3060 = vpop.f32.mrb[0].mxu0
      %v3061 = vadd.f32 0.0, %v3060
      %v3062 = vpop.f32.mrb[0].mxu0
      %3063 = vmatprep.mubr.f32.mxu0 0.0
      %3064 = vmatmul.mubr.f32.gmra.mrb[0].mxu0 %v455
      %v3065 = vpop.f32.mrb[0].mxu0
      %v3066 = vadd.f32 0.0, %v3065
      %v3067 = vpop.f32.mrb[0].mxu0
      %3068 = vmatprep.mubr.f32.mxu0 0.0
      %3069 = vmatmul.mubr.f32.gmra.mrb[0].mxu0 %v458
      %v3070 = vpop.f32.mrb[0].mxu0
      %v3071 = vadd.f32 0.0, %v3070
      %v3072 = vpop.f32.mrb[0].mxu0
      %3073 = vmatprep.mubr.f32.mxu0 0.0
      %3074 = vmatmul.mubr.f32.gmra.mrb[0].mxu0 %v461
      %v3075 = vpop.f32.mrb[0].mxu0
      %v3076 = vadd.f32 0.0, %v3075
      %v3077 = vpop.f32.mrb[0].mxu0
      %3078 = vmatprep.mubr.f32.mxu0 0.0
      %3079 = vmatmul.mubr.f32.gmra.mrb[0].mxu0 %v464
      %v3080 = vpop.f32.mrb[0].mxu0
      %v3081 = vadd.f32 0.0, %v3080
      %v3082 = vpop.f32.mrb[0].mxu0
      %3083 = vmatprep.mubr.f32.mxu0 0.0
      %3084 = vmatmul.mubr.f32.gmra.mrb[0].mxu0 %v467
      %v3085 = vpop.f32.mrb[0].mxu0
      %v3086 = vadd.f32 0.0, %v3085
      %v3087 = vpop.f32.mrb[0].mxu0
      %3088 = vmatprep.mubr.f32.mxu0 0.0
      %3089 = vmatmul.mubr.f32.gmra.mrb[0].mxu0 %v470
      %v3090 = vpop.f32.mrb[0].mxu0
      %v3091 = vadd.f32 0.0, %v3090
      %v3092 = vpop.f32.mrb[0].mxu0
      %3093 = vmatprep.mubr.f32.mxu0 0.0
      %3094 = vmatmul.mubr.f32.gmra.mrb[0].mxu0 %v473
      %v3095 = vpop.f32.mrb[0].mxu0
      %v3096 = vadd.f32 0.0, %v3095
      %v3097 = vpop.f32.mrb[0].mxu0
      %3098 = vmatprep.mubr.f32.mxu0 0.0
      %3099 = vmatmul.mubr.f32.gmra.mrb[0].mxu0 %v476
      %v3100 = vpop.f32.mrb[0].mxu0
      %v3101 = vadd.f32 0.0, %v3100
      %v3102 = vpop.f32.mrb[0].mxu0
      %3103 = vmatprep.mubr.f32.mxu0 0.0
      %3104 = vmatmul.mubr.f32.gmra.mrb[0].mxu0 %v479
      %v3105 = vpop.f32.mrb[0].mxu0
      %v3106 = vadd.f32 0.0, %v3105
      %v3107 = vpop.f32.mrb[0].mxu0
      %3108 = vmatprep.mubr.f32.mxu0 0.0
      %3109 = vmatmul.mubr.f32.gmra.mrb[0].mxu0 %v482
      %v3110 = vpop.f32.mrb[0].mxu0
      %v3111 = vadd.f32 0.0, %v3110
      %v3112 = vpop.f32.mrb[0].mxu0
      %3113 = vmatprep.mubr.f32.mxu0 0.0
      %3114 = vmatmul.mubr.f32.gmra.mrb[0].mxu0 %v485
      %v3115 = vpop.f32.mrb[0].mxu0
      %v3116 = vadd.f32 0.0, %v3115
      %v3117 = vpop.f32.mrb[0].mxu0
      %3118 = vmatprep.mubr.f32.mxu0 0.0
      %3119 = vmatmul.mubr.f32.gmra.mrb[0].mxu0 %v488
      %v3120 = vpop.f32.mrb[0].mxu0
      %v3121 = vadd.f32 0.0, %v3120
      %v3122 = vpop.f32.mrb[0].mxu0
      %3123 = vmatprep.mubr.f32.mxu0 0.0
      %3124 = vmatmul.mubr.f32.gmra.mrb[0].mxu0 %v491
      %v3125 = vpop.f32.mrb[0].mxu0
      %v3126 = vadd.f32 0.0, %v3125
      %v3127 = vpop.f32.mrb[0].mxu0
      %3128 = vmatprep.mubr.f32.mxu0 0.0
      %3129 = vmatmul.mubr.f32.gmra.mrb[0].mxu0 %v494
      %v3130 = vpop.f32.mrb[0].mxu0
      %v3131 = vadd.f32 0.0, %v3130
      %v3132 = vpop.f32.mrb[0].mxu0
      %3133 = vmatprep.mubr.f32.mxu0 0.0
      %3134 = vmatmul.mubr.f32.gmra.mrb[0].mxu0 %v497
      %v3135 = vpop.f32.mrb[0].mxu0
      %v3136 = vadd.f32 0.0, %v3135
      %v3137 = vpop.f32.mrb[0].mxu0
      %3138 = vmatprep.mubr.f32.mxu0 0.0
      %3139 = vmatmul.mubr.f32.gmra.mrb[0].mxu0 %v500
      %v3140 = vpop.f32.mrb[0].mxu0
      %v3141 = vadd.f32 0.0, %v3140
      %v3142 = vpop.f32.mrb[0].mxu0
      %3143 = vmatprep.mubr.f32.mxu0 0.0
      %3144 = vmatmul.mubr.f32.gmra.mrb[0].mxu0 %v503
      %v3145 = vpop.f32.mrb[0].mxu0
      %v3146 = vadd.f32 0.0, %v3145
      %v3147 = vpop.f32.mrb[0].mxu0
      %3148 = vmatprep.mubr.f32.mxu0 0.0
      %3149 = vmatmul.mubr.f32.gmra.mrb[0].mxu0 %v506
      %v3150 = vpop.f32.mrb[0].mxu0
      %v3151 = vadd.f32 0.0, %v3150
      %v3152 = vpop.f32.mrb[0].mxu0
      %3153 = vmatprep.mubr.f32.mxu0 0.0
      %3154 = vmatmul.mubr.f32.gmra.mrb[0].mxu0 %v509
      %v3155 = vpop.f32.mrb[0].mxu0
      %v3156 = vadd.f32 0.0, %v3155
      %v3157 = vpop.f32.mrb[0].mxu0
      %3158 = vmatprep.mubr.f32.mxu0 0.0
      %3159 = vmatmul.mubr.f32.gmra.mrb[0].mxu0 %v512
      %v3160 = vpop.f32.mrb[0].mxu0
      %v3161 = vadd.f32 0.0, %v3160
      %v3162 = vpop.f32.mrb[0].mxu0
      %3163 = vmatprep.mubr.f32.mxu0 0.0
      %3164 = vmatmul.mubr.f32.gmra.mrb[0].mxu0 %v515
      %v3165 = vpop.f32.mrb[0].mxu0
      %v3166 = vadd.f32 0.0, %v3165
      %v3167 = vpop.f32.mrb[0].mxu0
      %3168 = vmatprep.mubr.f32.mxu0 0.0
      %3169 = vmatmul.mubr.f32.gmra.mrb[0].mxu0 %v518
      %v3170 = vpop.f32.mrb[0].mxu0
      %v3171 = vadd.f32 0.0, %v3170
      %v3172 = vpop.f32.mrb[0].mxu0
      %3173 = vmatprep.mubr.f32.mxu0 0.0
      %3174 = vmatmul.mubr.f32.gmra.mrb[0].mxu0 %v521
      %v3175 = vpop.f32.mrb[0].mxu0
      %v3176 = vadd.f32 0.0, %v3175
      %v3177 = vpop.f32.mrb[0].mxu0
      %3178 = vmatprep.mubr.f32.mxu0 0.0
      %3179 = vmatmul.mubr.f32.gmra.mrb[0].mxu0 %v524
      %v3180 = vpop.f32.mrb[0].mxu0
      %v3181 = vadd.f32 0.0, %v3180
      %v3182 = vpop.f32.mrb[0].mxu0
      %3183 = vmatprep.mubr.f32.mxu0 0.0
      %3184 = vmatmul.mubr.f32.gmra.mrb[0].mxu0 %v527
      %v3185 = vpop.f32.mrb[0].mxu0
      %v3186 = vadd.f32 0.0, %v3185
      %v3187 = vpop.f32.mrb[0].mxu0
      %3188 = vmatprep.mubr.f32.mxu0 0.0
      %3189 = vmatmul.mubr.f32.gmra.mrb[0].mxu0 %v1353
      %v3190 = vpop.f32.mrb[0].mxu0
      %v3191 = vadd.f32 0.0, %v3190
      %v3192 = vpop.f32.mrb[0].mxu0
      %3193 = vmatprep.mubr.f32.mxu0 0.0
      %3194 = vmatmul.mubr.f32.gmra.mrb[0].mxu0 %v1356
      %v3195 = vpop.f32.mrb[0].mxu0
      %v3196 = vadd.f32 0.0, %v3195
      %v3197 = vpop.f32.mrb[0].mxu0
      %3198 = vdwg.mxu0
      %v3200 = vsel %vm529, %v2968, 0
      %3202 = vmatprep.subr.mxu0 0.0
      %3203 = vmatpush1.msra.mxu0 %v3200
      %3204 = vmatprep.subr.mxu0 0.0
      %3205 = vmatpush1.msra.mxu0 0.0
      %3206 = vmatprep.subr.mxu0 0.0
      %3207 = vmatpush1.msra.mxu0 0.0
      %3208 = vmatprep.subr.mxu0 0.0
      %3209 = vmatpush1.msra.mxu0 0.0
      %3210 = vmatprep.subr.mxu0 0.0
      %3211 = vmatpush1.msra.mxu0 0.0
      %3212 = vmatprep.subr.mxu0 0.0
      %3213 = vmatpush1.msra.mxu0 0.0
      %3214 = vmatprep.subr.mxu0 0.0
      %3215 = vmatpush1.msra.mxu0 0.0
      %3216 = vmatprep.subr.mxu0 0.0
      %3217 = vmatpush1.msra.mxu0 0.0
      %3218 = vmatprep.subr.mxu0 0.0
      %3219 = vmatpush1.msra.mxu0 0.0
      %3220 = vmatprep.subr.mxu0 0.0
      %3221 = vmatpush1.msra.mxu0 0.0
      %3222 = vmatprep.subr.mxu0 0.0
      %3223 = vmatpush1.msra.mxu0 0.0
      %3224 = vmatprep.subr.mxu0 0.0
      %3225 = vmatpush1.msra.mxu0 0.0
      %3226 = vmatprep.subr.mxu0 0.0
      %3227 = vmatpush1.msra.mxu0 0.0
      %3228 = vmatprep.subr.mxu0 0.0
      %3229 = vmatpush1.msra.mxu0 0.0
      %3230 = vmatprep.subr.mxu0 0.0
      %3231 = vmatpush1.msra.mxu0 0.0
      %3232 = vmatprep.subr.mxu0 0.0
      %3233 = vmatpush1.msra.mxu0 0.0
      %3234 = vmatprep.subr.mxu0 0.0
      %3235 = vmatpush1.msra.mxu0 0.0
      %3236 = vmatprep.subr.mxu0 0.0
      %3237 = vmatpush1.msra.mxu0 0.0
      %3238 = vmatprep.subr.mxu0 0.0
      %3239 = vmatpush1.msra.mxu0 0.0
      %3240 = vmatprep.subr.mxu0 0.0
      %3241 = vmatpush1.msra.mxu0 0.0
      %3242 = vmatprep.subr.mxu0 0.0
      %3243 = vmatpush1.msra.mxu0 0.0
      %3244 = vmatprep.subr.mxu0 0.0
      %3245 = vmatpush1.msra.mxu0 0.0
      %3246 = vmatprep.subr.mxu0 0.0
      %3247 = vmatpush1.msra.mxu0 0.0
      %3248 = vmatprep.subr.mxu0 0.0
      %3249 = vmatpush1.msra.mxu0 0.0
      %3250 = vmatprep.subr.mxu0 0.0
      %3251 = vmatpush1.msra.mxu0 0.0
      %3252 = vmatprep.subr.mxu0 0.0
      %3253 = vmatpush1.msra.mxu0 0.0
      %3254 = vmatprep.subr.mxu0 0.0
      %3255 = vmatpush1.msra.mxu0 0.0
      %3256 = vmatprep.subr.mxu0 0.0
      %3257 = vmatpush1.msra.mxu0 0.0
      %3258 = vmatprep.subr.mxu0 0.0
      %3259 = vmatpush1.msra.mxu0 0.0
      %3260 = vmatprep.subr.mxu0 0.0
      %3261 = vmatpush1.msra.mxu0 0.0
      %3262 = vmatprep.subr.mxu0 0.0
      %3263 = vmatpush1.msra.mxu0 0.0
      %3264 = vmatprep.subr.mxu0 0.0
      %3265 = vmatpush1.msra.mxu0 0.0
      %3266 = vmatprep.mubr.f32.mxu0 0.0
      %3267 = vmatmul.mubr.f32.gmra.mrb[0].mxu0 %v765
      %v3268 = vpop.f32.mrb[0].mxu0
      %v3269 = vadd.f32 %v3041, %v3268
      %v3270 = vpop.f32.mrb[0].mxu0
      %3271 = vmatprep.mubr.f32.mxu0 0.0
      %3272 = vmatmul.mubr.f32.gmra.mrb[0].mxu0 %v768
      %v3273 = vpop.f32.mrb[0].mxu0
      %v3274 = vadd.f32 %v3046, %v3273
      %v3275 = vpop.f32.mrb[0].mxu0
      %3276 = vmatprep.mubr.f32.mxu0 0.0
      %3277 = vmatmul.mubr.f32.gmra.mrb[0].mxu0 %v771
      %v3278 = vpop.f32.mrb[0].mxu0
      %v3279 = vadd.f32 %v3051, %v3278
      %v3280 = vpop.f32.mrb[0].mxu0
      %3281 = vmatprep.mubr.f32.mxu0 0.0
      %3282 = vmatmul.mubr.f32.gmra.mrb[0].mxu0 %v774
      %v3283 = vpop.f32.mrb[0].mxu0
      %v3284 = vadd.f32 %v3056, %v3283
      %v3285 = vpop.f32.mrb[0].mxu0
      %3286 = vmatprep.mubr.f32.mxu0 0.0
      %3287 = vmatmul.mubr.f32.gmra.mrb[0].mxu0 %v777
      %v3288 = vpop.f32.mrb[0].mxu0
      %v3289 = vadd.f32 %v3061, %v3288
      %v3290 = vpop.f32.mrb[0].mxu0
      %3291 = vmatprep.mubr.f32.mxu0 0.0
      %3292 = vmatmul.mubr.f32.gmra.mrb[0].mxu0 %v780
      %v3293 = vpop.f32.mrb[0].mxu0
      %v3294 = vadd.f32 %v3066, %v3293
      %v3295 = vpop.f32.mrb[0].mxu0
      %3296 = vmatprep.mubr.f32.mxu0 0.0
      %3297 = vmatmul.mubr.f32.gmra.mrb[0].mxu0 %v783
      %v3298 = vpop.f32.mrb[0].mxu0
      %v3299 = vadd.f32 %v3071, %v3298
      %v3300 = vpop.f32.mrb[0].mxu0
      %3301 = vmatprep.mubr.f32.mxu0 0.0
      %3302 = vmatmul.mubr.f32.gmra.mrb[0].mxu0 %v786
      %v3303 = vpop.f32.mrb[0].mxu0
      %v3304 = vadd.f32 %v3076, %v3303
      %v3305 = vpop.f32.mrb[0].mxu0
      %3306 = vmatprep.mubr.f32.mxu0 0.0
      %3307 = vmatmul.mubr.f32.gmra.mrb[0].mxu0 %v789
      %v3308 = vpop.f32.mrb[0].mxu0
      %v3309 = vadd.f32 %v3081, %v3308
      %v3310 = vpop.f32.mrb[0].mxu0
      %3311 = vmatprep.mubr.f32.mxu0 0.0
      %3312 = vmatmul.mubr.f32.gmra.mrb[0].mxu0 %v792
      %v3313 = vpop.f32.mrb[0].mxu0
      %v3314 = vadd.f32 %v3086, %v3313
      %v3315 = vpop.f32.mrb[0].mxu0
      %3316 = vmatprep.mubr.f32.mxu0 0.0
      %3317 = vmatmul.mubr.f32.gmra.mrb[0].mxu0 %v795
      %v3318 = vpop.f32.mrb[0].mxu0
      %v3319 = vadd.f32 %v3091, %v3318
      %v3320 = vpop.f32.mrb[0].mxu0
      %3321 = vmatprep.mubr.f32.mxu0 0.0
      %3322 = vmatmul.mubr.f32.gmra.mrb[0].mxu0 %v798
      %v3323 = vpop.f32.mrb[0].mxu0
      %v3324 = vadd.f32 %v3096, %v3323
      %v3325 = vpop.f32.mrb[0].mxu0
      %3326 = vmatprep.mubr.f32.mxu0 0.0
      %3327 = vmatmul.mubr.f32.gmra.mrb[0].mxu0 %v801
      %v3328 = vpop.f32.mrb[0].mxu0
      %v3329 = vadd.f32 %v3101, %v3328
      %v3330 = vpop.f32.mrb[0].mxu0
      %3331 = vmatprep.mubr.f32.mxu0 0.0
      %3332 = vmatmul.mubr.f32.gmra.mrb[0].mxu0 %v804
      %v3333 = vpop.f32.mrb[0].mxu0
      %v3334 = vadd.f32 %v3106, %v3333
      %v3335 = vpop.f32.mrb[0].mxu0
      %3336 = vmatprep.mubr.f32.mxu0 0.0
      %3337 = vmatmul.mubr.f32.gmra.mrb[0].mxu0 %v807
      %v3338 = vpop.f32.mrb[0].mxu0
      %v3339 = vadd.f32 %v3111, %v3338
      %v3340 = vpop.f32.mrb[0].mxu0
      %3341 = vmatprep.mubr.f32.mxu0 0.0
      %3342 = vmatmul.mubr.f32.gmra.mrb[0].mxu0 %v810
      %v3343 = vpop.f32.mrb[0].mxu0
      %v3344 = vadd.f32 %v3116, %v3343
      %v3345 = vpop.f32.mrb[0].mxu0
      %3346 = vmatprep.mubr.f32.mxu0 0.0
      %3347 = vmatmul.mubr.f32.gmra.mrb[0].mxu0 %v813
      %v3348 = vpop.f32.mrb[0].mxu0
      %v3349 = vadd.f32 %v3121, %v3348
      %v3350 = vpop.f32.mrb[0].mxu0
      %3351 = vmatprep.mubr.f32.mxu0 0.0
      %3352 = vmatmul.mubr.f32.gmra.mrb[0].mxu0 %v816
      %v3353 = vpop.f32.mrb[0].mxu0
      %v3354 = vadd.f32 %v3126, %v3353
      %v3355 = vpop.f32.mrb[0].mxu0
      %3356 = vmatprep.mubr.f32.mxu0 0.0
      %3357 = vmatmul.mubr.f32.gmra.mrb[0].mxu0 %v819
      %v3358 = vpop.f32.mrb[0].mxu0
      %v3359 = vadd.f32 %v3131, %v3358
      %v3360 = vpop.f32.mrb[0].mxu0
      %3361 = vmatprep.mubr.f32.mxu0 0.0
      %3362 = vmatmul.mubr.f32.gmra.mrb[0].mxu0 %v822
      %v3363 = vpop.f32.mrb[0].mxu0
      %v3364 = vadd.f32 %v3136, %v3363
      %v3365 = vpop.f32.mrb[0].mxu0
      %3366 = vmatprep.mubr.f32.mxu0 0.0
      %3367 = vmatmul.mubr.f32.gmra.mrb[0].mxu0 %v825
      %v3368 = vpop.f32.mrb[0].mxu0
      %v3369 = vadd.f32 %v3141, %v3368
      %v3370 = vpop.f32.mrb[0].mxu0
      %3371 = vmatprep.mubr.f32.mxu0 0.0
      %3372 = vmatmul.mubr.f32.gmra.mrb[0].mxu0 %v828
      %v3373 = vpop.f32.mrb[0].mxu0
      %v3374 = vadd.f32 %v3146, %v3373
      %v3375 = vpop.f32.mrb[0].mxu0
      %3376 = vmatprep.mubr.f32.mxu0 0.0
      %3377 = vmatmul.mubr.f32.gmra.mrb[0].mxu0 %v831
      %v3378 = vpop.f32.mrb[0].mxu0
      %v3379 = vadd.f32 %v3151, %v3378
      %v3380 = vpop.f32.mrb[0].mxu0
      %3381 = vmatprep.mubr.f32.mxu0 0.0
      %3382 = vmatmul.mubr.f32.gmra.mrb[0].mxu0 %v834
      %v3383 = vpop.f32.mrb[0].mxu0
      %v3384 = vadd.f32 %v3156, %v3383
      %v3385 = vpop.f32.mrb[0].mxu0
      %3386 = vmatprep.mubr.f32.mxu0 0.0
      %3387 = vmatmul.mubr.f32.gmra.mrb[0].mxu0 %v837
      %v3388 = vpop.f32.mrb[0].mxu0
      %v3389 = vadd.f32 %v3161, %v3388
      %v3390 = vpop.f32.mrb[0].mxu0
      %3391 = vmatprep.mubr.f32.mxu0 0.0
      %3392 = vmatmul.mubr.f32.gmra.mrb[0].mxu0 %v840
      %v3393 = vpop.f32.mrb[0].mxu0
      %v3394 = vadd.f32 %v3166, %v3393
      %v3395 = vpop.f32.mrb[0].mxu0
      %3396 = vmatprep.mubr.f32.mxu0 0.0
      %3397 = vmatmul.mubr.f32.gmra.mrb[0].mxu0 %v843
      %v3398 = vpop.f32.mrb[0].mxu0
      %v3399 = vadd.f32 %v3171, %v3398
      %v3400 = vpop.f32.mrb[0].mxu0
      %3401 = vmatprep.mubr.f32.mxu0 0.0
      %3402 = vmatmul.mubr.f32.gmra.mrb[0].mxu0 %v846
      %v3403 = vpop.f32.mrb[0].mxu0
      %v3404 = vadd.f32 %v3176, %v3403
      %v3405 = vpop.f32.mrb[0].mxu0
      %3406 = vmatprep.mubr.f32.mxu0 0.0
      %3407 = vmatmul.mubr.f32.gmra.mrb[0].mxu0 %v849
      %v3408 = vpop.f32.mrb[0].mxu0
      %v3409 = vadd.f32 %v3181, %v3408
      %v3410 = vpop.f32.mrb[0].mxu0
      %3411 = vmatprep.mubr.f32.mxu0 0.0
      %3412 = vmatmul.mubr.f32.gmra.mrb[0].mxu0 %v852
      %v3413 = vpop.f32.mrb[0].mxu0
      %v3414 = vadd.f32 %v3186, %v3413
      %v3415 = vpop.f32.mrb[0].mxu0
      %3416 = vmatprep.mubr.f32.mxu0 0.0
      %3417 = vmatmul.mubr.f32.gmra.mrb[0].mxu0 %v1085
      %v3418 = vpop.f32.mrb[0].mxu0
      %v3419 = vadd.f32 %v3191, %v3418
      %v3420 = vpop.f32.mrb[0].mxu0
      %3421 = vmatprep.mubr.f32.mxu0 0.0
      %3422 = vmatmul.mubr.f32.gmra.mrb[0].mxu0 %v1088
      %v3423 = vpop.f32.mrb[0].mxu0
      %v3424 = vadd.f32 %v3196, %v3423
      %v3425 = vpop.f32.mrb[0].mxu0
      %3426 = vdwg.mxu0
      %s3427 = scalar_lea.vmem %s2, 40
      %v3428 = vld [vmem:[%s3427] sm:$0xf]
      %v3430 = vsel %vm432, %v355, 0
      %v3433 = vsel %vm432, %v356, 0
      %v3436 = vsel %vm529, %v3428, 0
      %3438 = vmatprep.subr.mxu0 0.0
      %3439 = vmatpush1.msra.mxu0 %v3436
      %3440 = vmatprep.subr.mxu0 0.0
      %3441 = vmatpush1.msra.mxu0 0.0
      %3442 = vmatprep.subr.mxu0 0.0
      %3443 = vmatpush1.msra.mxu0 0.0
      %3444 = vmatprep.subr.mxu0 0.0
      %3445 = vmatpush1.msra.mxu0 0.0
      %3446 = vmatprep.subr.mxu0 0.0
      %3447 = vmatpush1.msra.mxu0 0.0
      %3448 = vmatprep.subr.mxu0 0.0
      %3449 = vmatpush1.msra.mxu0 0.0
      %3450 = vmatprep.subr.mxu0 0.0
      %3451 = vmatpush1.msra.mxu0 0.0
      %3452 = vmatprep.subr.mxu0 0.0
      %3453 = vmatpush1.msra.mxu0 0.0
      %3454 = vmatprep.subr.mxu0 0.0
      %3455 = vmatpush1.msra.mxu0 0.0
      %3456 = vmatprep.subr.mxu0 0.0
      %3457 = vmatpush1.msra.mxu0 0.0
      %3458 = vmatprep.subr.mxu0 0.0
      %3459 = vmatpush1.msra.mxu0 0.0
      %3460 = vmatprep.subr.mxu0 0.0
      %3461 = vmatpush1.msra.mxu0 0.0
      %3462 = vmatprep.subr.mxu0 0.0
      %3463 = vmatpush1.msra.mxu0 0.0
      %3464 = vmatprep.subr.mxu0 0.0
      %3465 = vmatpush1.msra.mxu0 0.0
      %3466 = vmatprep.subr.mxu0 0.0
      %3467 = vmatpush1.msra.mxu0 0.0
      %3468 = vmatprep.subr.mxu0 0.0
      %3469 = vmatpush1.msra.mxu0 0.0
      %3470 = vmatprep.subr.mxu0 0.0
      %3471 = vmatpush1.msra.mxu0 0.0
      %3472 = vmatprep.subr.mxu0 0.0
      %3473 = vmatpush1.msra.mxu0 0.0
      %3474 = vmatprep.subr.mxu0 0.0
      %3475 = vmatpush1.msra.mxu0 0.0
      %3476 = vmatprep.subr.mxu0 0.0
      %3477 = vmatpush1.msra.mxu0 0.0
      %3478 = vmatprep.subr.mxu0 0.0
      %3479 = vmatpush1.msra.mxu0 0.0
      %3480 = vmatprep.subr.mxu0 0.0
      %3481 = vmatpush1.msra.mxu0 0.0
      %3482 = vmatprep.subr.mxu0 0.0
      %3483 = vmatpush1.msra.mxu0 0.0
      %3484 = vmatprep.subr.mxu0 0.0
      %3485 = vmatpush1.msra.mxu0 0.0
      %3486 = vmatprep.subr.mxu0 0.0
      %3487 = vmatpush1.msra.mxu0 0.0
      %3488 = vmatprep.subr.mxu0 0.0
      %3489 = vmatpush1.msra.mxu0 0.0
      %3490 = vmatprep.subr.mxu0 0.0
      %3491 = vmatpush1.msra.mxu0 0.0
      %3492 = vmatprep.subr.mxu0 0.0
      %3493 = vmatpush1.msra.mxu0 0.0
      %3494 = vmatprep.subr.mxu0 0.0
      %3495 = vmatpush1.msra.mxu0 0.0
      %3496 = vmatprep.subr.mxu0 0.0
      %3497 = vmatpush1.msra.mxu0 0.0
      %3498 = vmatprep.subr.mxu0 0.0
      %3499 = vmatpush1.msra.mxu0 0.0
      %3500 = vmatprep.subr.mxu0 0.0
      %3501 = vmatpush1.msra.mxu0 0.0
      %3502 = vmatprep.mubr.f32.mxu0 0.0
      %3503 = vmatmul.mubr.f32.gmra.mrb[0].mxu0 %v771
      %v3504 = vpop.f32.mrb[0].mxu0
      %v3505 = vadd.f32 0.0, %v3504
      %v3506 = vpop.f32.mrb[0].mxu0
      %3507 = vmatprep.mubr.f32.mxu0 0.0
      %3508 = vmatmul.mubr.f32.gmra.mrb[0].mxu0 %v774
      %v3509 = vpop.f32.mrb[0].mxu0
      %v3510 = vadd.f32 0.0, %v3509
      %v3511 = vpop.f32.mrb[0].mxu0
      %3512 = vmatprep.mubr.f32.mxu0 0.0
      %3513 = vmatmul.mubr.f32.gmra.mrb[0].mxu0 %v777
      %v3514 = vpop.f32.mrb[0].mxu0
      %v3515 = vadd.f32 0.0, %v3514
      %v3516 = vpop.f32.mrb[0].mxu0
      %3517 = vmatprep.mubr.f32.mxu0 0.0
      %3518 = vmatmul.mubr.f32.gmra.mrb[0].mxu0 %v780
      %v3519 = vpop.f32.mrb[0].mxu0
      %v3520 = vadd.f32 0.0, %v3519
      %v3521 = vpop.f32.mrb[0].mxu0
      %3522 = vmatprep.mubr.f32.mxu0 0.0
      %3523 = vmatmul.mubr.f32.gmra.mrb[0].mxu0 %v783
      %v3524 = vpop.f32.mrb[0].mxu0
      %v3525 = vadd.f32 0.0, %v3524
      %v3526 = vpop.f32.mrb[0].mxu0
      %3527 = vmatprep.mubr.f32.mxu0 0.0
      %3528 = vmatmul.mubr.f32.gmra.mrb[0].mxu0 %v786
      %v3529 = vpop.f32.mrb[0].mxu0
      %v3530 = vadd.f32 0.0, %v3529
      %v3531 = vpop.f32.mrb[0].mxu0
      %3532 = vmatprep.mubr.f32.mxu0 0.0
      %3533 = vmatmul.mubr.f32.gmra.mrb[0].mxu0 %v789
      %v3534 = vpop.f32.mrb[0].mxu0
      %v3535 = vadd.f32 0.0, %v3534
      %v3536 = vpop.f32.mrb[0].mxu0
      %3537 = vmatprep.mubr.f32.mxu0 0.0
      %3538 = vmatmul.mubr.f32.gmra.mrb[0].mxu0 %v792
      %v3539 = vpop.f32.mrb[0].mxu0
      %v3540 = vadd.f32 0.0, %v3539
      %v3541 = vpop.f32.mrb[0].mxu0
      %3542 = vmatprep.mubr.f32.mxu0 0.0
      %3543 = vmatmul.mubr.f32.gmra.mrb[0].mxu0 %v795
      %v3544 = vpop.f32.mrb[0].mxu0
      %v3545 = vadd.f32 0.0, %v3544
      %v3546 = vpop.f32.mrb[0].mxu0
      %3547 = vmatprep.mubr.f32.mxu0 0.0
      %3548 = vmatmul.mubr.f32.gmra.mrb[0].mxu0 %v798
      %v3549 = vpop.f32.mrb[0].mxu0
      %v3550 = vadd.f32 0.0, %v3549
      %v3551 = vpop.f32.mrb[0].mxu0
      %3552 = vmatprep.mubr.f32.mxu0 0.0
      %3553 = vmatmul.mubr.f32.gmra.mrb[0].mxu0 %v801
      %v3554 = vpop.f32.mrb[0].mxu0
      %v3555 = vadd.f32 0.0, %v3554
      %v3556 = vpop.f32.mrb[0].mxu0
      %3557 = vmatprep.mubr.f32.mxu0 0.0
      %3558 = vmatmul.mubr.f32.gmra.mrb[0].mxu0 %v804
      %v3559 = vpop.f32.mrb[0].mxu0
      %v3560 = vadd.f32 0.0, %v3559
      %v3561 = vpop.f32.mrb[0].mxu0
      %3562 = vmatprep.mubr.f32.mxu0 0.0
      %3563 = vmatmul.mubr.f32.gmra.mrb[0].mxu0 %v807
      %v3564 = vpop.f32.mrb[0].mxu0
      %v3565 = vadd.f32 0.0, %v3564
      %v3566 = vpop.f32.mrb[0].mxu0
      %3567 = vmatprep.mubr.f32.mxu0 0.0
      %3568 = vmatmul.mubr.f32.gmra.mrb[0].mxu0 %v810
      %v3569 = vpop.f32.mrb[0].mxu0
      %v3570 = vadd.f32 0.0, %v3569
      %v3571 = vpop.f32.mrb[0].mxu0
      %3572 = vmatprep.mubr.f32.mxu0 0.0
      %3573 = vmatmul.mubr.f32.gmra.mrb[0].mxu0 %v813
      %v3574 = vpop.f32.mrb[0].mxu0
      %v3575 = vadd.f32 0.0, %v3574
      %v3576 = vpop.f32.mrb[0].mxu0
      %3577 = vmatprep.mubr.f32.mxu0 0.0
      %3578 = vmatmul.mubr.f32.gmra.mrb[0].mxu0 %v816
      %v3579 = vpop.f32.mrb[0].mxu0
      %v3580 = vadd.f32 0.0, %v3579
      %v3581 = vpop.f32.mrb[0].mxu0
      %3582 = vmatprep.mubr.f32.mxu0 0.0
      %3583 = vmatmul.mubr.f32.gmra.mrb[0].mxu0 %v819
      %v3584 = vpop.f32.mrb[0].mxu0
      %v3585 = vadd.f32 0.0, %v3584
      %v3586 = vpop.f32.mrb[0].mxu0
      %3587 = vmatprep.mubr.f32.mxu0 0.0
      %3588 = vmatmul.mubr.f32.gmra.mrb[0].mxu0 %v822
      %v3589 = vpop.f32.mrb[0].mxu0
      %v3590 = vadd.f32 0.0, %v3589
      %v3591 = vpop.f32.mrb[0].mxu0
      %3592 = vmatprep.mubr.f32.mxu0 0.0
      %3593 = vmatmul.mubr.f32.gmra.mrb[0].mxu0 %v825
      %v3594 = vpop.f32.mrb[0].mxu0
      %v3595 = vadd.f32 0.0, %v3594
      %v3596 = vpop.f32.mrb[0].mxu0
      %3597 = vmatprep.mubr.f32.mxu0 0.0
      %3598 = vmatmul.mubr.f32.gmra.mrb[0].mxu0 %v828
      %v3599 = vpop.f32.mrb[0].mxu0
      %v3600 = vadd.f32 0.0, %v3599
      %v3601 = vpop.f32.mrb[0].mxu0
      %3602 = vmatprep.mubr.f32.mxu0 0.0
      %3603 = vmatmul.mubr.f32.gmra.mrb[0].mxu0 %v831
      %v3604 = vpop.f32.mrb[0].mxu0
      %v3605 = vadd.f32 0.0, %v3604
      %v3606 = vpop.f32.mrb[0].mxu0
      %3607 = vmatprep.mubr.f32.mxu0 0.0
      %3608 = vmatmul.mubr.f32.gmra.mrb[0].mxu0 %v834
      %v3609 = vpop.f32.mrb[0].mxu0
      %v3610 = vadd.f32 0.0, %v3609
      %v3611 = vpop.f32.mrb[0].mxu0
      %3612 = vmatprep.mubr.f32.mxu0 0.0
      %3613 = vmatmul.mubr.f32.gmra.mrb[0].mxu0 %v837
      %v3614 = vpop.f32.mrb[0].mxu0
      %v3615 = vadd.f32 0.0, %v3614
      %v3616 = vpop.f32.mrb[0].mxu0
      %3617 = vmatprep.mubr.f32.mxu0 0.0
      %3618 = vmatmul.mubr.f32.gmra.mrb[0].mxu0 %v840
      %v3619 = vpop.f32.mrb[0].mxu0
      %v3620 = vadd.f32 0.0, %v3619
      %v3621 = vpop.f32.mrb[0].mxu0
      %3622 = vmatprep.mubr.f32.mxu0 0.0
      %3623 = vmatmul.mubr.f32.gmra.mrb[0].mxu0 %v843
      %v3624 = vpop.f32.mrb[0].mxu0
      %v3625 = vadd.f32 0.0, %v3624
      %v3626 = vpop.f32.mrb[0].mxu0
      %3627 = vmatprep.mubr.f32.mxu0 0.0
      %3628 = vmatmul.mubr.f32.gmra.mrb[0].mxu0 %v846
      %v3629 = vpop.f32.mrb[0].mxu0
      %v3630 = vadd.f32 0.0, %v3629
      %v3631 = vpop.f32.mrb[0].mxu0
      %3632 = vmatprep.mubr.f32.mxu0 0.0
      %3633 = vmatmul.mubr.f32.gmra.mrb[0].mxu0 %v849
      %v3634 = vpop.f32.mrb[0].mxu0
      %v3635 = vadd.f32 0.0, %v3634
      %v3636 = vpop.f32.mrb[0].mxu0
      %3637 = vmatprep.mubr.f32.mxu0 0.0
      %3638 = vmatmul.mubr.f32.gmra.mrb[0].mxu0 %v852
      %v3639 = vpop.f32.mrb[0].mxu0
      %v3640 = vadd.f32 0.0, %v3639
      %v3641 = vpop.f32.mrb[0].mxu0
      %3642 = vmatprep.mubr.f32.mxu0 0.0
      %3643 = vmatmul.mubr.f32.gmra.mrb[0].mxu0 %v1085
      %v3644 = vpop.f32.mrb[0].mxu0
      %v3645 = vadd.f32 0.0, %v3644
      %v3646 = vpop.f32.mrb[0].mxu0
      %3647 = vmatprep.mubr.f32.mxu0 0.0
      %3648 = vmatmul.mubr.f32.gmra.mrb[0].mxu0 %v1088
      %v3649 = vpop.f32.mrb[0].mxu0
      %v3650 = vadd.f32 0.0, %v3649
      %v3651 = vpop.f32.mrb[0].mxu0
      %3652 = vmatprep.mubr.f32.mxu0 0.0
      %3653 = vmatmul.mubr.f32.gmra.mrb[0].mxu0 %v3430
      %v3654 = vpop.f32.mrb[0].mxu0
      %v3655 = vadd.f32 0.0, %v3654
      %v3656 = vpop.f32.mrb[0].mxu0
      %3657 = vmatprep.mubr.f32.mxu0 0.0
      %3658 = vmatmul.mubr.f32.gmra.mrb[0].mxu0 %v3433
      %v3659 = vpop.f32.mrb[0].mxu0
      %v3660 = vadd.f32 0.0, %v3659
      %v3661 = vpop.f32.mrb[0].mxu0
      %3662 = vdwg.mxu0
      %v3663 = vadd.f32 %v3269, %v3505
      %v3664 = vadd.f32 %v3274, %v3510
      %v3665 = vadd.f32 %v3279, %v3515
      %v3666 = vadd.f32 %v3284, %v3520
      %v3667 = vadd.f32 %v3289, %v3525
      %v3668 = vadd.f32 %v3294, %v3530
      %v3669 = vadd.f32 %v3299, %v3535
      %v3670 = vadd.f32 %v3304, %v3540
      %v3671 = vadd.f32 %v3309, %v3545
      %v3672 = vadd.f32 %v3314, %v3550
      %v3673 = vadd.f32 %v3319, %v3555
      %v3674 = vadd.f32 %v3324, %v3560
      %v3675 = vadd.f32 %v3329, %v3565
      %v3676 = vadd.f32 %v3334, %v3570
      %v3677 = vadd.f32 %v3339, %v3575
      %v3678 = vadd.f32 %v3344, %v3580
      %v3679 = vadd.f32 %v3349, %v3585
      %v3680 = vadd.f32 %v3354, %v3590
      %v3681 = vadd.f32 %v3359, %v3595
      %v3682 = vadd.f32 %v3364, %v3600
      %v3683 = vadd.f32 %v3369, %v3605
      %v3684 = vadd.f32 %v3374, %v3610
      %v3685 = vadd.f32 %v3379, %v3615
      %v3686 = vadd.f32 %v3384, %v3620
      %v3687 = vadd.f32 %v3389, %v3625
      %v3688 = vadd.f32 %v3394, %v3630
      %v3689 = vadd.f32 %v3399, %v3635
      %v3690 = vadd.f32 %v3404, %v3640
      %v3691 = vadd.f32 %v3409, %v3645
      %v3692 = vadd.f32 %v3414, %v3650
      %v3693 = vadd.f32 %v3419, %v3655
      %v3694 = vadd.f32 %v3424, %v3660
      %s3695 = scalar_lea.vmem %s2, 44
      %v3696 = vld [vmem:[%s3695] sm:$0xf]
      %v3698 = vsel %vm432, %v391, 0
      %v3701 = vsel %vm432, %v392, 0
      %v3704 = vsel %vm529, %v3696, 0
      %3706 = vmatprep.subr.mxu0 0.0
      %3707 = vmatpush1.msra.mxu0 %v3704
      %3708 = vmatprep.subr.mxu0 0.0
      %3709 = vmatpush1.msra.mxu0 0.0
      %3710 = vmatprep.subr.mxu0 0.0
      %3711 = vmatpush1.msra.mxu0 0.0
      %3712 = vmatprep.subr.mxu0 0.0
      %3713 = vmatpush1.msra.mxu0 0.0
      %3714 = vmatprep.subr.mxu0 0.0
      %3715 = vmatpush1.msra.mxu0 0.0
      %3716 = vmatprep.subr.mxu0 0.0
      %3717 = vmatpush1.msra.mxu0 0.0
      %3718 = vmatprep.subr.mxu0 0.0
      %3719 = vmatpush1.msra.mxu0 0.0
      %3720 = vmatprep.subr.mxu0 0.0
      %3721 = vmatpush1.msra.mxu0 0.0
      %3722 = vmatprep.subr.mxu0 0.0
      %3723 = vmatpush1.msra.mxu0 0.0
      %3724 = vmatprep.subr.mxu0 0.0
      %3725 = vmatpush1.msra.mxu0 0.0
      %3726 = vmatprep.subr.mxu0 0.0
      %3727 = vmatpush1.msra.mxu0 0.0
      %3728 = vmatprep.subr.mxu0 0.0
      %3729 = vmatpush1.msra.mxu0 0.0
      %3730 = vmatprep.subr.mxu0 0.0
      %3731 = vmatpush1.msra.mxu0 0.0
      %3732 = vmatprep.subr.mxu0 0.0
      %3733 = vmatpush1.msra.mxu0 0.0
      %3734 = vmatprep.subr.mxu0 0.0
      %3735 = vmatpush1.msra.mxu0 0.0
      %3736 = vmatprep.subr.mxu0 0.0
      %3737 = vmatpush1.msra.mxu0 0.0
      %3738 = vmatprep.subr.mxu0 0.0
      %3739 = vmatpush1.msra.mxu0 0.0
      %3740 = vmatprep.subr.mxu0 0.0
      %3741 = vmatpush1.msra.mxu0 0.0
      %3742 = vmatprep.subr.mxu0 0.0
      %3743 = vmatpush1.msra.mxu0 0.0
      %3744 = vmatprep.subr.mxu0 0.0
      %3745 = vmatpush1.msra.mxu0 0.0
      %3746 = vmatprep.subr.mxu0 0.0
      %3747 = vmatpush1.msra.mxu0 0.0
      %3748 = vmatprep.subr.mxu0 0.0
      %3749 = vmatpush1.msra.mxu0 0.0
      %3750 = vmatprep.subr.mxu0 0.0
      %3751 = vmatpush1.msra.mxu0 0.0
      %3752 = vmatprep.subr.mxu0 0.0
      %3753 = vmatpush1.msra.mxu0 0.0
      %3754 = vmatprep.subr.mxu0 0.0
      %3755 = vmatpush1.msra.mxu0 0.0
      %3756 = vmatprep.subr.mxu0 0.0
      %3757 = vmatpush1.msra.mxu0 0.0
      %3758 = vmatprep.subr.mxu0 0.0
      %3759 = vmatpush1.msra.mxu0 0.0
      %3760 = vmatprep.subr.mxu0 0.0
      %3761 = vmatpush1.msra.mxu0 0.0
      %3762 = vmatprep.subr.mxu0 0.0
      %3763 = vmatpush1.msra.mxu0 0.0
      %3764 = vmatprep.subr.mxu0 0.0
      %3765 = vmatpush1.msra.mxu0 0.0
      %3766 = vmatprep.subr.mxu0 0.0
      %3767 = vmatpush1.msra.mxu0 0.0
      %3768 = vmatprep.subr.mxu0 0.0
      %3769 = vmatpush1.msra.mxu0 0.0
      %3770 = vmatprep.mubr.f32.mxu0 0.0
      %3771 = vmatmul.mubr.f32.gmra.mrb[0].mxu0 %v446
      %v3772 = vpop.f32.mrb[0].mxu0
      %v3773 = vadd.f32 0.0, %v3772
      %v3774 = vpop.f32.mrb[0].mxu0
      %3775 = vmatprep.mubr.f32.mxu0 0.0
      %3776 = vmatmul.mubr.f32.gmra.mrb[0].mxu0 %v449
      %v3777 = vpop.f32.mrb[0].mxu0
      %v3778 = vadd.f32 0.0, %v3777
      %v3779 = vpop.f32.mrb[0].mxu0
      %3780 = vmatprep.mubr.f32.mxu0 0.0
      %3781 = vmatmul.mubr.f32.gmra.mrb[0].mxu0 %v452
      %v3782 = vpop.f32.mrb[0].mxu0
      %v3783 = vadd.f32 0.0, %v3782
      %v3784 = vpop.f32.mrb[0].mxu0
      %3785 = vmatprep.mubr.f32.mxu0 0.0
      %3786 = vmatmul.mubr.f32.gmra.mrb[0].mxu0 %v455
      %v3787 = vpop.f32.mrb[0].mxu0
      %v3788 = vadd.f32 0.0, %v3787
      %v3789 = vpop.f32.mrb[0].mxu0
      %3790 = vmatprep.mubr.f32.mxu0 0.0
      %3791 = vmatmul.mubr.f32.gmra.mrb[0].mxu0 %v458
      %v3792 = vpop.f32.mrb[0].mxu0
      %v3793 = vadd.f32 0.0, %v3792
      %v3794 = vpop.f32.mrb[0].mxu0
      %3795 = vmatprep.mubr.f32.mxu0 0.0
      %3796 = vmatmul.mubr.f32.gmra.mrb[0].mxu0 %v461
      %v3797 = vpop.f32.mrb[0].mxu0
      %v3798 = vadd.f32 0.0, %v3797
      %v3799 = vpop.f32.mrb[0].mxu0
      %3800 = vmatprep.mubr.f32.mxu0 0.0
      %3801 = vmatmul.mubr.f32.gmra.mrb[0].mxu0 %v464
      %v3802 = vpop.f32.mrb[0].mxu0
      %v3803 = vadd.f32 0.0, %v3802
      %v3804 = vpop.f32.mrb[0].mxu0
      %3805 = vmatprep.mubr.f32.mxu0 0.0
      %3806 = vmatmul.mubr.f32.gmra.mrb[0].mxu0 %v467
      %v3807 = vpop.f32.mrb[0].mxu0
      %v3808 = vadd.f32 0.0, %v3807
      %v3809 = vpop.f32.mrb[0].mxu0
      %3810 = vmatprep.mubr.f32.mxu0 0.0
      %3811 = vmatmul.mubr.f32.gmra.mrb[0].mxu0 %v470
      %v3812 = vpop.f32.mrb[0].mxu0
      %v3813 = vadd.f32 0.0, %v3812
      %v3814 = vpop.f32.mrb[0].mxu0
      %3815 = vmatprep.mubr.f32.mxu0 0.0
      %3816 = vmatmul.mubr.f32.gmra.mrb[0].mxu0 %v473
      %v3817 = vpop.f32.mrb[0].mxu0
      %v3818 = vadd.f32 0.0, %v3817
      %v3819 = vpop.f32.mrb[0].mxu0
      %3820 = vmatprep.mubr.f32.mxu0 0.0
      %3821 = vmatmul.mubr.f32.gmra.mrb[0].mxu0 %v476
      %v3822 = vpop.f32.mrb[0].mxu0
      %v3823 = vadd.f32 0.0, %v3822
      %v3824 = vpop.f32.mrb[0].mxu0
      %3825 = vmatprep.mubr.f32.mxu0 0.0
      %3826 = vmatmul.mubr.f32.gmra.mrb[0].mxu0 %v479
      %v3827 = vpop.f32.mrb[0].mxu0
      %v3828 = vadd.f32 0.0, %v3827
      %v3829 = vpop.f32.mrb[0].mxu0
      %3830 = vmatprep.mubr.f32.mxu0 0.0
      %3831 = vmatmul.mubr.f32.gmra.mrb[0].mxu0 %v482
      %v3832 = vpop.f32.mrb[0].mxu0
      %v3833 = vadd.f32 0.0, %v3832
      %v3834 = vpop.f32.mrb[0].mxu0
      %3835 = vmatprep.mubr.f32.mxu0 0.0
      %3836 = vmatmul.mubr.f32.gmra.mrb[0].mxu0 %v485
      %v3837 = vpop.f32.mrb[0].mxu0
      %v3838 = vadd.f32 0.0, %v3837
      %v3839 = vpop.f32.mrb[0].mxu0
      %3840 = vmatprep.mubr.f32.mxu0 0.0
      %3841 = vmatmul.mubr.f32.gmra.mrb[0].mxu0 %v488
      %v3842 = vpop.f32.mrb[0].mxu0
      %v3843 = vadd.f32 0.0, %v3842
      %v3844 = vpop.f32.mrb[0].mxu0
      %3845 = vmatprep.mubr.f32.mxu0 0.0
      %3846 = vmatmul.mubr.f32.gmra.mrb[0].mxu0 %v491
      %v3847 = vpop.f32.mrb[0].mxu0
      %v3848 = vadd.f32 0.0, %v3847
      %v3849 = vpop.f32.mrb[0].mxu0
      %3850 = vmatprep.mubr.f32.mxu0 0.0
      %3851 = vmatmul.mubr.f32.gmra.mrb[0].mxu0 %v494
      %v3852 = vpop.f32.mrb[0].mxu0
      %v3853 = vadd.f32 0.0, %v3852
      %v3854 = vpop.f32.mrb[0].mxu0
      %3855 = vmatprep.mubr.f32.mxu0 0.0
      %3856 = vmatmul.mubr.f32.gmra.mrb[0].mxu0 %v497
      %v3857 = vpop.f32.mrb[0].mxu0
      %v3858 = vadd.f32 0.0, %v3857
      %v3859 = vpop.f32.mrb[0].mxu0
      %3860 = vmatprep.mubr.f32.mxu0 0.0
      %3861 = vmatmul.mubr.f32.gmra.mrb[0].mxu0 %v500
      %v3862 = vpop.f32.mrb[0].mxu0
      %v3863 = vadd.f32 0.0, %v3862
      %v3864 = vpop.f32.mrb[0].mxu0
      %3865 = vmatprep.mubr.f32.mxu0 0.0
      %3866 = vmatmul.mubr.f32.gmra.mrb[0].mxu0 %v503
      %v3867 = vpop.f32.mrb[0].mxu0
      %v3868 = vadd.f32 0.0, %v3867
      %v3869 = vpop.f32.mrb[0].mxu0
      %3870 = vmatprep.mubr.f32.mxu0 0.0
      %3871 = vmatmul.mubr.f32.gmra.mrb[0].mxu0 %v506
      %v3872 = vpop.f32.mrb[0].mxu0
      %v3873 = vadd.f32 0.0, %v3872
      %v3874 = vpop.f32.mrb[0].mxu0
      %3875 = vmatprep.mubr.f32.mxu0 0.0
      %3876 = vmatmul.mubr.f32.gmra.mrb[0].mxu0 %v509
      %v3877 = vpop.f32.mrb[0].mxu0
      %v3878 = vadd.f32 0.0, %v3877
      %v3879 = vpop.f32.mrb[0].mxu0
      %3880 = vmatprep.mubr.f32.mxu0 0.0
      %3881 = vmatmul.mubr.f32.gmra.mrb[0].mxu0 %v512
      %v3882 = vpop.f32.mrb[0].mxu0
      %v3883 = vadd.f32 0.0, %v3882
      %v3884 = vpop.f32.mrb[0].mxu0
      %3885 = vmatprep.mubr.f32.mxu0 0.0
      %3886 = vmatmul.mubr.f32.gmra.mrb[0].mxu0 %v515
      %v3887 = vpop.f32.mrb[0].mxu0
      %v3888 = vadd.f32 0.0, %v3887
      %v3889 = vpop.f32.mrb[0].mxu0
      %3890 = vmatprep.mubr.f32.mxu0 0.0
      %3891 = vmatmul.mubr.f32.gmra.mrb[0].mxu0 %v518
      %v3892 = vpop.f32.mrb[0].mxu0
      %v3893 = vadd.f32 0.0, %v3892
      %v3894 = vpop.f32.mrb[0].mxu0
      %3895 = vmatprep.mubr.f32.mxu0 0.0
      %3896 = vmatmul.mubr.f32.gmra.mrb[0].mxu0 %v521
      %v3897 = vpop.f32.mrb[0].mxu0
      %v3898 = vadd.f32 0.0, %v3897
      %v3899 = vpop.f32.mrb[0].mxu0
      %3900 = vmatprep.mubr.f32.mxu0 0.0
      %3901 = vmatmul.mubr.f32.gmra.mrb[0].mxu0 %v524
      %v3902 = vpop.f32.mrb[0].mxu0
      %v3903 = vadd.f32 0.0, %v3902
      %v3904 = vpop.f32.mrb[0].mxu0
      %3905 = vmatprep.mubr.f32.mxu0 0.0
      %3906 = vmatmul.mubr.f32.gmra.mrb[0].mxu0 %v527
      %v3907 = vpop.f32.mrb[0].mxu0
      %v3908 = vadd.f32 0.0, %v3907
      %v3909 = vpop.f32.mrb[0].mxu0
      %3910 = vmatprep.mubr.f32.mxu0 0.0
      %3911 = vmatmul.mubr.f32.gmra.mrb[0].mxu0 %v1353
      %v3912 = vpop.f32.mrb[0].mxu0
      %v3913 = vadd.f32 0.0, %v3912
      %v3914 = vpop.f32.mrb[0].mxu0
      %3915 = vmatprep.mubr.f32.mxu0 0.0
      %3916 = vmatmul.mubr.f32.gmra.mrb[0].mxu0 %v1356
      %v3917 = vpop.f32.mrb[0].mxu0
      %v3918 = vadd.f32 0.0, %v3917
      %v3919 = vpop.f32.mrb[0].mxu0
      %3920 = vmatprep.mubr.f32.mxu0 0.0
      %3921 = vmatmul.mubr.f32.gmra.mrb[0].mxu0 %v3698
      %v3922 = vpop.f32.mrb[0].mxu0
      %v3923 = vadd.f32 0.0, %v3922
      %v3924 = vpop.f32.mrb[0].mxu0
      %3925 = vmatprep.mubr.f32.mxu0 0.0
      %3926 = vmatmul.mubr.f32.gmra.mrb[0].mxu0 %v3701
      %v3927 = vpop.f32.mrb[0].mxu0
      %v3928 = vadd.f32 0.0, %v3927
      %v3929 = vpop.f32.mrb[0].mxu0
      %3930 = vdwg.mxu0
      %v3931 = vadd.f32 %v3663, %v3773
      %v3932 = vadd.f32 %v3664, %v3778
      %v3933 = vadd.f32 %v3665, %v3783
      %v3934 = vadd.f32 %v3666, %v3788
      %v3935 = vadd.f32 %v3667, %v3793
      %v3936 = vadd.f32 %v3668, %v3798
      %v3937 = vadd.f32 %v3669, %v3803
      %v3938 = vadd.f32 %v3670, %v3808
      %v3939 = vadd.f32 %v3671, %v3813
      %v3940 = vadd.f32 %v3672, %v3818
      %v3941 = vadd.f32 %v3673, %v3823
      %v3942 = vadd.f32 %v3674, %v3828
      %v3943 = vadd.f32 %v3675, %v3833
      %v3944 = vadd.f32 %v3676, %v3838
      %v3945 = vadd.f32 %v3677, %v3843
      %v3946 = vadd.f32 %v3678, %v3848
      %v3947 = vadd.f32 %v3679, %v3853
      %v3948 = vadd.f32 %v3680, %v3858
      %v3949 = vadd.f32 %v3681, %v3863
      %v3950 = vadd.f32 %v3682, %v3868
      %v3951 = vadd.f32 %v3683, %v3873
      %v3952 = vadd.f32 %v3684, %v3878
      %v3953 = vadd.f32 %v3685, %v3883
      %v3954 = vadd.f32 %v3686, %v3888
      %v3955 = vadd.f32 %v3687, %v3893
      %v3956 = vadd.f32 %v3688, %v3898
      %v3957 = vadd.f32 %v3689, %v3903
      %v3958 = vadd.f32 %v3690, %v3908
      %v3959 = vadd.f32 %v3691, %v3913
      %v3960 = vadd.f32 %v3692, %v3918
      %v3961 = vadd.f32 %v3693, %v3923
      %v3962 = vadd.f32 %v3694, %v3928
      %v3963 = vadd.f32 %v3931, %v1622
      %v3964 = vadd.f32 %v3932, %v1622
      %v3965 = vadd.f32 %v3933, %v1622
      %v3966 = vadd.f32 %v3934, %v1622
      %v3967 = vadd.f32 %v3935, %v1622
      %v3968 = vadd.f32 %v3936, %v1622
      %v3969 = vadd.f32 %v3937, %v1622
      %v3970 = vadd.f32 %v3938, %v1622
      %v3971 = vadd.f32 %v3939, %v1622
      %v3972 = vadd.f32 %v3940, %v1622
      %v3973 = vadd.f32 %v3941, %v1622
      %v3974 = vadd.f32 %v3942, %v1622
      %v3975 = vadd.f32 %v3943, %v1622
      %v3976 = vadd.f32 %v3944, %v1622
      %v3977 = vadd.f32 %v3945, %v1622
      %v3978 = vadd.f32 %v3946, %v1622
      %v3979 = vadd.f32 %v3947, %v1622
      %v3980 = vadd.f32 %v3948, %v1622
      %v3981 = vadd.f32 %v3949, %v1622
      %v3982 = vadd.f32 %v3950, %v1622
      %v3983 = vadd.f32 %v3951, %v1622
      %v3984 = vadd.f32 %v3952, %v1622
      %v3985 = vadd.f32 %v3953, %v1622
      %v3986 = vadd.f32 %v3954, %v1622
      %v3987 = vadd.f32 %v3955, %v1622
      %v3988 = vadd.f32 %v3956, %v1622
      %v3989 = vadd.f32 %v3957, %v1622
      %v3990 = vadd.f32 %v3958, %v1622
      %v3991 = vadd.f32 %v3959, %v1622
      %v3992 = vadd.f32 %v3960, %v1622
      %v3993 = vadd.f32 %v3961, %v1622
      %v3994 = vadd.f32 %v3962, %v1622
      %s3995 = scalar_lea.vmem %s2, 48
      %v3996 = vld [vmem:[%s3995] sm:$0xf]
      %s3997 = scalar_lea.vmem %s2, 52
      %v3998 = vld [vmem:[%s3997] sm:$0xf]
      %v4000 = vsel %vm529, %v3998, 0
      %4002 = vmatprep.subr.mxu0 0.0
      %4003 = vmatpush1.msra.mxu0 %v4000
      %4004 = vmatprep.subr.mxu0 0.0
      %4005 = vmatpush1.msra.mxu0 0.0
      %4006 = vmatprep.subr.mxu0 0.0
      %4007 = vmatpush1.msra.mxu0 0.0
      %4008 = vmatprep.subr.mxu0 0.0
      %4009 = vmatpush1.msra.mxu0 0.0
      %4010 = vmatprep.subr.mxu0 0.0
      %4011 = vmatpush1.msra.mxu0 0.0
      %4012 = vmatprep.subr.mxu0 0.0
      %4013 = vmatpush1.msra.mxu0 0.0
      %4014 = vmatprep.subr.mxu0 0.0
      %4015 = vmatpush1.msra.mxu0 0.0
      %4016 = vmatprep.subr.mxu0 0.0
      %4017 = vmatpush1.msra.mxu0 0.0
      %4018 = vmatprep.subr.mxu0 0.0
      %4019 = vmatpush1.msra.mxu0 0.0
      %4020 = vmatprep.subr.mxu0 0.0
      %4021 = vmatpush1.msra.mxu0 0.0
      %4022 = vmatprep.subr.mxu0 0.0
      %4023 = vmatpush1.msra.mxu0 0.0
      %4024 = vmatprep.subr.mxu0 0.0
      %4025 = vmatpush1.msra.mxu0 0.0
      %4026 = vmatprep.subr.mxu0 0.0
      %4027 = vmatpush1.msra.mxu0 0.0
      %4028 = vmatprep.subr.mxu0 0.0
      %4029 = vmatpush1.msra.mxu0 0.0
      %4030 = vmatprep.subr.mxu0 0.0
      %4031 = vmatpush1.msra.mxu0 0.0
      %4032 = vmatprep.subr.mxu0 0.0
      %4033 = vmatpush1.msra.mxu0 0.0
      %4034 = vmatprep.subr.mxu0 0.0
      %4035 = vmatpush1.msra.mxu0 0.0
      %4036 = vmatprep.subr.mxu0 0.0
      %4037 = vmatpush1.msra.mxu0 0.0
      %4038 = vmatprep.subr.mxu0 0.0
      %4039 = vmatpush1.msra.mxu0 0.0
      %4040 = vmatprep.subr.mxu0 0.0
      %4041 = vmatpush1.msra.mxu0 0.0
      %4042 = vmatprep.subr.mxu0 0.0
      %4043 = vmatpush1.msra.mxu0 0.0
      %4044 = vmatprep.subr.mxu0 0.0
      %4045 = vmatpush1.msra.mxu0 0.0
      %4046 = vmatprep.subr.mxu0 0.0
      %4047 = vmatpush1.msra.mxu0 0.0
      %4048 = vmatprep.subr.mxu0 0.0
      %4049 = vmatpush1.msra.mxu0 0.0
      %4050 = vmatprep.subr.mxu0 0.0
      %4051 = vmatpush1.msra.mxu0 0.0
      %4052 = vmatprep.subr.mxu0 0.0
      %4053 = vmatpush1.msra.mxu0 0.0
      %4054 = vmatprep.subr.mxu0 0.0
      %4055 = vmatpush1.msra.mxu0 0.0
      %4056 = vmatprep.subr.mxu0 0.0
      %4057 = vmatpush1.msra.mxu0 0.0
      %4058 = vmatprep.subr.mxu0 0.0
      %4059 = vmatpush1.msra.mxu0 0.0
      %4060 = vmatprep.subr.mxu0 0.0
      %4061 = vmatpush1.msra.mxu0 0.0
      %4062 = vmatprep.subr.mxu0 0.0
      %4063 = vmatpush1.msra.mxu0 0.0
      %4064 = vmatprep.subr.mxu0 0.0
      %4065 = vmatpush1.msra.mxu0 0.0
      %4066 = vmatprep.mubr.f32.mxu0 0.0
      %4067 = vmatmul.mubr.f32.gmra.mrb[0].mxu0 %v1667
      %v4068 = vpop.f32.mrb[0].mxu0
      %v4069 = vadd.f32 0.0, %v4068
      %v4070 = vpop.f32.mrb[0].mxu0
      %4071 = vmatprep.mubr.f32.mxu0 0.0
      %4072 = vmatmul.mubr.f32.gmra.mrb[0].mxu0 %v1670
      %v4073 = vpop.f32.mrb[0].mxu0
      %v4074 = vadd.f32 0.0, %v4073
      %v4075 = vpop.f32.mrb[0].mxu0
      %4076 = vmatprep.mubr.f32.mxu0 0.0
      %4077 = vmatmul.mubr.f32.gmra.mrb[0].mxu0 %v1673
      %v4078 = vpop.f32.mrb[0].mxu0
      %v4079 = vadd.f32 0.0, %v4078
      %v4080 = vpop.f32.mrb[0].mxu0
      %4081 = vmatprep.mubr.f32.mxu0 0.0
      %4082 = vmatmul.mubr.f32.gmra.mrb[0].mxu0 %v1676
      %v4083 = vpop.f32.mrb[0].mxu0
      %v4084 = vadd.f32 0.0, %v4083
      %v4085 = vpop.f32.mrb[0].mxu0
      %4086 = vmatprep.mubr.f32.mxu0 0.0
      %4087 = vmatmul.mubr.f32.gmra.mrb[0].mxu0 %v1679
      %v4088 = vpop.f32.mrb[0].mxu0
      %v4089 = vadd.f32 0.0, %v4088
      %v4090 = vpop.f32.mrb[0].mxu0
      %4091 = vmatprep.mubr.f32.mxu0 0.0
      %4092 = vmatmul.mubr.f32.gmra.mrb[0].mxu0 %v1682
      %v4093 = vpop.f32.mrb[0].mxu0
      %v4094 = vadd.f32 0.0, %v4093
      %v4095 = vpop.f32.mrb[0].mxu0
      %4096 = vmatprep.mubr.f32.mxu0 0.0
      %4097 = vmatmul.mubr.f32.gmra.mrb[0].mxu0 %v1685
      %v4098 = vpop.f32.mrb[0].mxu0
      %v4099 = vadd.f32 0.0, %v4098
      %v4100 = vpop.f32.mrb[0].mxu0
      %4101 = vmatprep.mubr.f32.mxu0 0.0
      %4102 = vmatmul.mubr.f32.gmra.mrb[0].mxu0 %v1688
      %v4103 = vpop.f32.mrb[0].mxu0
      %v4104 = vadd.f32 0.0, %v4103
      %v4105 = vpop.f32.mrb[0].mxu0
      %4106 = vmatprep.mubr.f32.mxu0 0.0
      %4107 = vmatmul.mubr.f32.gmra.mrb[0].mxu0 %v1691
      %v4108 = vpop.f32.mrb[0].mxu0
      %v4109 = vadd.f32 0.0, %v4108
      %v4110 = vpop.f32.mrb[0].mxu0
      %4111 = vmatprep.mubr.f32.mxu0 0.0
      %4112 = vmatmul.mubr.f32.gmra.mrb[0].mxu0 %v1694
      %v4113 = vpop.f32.mrb[0].mxu0
      %v4114 = vadd.f32 0.0, %v4113
      %v4115 = vpop.f32.mrb[0].mxu0
      %4116 = vmatprep.mubr.f32.mxu0 0.0
      %4117 = vmatmul.mubr.f32.gmra.mrb[0].mxu0 %v1697
      %v4118 = vpop.f32.mrb[0].mxu0
      %v4119 = vadd.f32 0.0, %v4118
      %v4120 = vpop.f32.mrb[0].mxu0
      %4121 = vmatprep.mubr.f32.mxu0 0.0
      %4122 = vmatmul.mubr.f32.gmra.mrb[0].mxu0 %v1700
      %v4123 = vpop.f32.mrb[0].mxu0
      %v4124 = vadd.f32 0.0, %v4123
      %v4125 = vpop.f32.mrb[0].mxu0
      %4126 = vmatprep.mubr.f32.mxu0 0.0
      %4127 = vmatmul.mubr.f32.gmra.mrb[0].mxu0 %v1703
      %v4128 = vpop.f32.mrb[0].mxu0
      %v4129 = vadd.f32 0.0, %v4128
      %v4130 = vpop.f32.mrb[0].mxu0
      %4131 = vmatprep.mubr.f32.mxu0 0.0
      %4132 = vmatmul.mubr.f32.gmra.mrb[0].mxu0 %v1706
      %v4133 = vpop.f32.mrb[0].mxu0
      %v4134 = vadd.f32 0.0, %v4133
      %v4135 = vpop.f32.mrb[0].mxu0
      %4136 = vmatprep.mubr.f32.mxu0 0.0
      %4137 = vmatmul.mubr.f32.gmra.mrb[0].mxu0 %v1709
      %v4138 = vpop.f32.mrb[0].mxu0
      %v4139 = vadd.f32 0.0, %v4138
      %v4140 = vpop.f32.mrb[0].mxu0
      %4141 = vmatprep.mubr.f32.mxu0 0.0
      %4142 = vmatmul.mubr.f32.gmra.mrb[0].mxu0 %v1712
      %v4143 = vpop.f32.mrb[0].mxu0
      %v4144 = vadd.f32 0.0, %v4143
      %v4145 = vpop.f32.mrb[0].mxu0
      %4146 = vmatprep.mubr.f32.mxu0 0.0
      %4147 = vmatmul.mubr.f32.gmra.mrb[0].mxu0 %v1715
      %v4148 = vpop.f32.mrb[0].mxu0
      %v4149 = vadd.f32 0.0, %v4148
      %v4150 = vpop.f32.mrb[0].mxu0
      %4151 = vmatprep.mubr.f32.mxu0 0.0
      %4152 = vmatmul.mubr.f32.gmra.mrb[0].mxu0 %v1718
      %v4153 = vpop.f32.mrb[0].mxu0
      %v4154 = vadd.f32 0.0, %v4153
      %v4155 = vpop.f32.mrb[0].mxu0
      %4156 = vmatprep.mubr.f32.mxu0 0.0
      %4157 = vmatmul.mubr.f32.gmra.mrb[0].mxu0 %v1721
      %v4158 = vpop.f32.mrb[0].mxu0
      %v4159 = vadd.f32 0.0, %v4158
      %v4160 = vpop.f32.mrb[0].mxu0
      %4161 = vmatprep.mubr.f32.mxu0 0.0
      %4162 = vmatmul.mubr.f32.gmra.mrb[0].mxu0 %v1724
      %v4163 = vpop.f32.mrb[0].mxu0
      %v4164 = vadd.f32 0.0, %v4163
      %v4165 = vpop.f32.mrb[0].mxu0
      %4166 = vmatprep.mubr.f32.mxu0 0.0
      %4167 = vmatmul.mubr.f32.gmra.mrb[0].mxu0 %v1727
      %v4168 = vpop.f32.mrb[0].mxu0
      %v4169 = vadd.f32 0.0, %v4168
      %v4170 = vpop.f32.mrb[0].mxu0
      %4171 = vmatprep.mubr.f32.mxu0 0.0
      %4172 = vmatmul.mubr.f32.gmra.mrb[0].mxu0 %v1730
      %v4173 = vpop.f32.mrb[0].mxu0
      %v4174 = vadd.f32 0.0, %v4173
      %v4175 = vpop.f32.mrb[0].mxu0
      %4176 = vmatprep.mubr.f32.mxu0 0.0
      %4177 = vmatmul.mubr.f32.gmra.mrb[0].mxu0 %v1733
      %v4178 = vpop.f32.mrb[0].mxu0
      %v4179 = vadd.f32 0.0, %v4178
      %v4180 = vpop.f32.mrb[0].mxu0
      %4181 = vmatprep.mubr.f32.mxu0 0.0
      %4182 = vmatmul.mubr.f32.gmra.mrb[0].mxu0 %v1736
      %v4183 = vpop.f32.mrb[0].mxu0
      %v4184 = vadd.f32 0.0, %v4183
      %v4185 = vpop.f32.mrb[0].mxu0
      %4186 = vmatprep.mubr.f32.mxu0 0.0
      %4187 = vmatmul.mubr.f32.gmra.mrb[0].mxu0 %v1739
      %v4188 = vpop.f32.mrb[0].mxu0
      %v4189 = vadd.f32 0.0, %v4188
      %v4190 = vpop.f32.mrb[0].mxu0
      %4191 = vmatprep.mubr.f32.mxu0 0.0
      %4192 = vmatmul.mubr.f32.gmra.mrb[0].mxu0 %v1742
      %v4193 = vpop.f32.mrb[0].mxu0
      %v4194 = vadd.f32 0.0, %v4193
      %v4195 = vpop.f32.mrb[0].mxu0
      %4196 = vmatprep.mubr.f32.mxu0 0.0
      %4197 = vmatmul.mubr.f32.gmra.mrb[0].mxu0 %v1745
      %v4198 = vpop.f32.mrb[0].mxu0
      %v4199 = vadd.f32 0.0, %v4198
      %v4200 = vpop.f32.mrb[0].mxu0
      %4201 = vmatprep.mubr.f32.mxu0 0.0
      %4202 = vmatmul.mubr.f32.gmra.mrb[0].mxu0 %v1748
      %v4203 = vpop.f32.mrb[0].mxu0
      %v4204 = vadd.f32 0.0, %v4203
      %v4205 = vpop.f32.mrb[0].mxu0
      %4206 = vmatprep.mubr.f32.mxu0 0.0
      %4207 = vmatmul.mubr.f32.gmra.mrb[0].mxu0 %v1751
      %v4208 = vpop.f32.mrb[0].mxu0
      %v4209 = vadd.f32 0.0, %v4208
      %v4210 = vpop.f32.mrb[0].mxu0
      %4211 = vmatprep.mubr.f32.mxu0 0.0
      %4212 = vmatmul.mubr.f32.gmra.mrb[0].mxu0 %v1754
      %v4213 = vpop.f32.mrb[0].mxu0
      %v4214 = vadd.f32 0.0, %v4213
      %v4215 = vpop.f32.mrb[0].mxu0
      %4216 = vmatprep.mubr.f32.mxu0 0.0
      %4217 = vmatmul.mubr.f32.gmra.mrb[0].mxu0 %v2477
      %v4218 = vpop.f32.mrb[0].mxu0
      %v4219 = vadd.f32 0.0, %v4218
      %v4220 = vpop.f32.mrb[0].mxu0
      %4221 = vmatprep.mubr.f32.mxu0 0.0
      %4222 = vmatmul.mubr.f32.gmra.mrb[0].mxu0 %v2480
      %v4223 = vpop.f32.mrb[0].mxu0
      %v4224 = vadd.f32 0.0, %v4223
      %v4225 = vpop.f32.mrb[0].mxu0
      %4226 = vdwg.mxu0
      %v4228 = vsel %vm529, %v3996, 0
      %4230 = vmatprep.subr.mxu0 0.0
      %4231 = vmatpush1.msra.mxu0 %v4228
      %4232 = vmatprep.subr.mxu0 0.0
      %4233 = vmatpush1.msra.mxu0 0.0
      %4234 = vmatprep.subr.mxu0 0.0
      %4235 = vmatpush1.msra.mxu0 0.0
      %4236 = vmatprep.subr.mxu0 0.0
      %4237 = vmatpush1.msra.mxu0 0.0
      %4238 = vmatprep.subr.mxu0 0.0
      %4239 = vmatpush1.msra.mxu0 0.0
      %4240 = vmatprep.subr.mxu0 0.0
      %4241 = vmatpush1.msra.mxu0 0.0
      %4242 = vmatprep.subr.mxu0 0.0
      %4243 = vmatpush1.msra.mxu0 0.0
      %4244 = vmatprep.subr.mxu0 0.0
      %4245 = vmatpush1.msra.mxu0 0.0
      %4246 = vmatprep.subr.mxu0 0.0
      %4247 = vmatpush1.msra.mxu0 0.0
      %4248 = vmatprep.subr.mxu0 0.0
      %4249 = vmatpush1.msra.mxu0 0.0
      %4250 = vmatprep.subr.mxu0 0.0
      %4251 = vmatpush1.msra.mxu0 0.0
      %4252 = vmatprep.subr.mxu0 0.0
      %4253 = vmatpush1.msra.mxu0 0.0
      %4254 = vmatprep.subr.mxu0 0.0
      %4255 = vmatpush1.msra.mxu0 0.0
      %4256 = vmatprep.subr.mxu0 0.0
      %4257 = vmatpush1.msra.mxu0 0.0
      %4258 = vmatprep.subr.mxu0 0.0
      %4259 = vmatpush1.msra.mxu0 0.0
      %4260 = vmatprep.subr.mxu0 0.0
      %4261 = vmatpush1.msra.mxu0 0.0
      %4262 = vmatprep.subr.mxu0 0.0
      %4263 = vmatpush1.msra.mxu0 0.0
      %4264 = vmatprep.subr.mxu0 0.0
      %4265 = vmatpush1.msra.mxu0 0.0
      %4266 = vmatprep.subr.mxu0 0.0
      %4267 = vmatpush1.msra.mxu0 0.0
      %4268 = vmatprep.subr.mxu0 0.0
      %4269 = vmatpush1.msra.mxu0 0.0
      %4270 = vmatprep.subr.mxu0 0.0
      %4271 = vmatpush1.msra.mxu0 0.0
      %4272 = vmatprep.subr.mxu0 0.0
      %4273 = vmatpush1.msra.mxu0 0.0
      %4274 = vmatprep.subr.mxu0 0.0
      %4275 = vmatpush1.msra.mxu0 0.0
      %4276 = vmatprep.subr.mxu0 0.0
      %4277 = vmatpush1.msra.mxu0 0.0
      %4278 = vmatprep.subr.mxu0 0.0
      %4279 = vmatpush1.msra.mxu0 0.0
      %4280 = vmatprep.subr.mxu0 0.0
      %4281 = vmatpush1.msra.mxu0 0.0
      %4282 = vmatprep.subr.mxu0 0.0
      %4283 = vmatpush1.msra.mxu0 0.0
      %4284 = vmatprep.subr.mxu0 0.0
      %4285 = vmatpush1.msra.mxu0 0.0
      %4286 = vmatprep.subr.mxu0 0.0
      %4287 = vmatpush1.msra.mxu0 0.0
      %4288 = vmatprep.subr.mxu0 0.0
      %4289 = vmatpush1.msra.mxu0 0.0
      %4290 = vmatprep.subr.mxu0 0.0
      %4291 = vmatpush1.msra.mxu0 0.0
      %4292 = vmatprep.subr.mxu0 0.0
      %4293 = vmatpush1.msra.mxu0 0.0
      %4294 = vmatprep.mubr.f32.mxu0 0.0
      %4295 = vmatmul.mubr.f32.gmra.mrb[0].mxu0 %v440
      %v4296 = vpop.f32.mrb[0].mxu0
      %v4297 = vadd.f32 %v4069, %v4296
      %v4298 = vpop.f32.mrb[0].mxu0
      %4299 = vmatprep.mubr.f32.mxu0 0.0
      %4300 = vmatmul.mubr.f32.gmra.mrb[0].mxu0 %v443
      %v4301 = vpop.f32.mrb[0].mxu0
      %v4302 = vadd.f32 %v4074, %v4301
      %v4303 = vpop.f32.mrb[0].mxu0
      %4304 = vmatprep.mubr.f32.mxu0 0.0
      %4305 = vmatmul.mubr.f32.gmra.mrb[0].mxu0 %v446
      %v4306 = vpop.f32.mrb[0].mxu0
      %v4307 = vadd.f32 %v4079, %v4306
      %v4308 = vpop.f32.mrb[0].mxu0
      %4309 = vmatprep.mubr.f32.mxu0 0.0
      %4310 = vmatmul.mubr.f32.gmra.mrb[0].mxu0 %v449
      %v4311 = vpop.f32.mrb[0].mxu0
      %v4312 = vadd.f32 %v4084, %v4311
      %v4313 = vpop.f32.mrb[0].mxu0
      %4314 = vmatprep.mubr.f32.mxu0 0.0
      %4315 = vmatmul.mubr.f32.gmra.mrb[0].mxu0 %v452
      %v4316 = vpop.f32.mrb[0].mxu0
      %v4317 = vadd.f32 %v4089, %v4316
      %v4318 = vpop.f32.mrb[0].mxu0
      %4319 = vmatprep.mubr.f32.mxu0 0.0
      %4320 = vmatmul.mubr.f32.gmra.mrb[0].mxu0 %v455
      %v4321 = vpop.f32.mrb[0].mxu0
      %v4322 = vadd.f32 %v4094, %v4321
      %v4323 = vpop.f32.mrb[0].mxu0
      %4324 = vmatprep.mubr.f32.mxu0 0.0
      %4325 = vmatmul.mubr.f32.gmra.mrb[0].mxu0 %v458
      %v4326 = vpop.f32.mrb[0].mxu0
      %v4327 = vadd.f32 %v4099, %v4326
      %v4328 = vpop.f32.mrb[0].mxu0
      %4329 = vmatprep.mubr.f32.mxu0 0.0
      %4330 = vmatmul.mubr.f32.gmra.mrb[0].mxu0 %v461
      %v4331 = vpop.f32.mrb[0].mxu0
      %v4332 = vadd.f32 %v4104, %v4331
      %v4333 = vpop.f32.mrb[0].mxu0
      %4334 = vmatprep.mubr.f32.mxu0 0.0
      %4335 = vmatmul.mubr.f32.gmra.mrb[0].mxu0 %v464
      %v4336 = vpop.f32.mrb[0].mxu0
      %v4337 = vadd.f32 %v4109, %v4336
      %v4338 = vpop.f32.mrb[0].mxu0
      %4339 = vmatprep.mubr.f32.mxu0 0.0
      %4340 = vmatmul.mubr.f32.gmra.mrb[0].mxu0 %v467
      %v4341 = vpop.f32.mrb[0].mxu0
      %v4342 = vadd.f32 %v4114, %v4341
      %v4343 = vpop.f32.mrb[0].mxu0
      %4344 = vmatprep.mubr.f32.mxu0 0.0
      %4345 = vmatmul.mubr.f32.gmra.mrb[0].mxu0 %v470
      %v4346 = vpop.f32.mrb[0].mxu0
      %v4347 = vadd.f32 %v4119, %v4346
      %v4348 = vpop.f32.mrb[0].mxu0
      %4349 = vmatprep.mubr.f32.mxu0 0.0
      %4350 = vmatmul.mubr.f32.gmra.mrb[0].mxu0 %v473
      %v4351 = vpop.f32.mrb[0].mxu0
      %v4352 = vadd.f32 %v4124, %v4351
      %v4353 = vpop.f32.mrb[0].mxu0
      %4354 = vmatprep.mubr.f32.mxu0 0.0
      %4355 = vmatmul.mubr.f32.gmra.mrb[0].mxu0 %v476
      %v4356 = vpop.f32.mrb[0].mxu0
      %v4357 = vadd.f32 %v4129, %v4356
      %v4358 = vpop.f32.mrb[0].mxu0
      %4359 = vmatprep.mubr.f32.mxu0 0.0
      %4360 = vmatmul.mubr.f32.gmra.mrb[0].mxu0 %v479
      %v4361 = vpop.f32.mrb[0].mxu0
      %v4362 = vadd.f32 %v4134, %v4361
      %v4363 = vpop.f32.mrb[0].mxu0
      %4364 = vmatprep.mubr.f32.mxu0 0.0
      %4365 = vmatmul.mubr.f32.gmra.mrb[0].mxu0 %v482
      %v4366 = vpop.f32.mrb[0].mxu0
      %v4367 = vadd.f32 %v4139, %v4366
      %v4368 = vpop.f32.mrb[0].mxu0
      %4369 = vmatprep.mubr.f32.mxu0 0.0
      %4370 = vmatmul.mubr.f32.gmra.mrb[0].mxu0 %v485
      %v4371 = vpop.f32.mrb[0].mxu0
      %v4372 = vadd.f32 %v4144, %v4371
      %v4373 = vpop.f32.mrb[0].mxu0
      %4374 = vmatprep.mubr.f32.mxu0 0.0
      %4375 = vmatmul.mubr.f32.gmra.mrb[0].mxu0 %v488
      %v4376 = vpop.f32.mrb[0].mxu0
      %v4377 = vadd.f32 %v4149, %v4376
      %v4378 = vpop.f32.mrb[0].mxu0
      %4379 = vmatprep.mubr.f32.mxu0 0.0
      %4380 = vmatmul.mubr.f32.gmra.mrb[0].mxu0 %v491
      %v4381 = vpop.f32.mrb[0].mxu0
      %v4382 = vadd.f32 %v4154, %v4381
      %v4383 = vpop.f32.mrb[0].mxu0
      %4384 = vmatprep.mubr.f32.mxu0 0.0
      %4385 = vmatmul.mubr.f32.gmra.mrb[0].mxu0 %v494
      %v4386 = vpop.f32.mrb[0].mxu0
      %v4387 = vadd.f32 %v4159, %v4386
      %v4388 = vpop.f32.mrb[0].mxu0
      %4389 = vmatprep.mubr.f32.mxu0 0.0
      %4390 = vmatmul.mubr.f32.gmra.mrb[0].mxu0 %v497
      %v4391 = vpop.f32.mrb[0].mxu0
      %v4392 = vadd.f32 %v4164, %v4391
      %v4393 = vpop.f32.mrb[0].mxu0
      %4394 = vmatprep.mubr.f32.mxu0 0.0
      %4395 = vmatmul.mubr.f32.gmra.mrb[0].mxu0 %v500
      %v4396 = vpop.f32.mrb[0].mxu0
      %v4397 = vadd.f32 %v4169, %v4396
      %v4398 = vpop.f32.mrb[0].mxu0
      %4399 = vmatprep.mubr.f32.mxu0 0.0
      %4400 = vmatmul.mubr.f32.gmra.mrb[0].mxu0 %v503
      %v4401 = vpop.f32.mrb[0].mxu0
      %v4402 = vadd.f32 %v4174, %v4401
      %v4403 = vpop.f32.mrb[0].mxu0
      %4404 = vmatprep.mubr.f32.mxu0 0.0
      %4405 = vmatmul.mubr.f32.gmra.mrb[0].mxu0 %v506
      %v4406 = vpop.f32.mrb[0].mxu0
      %v4407 = vadd.f32 %v4179, %v4406
      %v4408 = vpop.f32.mrb[0].mxu0
      %4409 = vmatprep.mubr.f32.mxu0 0.0
      %4410 = vmatmul.mubr.f32.gmra.mrb[0].mxu0 %v509
      %v4411 = vpop.f32.mrb[0].mxu0
      %v4412 = vadd.f32 %v4184, %v4411
      %v4413 = vpop.f32.mrb[0].mxu0
      %4414 = vmatprep.mubr.f32.mxu0 0.0
      %4415 = vmatmul.mubr.f32.gmra.mrb[0].mxu0 %v512
      %v4416 = vpop.f32.mrb[0].mxu0
      %v4417 = vadd.f32 %v4189, %v4416
      %v4418 = vpop.f32.mrb[0].mxu0
      %4419 = vmatprep.mubr.f32.mxu0 0.0
      %4420 = vmatmul.mubr.f32.gmra.mrb[0].mxu0 %v515
      %v4421 = vpop.f32.mrb[0].mxu0
      %v4422 = vadd.f32 %v4194, %v4421
      %v4423 = vpop.f32.mrb[0].mxu0
      %4424 = vmatprep.mubr.f32.mxu0 0.0
      %4425 = vmatmul.mubr.f32.gmra.mrb[0].mxu0 %v518
      %v4426 = vpop.f32.mrb[0].mxu0
      %v4427 = vadd.f32 %v4199, %v4426
      %v4428 = vpop.f32.mrb[0].mxu0
      %4429 = vmatprep.mubr.f32.mxu0 0.0
      %4430 = vmatmul.mubr.f32.gmra.mrb[0].mxu0 %v521
      %v4431 = vpop.f32.mrb[0].mxu0
      %v4432 = vadd.f32 %v4204, %v4431
      %v4433 = vpop.f32.mrb[0].mxu0
      %4434 = vmatprep.mubr.f32.mxu0 0.0
      %4435 = vmatmul.mubr.f32.gmra.mrb[0].mxu0 %v524
      %v4436 = vpop.f32.mrb[0].mxu0
      %v4437 = vadd.f32 %v4209, %v4436
      %v4438 = vpop.f32.mrb[0].mxu0
      %4439 = vmatprep.mubr.f32.mxu0 0.0
      %4440 = vmatmul.mubr.f32.gmra.mrb[0].mxu0 %v527
      %v4441 = vpop.f32.mrb[0].mxu0
      %v4442 = vadd.f32 %v4214, %v4441
      %v4443 = vpop.f32.mrb[0].mxu0
      %4444 = vmatprep.mubr.f32.mxu0 0.0
      %4445 = vmatmul.mubr.f32.gmra.mrb[0].mxu0 %v1353
      %v4446 = vpop.f32.mrb[0].mxu0
      %v4447 = vadd.f32 %v4219, %v4446
      %v4448 = vpop.f32.mrb[0].mxu0
      %4449 = vmatprep.mubr.f32.mxu0 0.0
      %4450 = vmatmul.mubr.f32.gmra.mrb[0].mxu0 %v1356
      %v4451 = vpop.f32.mrb[0].mxu0
      %v4452 = vadd.f32 %v4224, %v4451
      %v4453 = vpop.f32.mrb[0].mxu0
      %4454 = vdwg.mxu0
      %s4455 = scalar_lea.vmem %s2, 56
      %v4456 = vld [vmem:[%s4455] sm:$0xf]
      %v4458 = vsel %vm529, %v4456, 0
      %4460 = vmatprep.subr.mxu0 0.0
      %4461 = vmatpush1.msra.mxu0 %v4458
      %4462 = vmatprep.subr.mxu0 0.0
      %4463 = vmatpush1.msra.mxu0 0.0
      %4464 = vmatprep.subr.mxu0 0.0
      %4465 = vmatpush1.msra.mxu0 0.0
      %4466 = vmatprep.subr.mxu0 0.0
      %4467 = vmatpush1.msra.mxu0 0.0
      %4468 = vmatprep.subr.mxu0 0.0
      %4469 = vmatpush1.msra.mxu0 0.0
      %4470 = vmatprep.subr.mxu0 0.0
      %4471 = vmatpush1.msra.mxu0 0.0
      %4472 = vmatprep.subr.mxu0 0.0
      %4473 = vmatpush1.msra.mxu0 0.0
      %4474 = vmatprep.subr.mxu0 0.0
      %4475 = vmatpush1.msra.mxu0 0.0
      %4476 = vmatprep.subr.mxu0 0.0
      %4477 = vmatpush1.msra.mxu0 0.0
      %4478 = vmatprep.subr.mxu0 0.0
      %4479 = vmatpush1.msra.mxu0 0.0
      %4480 = vmatprep.subr.mxu0 0.0
      %4481 = vmatpush1.msra.mxu0 0.0
      %4482 = vmatprep.subr.mxu0 0.0
      %4483 = vmatpush1.msra.mxu0 0.0
      %4484 = vmatprep.subr.mxu0 0.0
      %4485 = vmatpush1.msra.mxu0 0.0
      %4486 = vmatprep.subr.mxu0 0.0
      %4487 = vmatpush1.msra.mxu0 0.0
      %4488 = vmatprep.subr.mxu0 0.0
      %4489 = vmatpush1.msra.mxu0 0.0
      %4490 = vmatprep.subr.mxu0 0.0
      %4491 = vmatpush1.msra.mxu0 0.0
      %4492 = vmatprep.subr.mxu0 0.0
      %4493 = vmatpush1.msra.mxu0 0.0
      %4494 = vmatprep.subr.mxu0 0.0
      %4495 = vmatpush1.msra.mxu0 0.0
      %4496 = vmatprep.subr.mxu0 0.0
      %4497 = vmatpush1.msra.mxu0 0.0
      %4498 = vmatprep.subr.mxu0 0.0
      %4499 = vmatpush1.msra.mxu0 0.0
      %4500 = vmatprep.subr.mxu0 0.0
      %4501 = vmatpush1.msra.mxu0 0.0
      %4502 = vmatprep.subr.mxu0 0.0
      %4503 = vmatpush1.msra.mxu0 0.0
      %4504 = vmatprep.subr.mxu0 0.0
      %4505 = vmatpush1.msra.mxu0 0.0
      %4506 = vmatprep.subr.mxu0 0.0
      %4507 = vmatpush1.msra.mxu0 0.0
      %4508 = vmatprep.subr.mxu0 0.0
      %4509 = vmatpush1.msra.mxu0 0.0
      %4510 = vmatprep.subr.mxu0 0.0
      %4511 = vmatpush1.msra.mxu0 0.0
      %4512 = vmatprep.subr.mxu0 0.0
      %4513 = vmatpush1.msra.mxu0 0.0
      %4514 = vmatprep.subr.mxu0 0.0
      %4515 = vmatpush1.msra.mxu0 0.0
      %4516 = vmatprep.subr.mxu0 0.0
      %4517 = vmatpush1.msra.mxu0 0.0
      %4518 = vmatprep.subr.mxu0 0.0
      %4519 = vmatpush1.msra.mxu0 0.0
      %4520 = vmatprep.subr.mxu0 0.0
      %4521 = vmatpush1.msra.mxu0 0.0
      %4522 = vmatprep.subr.mxu0 0.0
      %4523 = vmatpush1.msra.mxu0 0.0
      %4524 = vmatprep.mubr.f32.mxu0 0.0
      %4525 = vmatmul.mubr.f32.gmra.mrb[0].mxu0 %v446
      %v4526 = vpop.f32.mrb[0].mxu0
      %v4527 = vadd.f32 0.0, %v4526
      %v4528 = vpop.f32.mrb[0].mxu0
      %4529 = vmatprep.mubr.f32.mxu0 0.0
      %4530 = vmatmul.mubr.f32.gmra.mrb[0].mxu0 %v449
      %v4531 = vpop.f32.mrb[0].mxu0
      %v4532 = vadd.f32 0.0, %v4531
      %v4533 = vpop.f32.mrb[0].mxu0
      %4534 = vmatprep.mubr.f32.mxu0 0.0
      %4535 = vmatmul.mubr.f32.gmra.mrb[0].mxu0 %v452
      %v4536 = vpop.f32.mrb[0].mxu0
      %v4537 = vadd.f32 0.0, %v4536
      %v4538 = vpop.f32.mrb[0].mxu0
      %4539 = vmatprep.mubr.f32.mxu0 0.0
      %4540 = vmatmul.mubr.f32.gmra.mrb[0].mxu0 %v455
      %v4541 = vpop.f32.mrb[0].mxu0
      %v4542 = vadd.f32 0.0, %v4541
      %v4543 = vpop.f32.mrb[0].mxu0
      %4544 = vmatprep.mubr.f32.mxu0 0.0
      %4545 = vmatmul.mubr.f32.gmra.mrb[0].mxu0 %v458
      %v4546 = vpop.f32.mrb[0].mxu0
      %v4547 = vadd.f32 0.0, %v4546
      %v4548 = vpop.f32.mrb[0].mxu0
      %4549 = vmatprep.mubr.f32.mxu0 0.0
      %4550 = vmatmul.mubr.f32.gmra.mrb[0].mxu0 %v461
      %v4551 = vpop.f32.mrb[0].mxu0
      %v4552 = vadd.f32 0.0, %v4551
      %v4553 = vpop.f32.mrb[0].mxu0
      %4554 = vmatprep.mubr.f32.mxu0 0.0
      %4555 = vmatmul.mubr.f32.gmra.mrb[0].mxu0 %v464
      %v4556 = vpop.f32.mrb[0].mxu0
      %v4557 = vadd.f32 0.0, %v4556
      %v4558 = vpop.f32.mrb[0].mxu0
      %4559 = vmatprep.mubr.f32.mxu0 0.0
      %4560 = vmatmul.mubr.f32.gmra.mrb[0].mxu0 %v467
      %v4561 = vpop.f32.mrb[0].mxu0
      %v4562 = vadd.f32 0.0, %v4561
      %v4563 = vpop.f32.mrb[0].mxu0
      %4564 = vmatprep.mubr.f32.mxu0 0.0
      %4565 = vmatmul.mubr.f32.gmra.mrb[0].mxu0 %v470
      %v4566 = vpop.f32.mrb[0].mxu0
      %v4567 = vadd.f32 0.0, %v4566
      %v4568 = vpop.f32.mrb[0].mxu0
      %4569 = vmatprep.mubr.f32.mxu0 0.0
      %4570 = vmatmul.mubr.f32.gmra.mrb[0].mxu0 %v473
      %v4571 = vpop.f32.mrb[0].mxu0
      %v4572 = vadd.f32 0.0, %v4571
      %v4573 = vpop.f32.mrb[0].mxu0
      %4574 = vmatprep.mubr.f32.mxu0 0.0
      %4575 = vmatmul.mubr.f32.gmra.mrb[0].mxu0 %v476
      %v4576 = vpop.f32.mrb[0].mxu0
      %v4577 = vadd.f32 0.0, %v4576
      %v4578 = vpop.f32.mrb[0].mxu0
      %4579 = vmatprep.mubr.f32.mxu0 0.0
      %4580 = vmatmul.mubr.f32.gmra.mrb[0].mxu0 %v479
      %v4581 = vpop.f32.mrb[0].mxu0
      %v4582 = vadd.f32 0.0, %v4581
      %v4583 = vpop.f32.mrb[0].mxu0
      %4584 = vmatprep.mubr.f32.mxu0 0.0
      %4585 = vmatmul.mubr.f32.gmra.mrb[0].mxu0 %v482
      %v4586 = vpop.f32.mrb[0].mxu0
      %v4587 = vadd.f32 0.0, %v4586
      %v4588 = vpop.f32.mrb[0].mxu0
      %4589 = vmatprep.mubr.f32.mxu0 0.0
      %4590 = vmatmul.mubr.f32.gmra.mrb[0].mxu0 %v485
      %v4591 = vpop.f32.mrb[0].mxu0
      %v4592 = vadd.f32 0.0, %v4591
      %v4593 = vpop.f32.mrb[0].mxu0
      %4594 = vmatprep.mubr.f32.mxu0 0.0
      %4595 = vmatmul.mubr.f32.gmra.mrb[0].mxu0 %v488
      %v4596 = vpop.f32.mrb[0].mxu0
      %v4597 = vadd.f32 0.0, %v4596
      %v4598 = vpop.f32.mrb[0].mxu0
      %4599 = vmatprep.mubr.f32.mxu0 0.0
      %4600 = vmatmul.mubr.f32.gmra.mrb[0].mxu0 %v491
      %v4601 = vpop.f32.mrb[0].mxu0
      %v4602 = vadd.f32 0.0, %v4601
      %v4603 = vpop.f32.mrb[0].mxu0
      %4604 = vmatprep.mubr.f32.mxu0 0.0
      %4605 = vmatmul.mubr.f32.gmra.mrb[0].mxu0 %v494
      %v4606 = vpop.f32.mrb[0].mxu0
      %v4607 = vadd.f32 0.0, %v4606
      %v4608 = vpop.f32.mrb[0].mxu0
      %4609 = vmatprep.mubr.f32.mxu0 0.0
      %4610 = vmatmul.mubr.f32.gmra.mrb[0].mxu0 %v497
      %v4611 = vpop.f32.mrb[0].mxu0
      %v4612 = vadd.f32 0.0, %v4611
      %v4613 = vpop.f32.mrb[0].mxu0
      %4614 = vmatprep.mubr.f32.mxu0 0.0
      %4615 = vmatmul.mubr.f32.gmra.mrb[0].mxu0 %v500
      %v4616 = vpop.f32.mrb[0].mxu0
      %v4617 = vadd.f32 0.0, %v4616
      %v4618 = vpop.f32.mrb[0].mxu0
      %4619 = vmatprep.mubr.f32.mxu0 0.0
      %4620 = vmatmul.mubr.f32.gmra.mrb[0].mxu0 %v503
      %v4621 = vpop.f32.mrb[0].mxu0
      %v4622 = vadd.f32 0.0, %v4621
      %v4623 = vpop.f32.mrb[0].mxu0
      %4624 = vmatprep.mubr.f32.mxu0 0.0
      %4625 = vmatmul.mubr.f32.gmra.mrb[0].mxu0 %v506
      %v4626 = vpop.f32.mrb[0].mxu0
      %v4627 = vadd.f32 0.0, %v4626
      %v4628 = vpop.f32.mrb[0].mxu0
      %4629 = vmatprep.mubr.f32.mxu0 0.0
      %4630 = vmatmul.mubr.f32.gmra.mrb[0].mxu0 %v509
      %v4631 = vpop.f32.mrb[0].mxu0
      %v4632 = vadd.f32 0.0, %v4631
      %v4633 = vpop.f32.mrb[0].mxu0
      %4634 = vmatprep.mubr.f32.mxu0 0.0
      %4635 = vmatmul.mubr.f32.gmra.mrb[0].mxu0 %v512
      %v4636 = vpop.f32.mrb[0].mxu0
      %v4637 = vadd.f32 0.0, %v4636
      %v4638 = vpop.f32.mrb[0].mxu0
      %4639 = vmatprep.mubr.f32.mxu0 0.0
      %4640 = vmatmul.mubr.f32.gmra.mrb[0].mxu0 %v515
      %v4641 = vpop.f32.mrb[0].mxu0
      %v4642 = vadd.f32 0.0, %v4641
      %v4643 = vpop.f32.mrb[0].mxu0
      %4644 = vmatprep.mubr.f32.mxu0 0.0
      %4645 = vmatmul.mubr.f32.gmra.mrb[0].mxu0 %v518
      %v4646 = vpop.f32.mrb[0].mxu0
      %v4647 = vadd.f32 0.0, %v4646
      %v4648 = vpop.f32.mrb[0].mxu0
      %4649 = vmatprep.mubr.f32.mxu0 0.0
      %4650 = vmatmul.mubr.f32.gmra.mrb[0].mxu0 %v521
      %v4651 = vpop.f32.mrb[0].mxu0
      %v4652 = vadd.f32 0.0, %v4651
      %v4653 = vpop.f32.mrb[0].mxu0
      %4654 = vmatprep.mubr.f32.mxu0 0.0
      %4655 = vmatmul.mubr.f32.gmra.mrb[0].mxu0 %v524
      %v4656 = vpop.f32.mrb[0].mxu0
      %v4657 = vadd.f32 0.0, %v4656
      %v4658 = vpop.f32.mrb[0].mxu0
      %4659 = vmatprep.mubr.f32.mxu0 0.0
      %4660 = vmatmul.mubr.f32.gmra.mrb[0].mxu0 %v527
      %v4661 = vpop.f32.mrb[0].mxu0
      %v4662 = vadd.f32 0.0, %v4661
      %v4663 = vpop.f32.mrb[0].mxu0
      %4664 = vmatprep.mubr.f32.mxu0 0.0
      %4665 = vmatmul.mubr.f32.gmra.mrb[0].mxu0 %v1353
      %v4666 = vpop.f32.mrb[0].mxu0
      %v4667 = vadd.f32 0.0, %v4666
      %v4668 = vpop.f32.mrb[0].mxu0
      %4669 = vmatprep.mubr.f32.mxu0 0.0
      %4670 = vmatmul.mubr.f32.gmra.mrb[0].mxu0 %v1356
      %v4671 = vpop.f32.mrb[0].mxu0
      %v4672 = vadd.f32 0.0, %v4671
      %v4673 = vpop.f32.mrb[0].mxu0
      %4674 = vmatprep.mubr.f32.mxu0 0.0
      %4675 = vmatmul.mubr.f32.gmra.mrb[0].mxu0 %v3698
      %v4676 = vpop.f32.mrb[0].mxu0
      %v4677 = vadd.f32 0.0, %v4676
      %v4678 = vpop.f32.mrb[0].mxu0
      %4679 = vmatprep.mubr.f32.mxu0 0.0
      %4680 = vmatmul.mubr.f32.gmra.mrb[0].mxu0 %v3701
      %v4681 = vpop.f32.mrb[0].mxu0
      %v4682 = vadd.f32 0.0, %v4681
      %v4683 = vpop.f32.mrb[0].mxu0
      %4684 = vdwg.mxu0
      %v4685 = vadd.f32 %v4297, %v4527
      %v4686 = vadd.f32 %v4302, %v4532
      %v4687 = vadd.f32 %v4307, %v4537
      %v4688 = vadd.f32 %v4312, %v4542
      %v4689 = vadd.f32 %v4317, %v4547
      %v4690 = vadd.f32 %v4322, %v4552
      %v4691 = vadd.f32 %v4327, %v4557
      %v4692 = vadd.f32 %v4332, %v4562
      %v4693 = vadd.f32 %v4337, %v4567
      %v4694 = vadd.f32 %v4342, %v4572
      %v4695 = vadd.f32 %v4347, %v4577
      %v4696 = vadd.f32 %v4352, %v4582
      %v4697 = vadd.f32 %v4357, %v4587
      %v4698 = vadd.f32 %v4362, %v4592
      %v4699 = vadd.f32 %v4367, %v4597
      %v4700 = vadd.f32 %v4372, %v4602
      %v4701 = vadd.f32 %v4377, %v4607
      %v4702 = vadd.f32 %v4382, %v4612
      %v4703 = vadd.f32 %v4387, %v4617
      %v4704 = vadd.f32 %v4392, %v4622
      %v4705 = vadd.f32 %v4397, %v4627
      %v4706 = vadd.f32 %v4402, %v4632
      %v4707 = vadd.f32 %v4407, %v4637
      %v4708 = vadd.f32 %v4412, %v4642
      %v4709 = vadd.f32 %v4417, %v4647
      %v4710 = vadd.f32 %v4422, %v4652
      %v4711 = vadd.f32 %v4427, %v4657
      %v4712 = vadd.f32 %v4432, %v4662
      %v4713 = vadd.f32 %v4437, %v4667
      %v4714 = vadd.f32 %v4442, %v4672
      %v4715 = vadd.f32 %v4447, %v4677
      %v4716 = vadd.f32 %v4452, %v4682
      %s4717 = scalar_lea.vmem %s2, 60
      %v4718 = vld [vmem:[%s4717] sm:$0xf]
      %v4720 = vsel %vm432, %v427, 0
      %v4723 = vsel %vm432, %v428, 0
      %v4726 = vsel %vm529, %v4718, 0
      %4728 = vmatprep.subr.mxu0 0.0
      %4729 = vmatpush1.msra.mxu0 %v4726
      %4730 = vmatprep.subr.mxu0 0.0
      %4731 = vmatpush1.msra.mxu0 0.0
      %4732 = vmatprep.subr.mxu0 0.0
      %4733 = vmatpush1.msra.mxu0 0.0
      %4734 = vmatprep.subr.mxu0 0.0
      %4735 = vmatpush1.msra.mxu0 0.0
      %4736 = vmatprep.subr.mxu0 0.0
      %4737 = vmatpush1.msra.mxu0 0.0
      %4738 = vmatprep.subr.mxu0 0.0
      %4739 = vmatpush1.msra.mxu0 0.0
      %4740 = vmatprep.subr.mxu0 0.0
      %4741 = vmatpush1.msra.mxu0 0.0
      %4742 = vmatprep.subr.mxu0 0.0
      %4743 = vmatpush1.msra.mxu0 0.0
      %4744 = vmatprep.subr.mxu0 0.0
      %4745 = vmatpush1.msra.mxu0 0.0
      %4746 = vmatprep.subr.mxu0 0.0
      %4747 = vmatpush1.msra.mxu0 0.0
      %4748 = vmatprep.subr.mxu0 0.0
      %4749 = vmatpush1.msra.mxu0 0.0
      %4750 = vmatprep.subr.mxu0 0.0
      %4751 = vmatpush1.msra.mxu0 0.0
      %4752 = vmatprep.subr.mxu0 0.0
      %4753 = vmatpush1.msra.mxu0 0.0
      %4754 = vmatprep.subr.mxu0 0.0
      %4755 = vmatpush1.msra.mxu0 0.0
      %4756 = vmatprep.subr.mxu0 0.0
      %4757 = vmatpush1.msra.mxu0 0.0
      %4758 = vmatprep.subr.mxu0 0.0
      %4759 = vmatpush1.msra.mxu0 0.0
      %4760 = vmatprep.subr.mxu0 0.0
      %4761 = vmatpush1.msra.mxu0 0.0
      %4762 = vmatprep.subr.mxu0 0.0
      %4763 = vmatpush1.msra.mxu0 0.0
      %4764 = vmatprep.subr.mxu0 0.0
      %4765 = vmatpush1.msra.mxu0 0.0
      %4766 = vmatprep.subr.mxu0 0.0
      %4767 = vmatpush1.msra.mxu0 0.0
      %4768 = vmatprep.subr.mxu0 0.0
      %4769 = vmatpush1.msra.mxu0 0.0
      %4770 = vmatprep.subr.mxu0 0.0
      %4771 = vmatpush1.msra.mxu0 0.0
      %4772 = vmatprep.subr.mxu0 0.0
      %4773 = vmatpush1.msra.mxu0 0.0
      %4774 = vmatprep.subr.mxu0 0.0
      %4775 = vmatpush1.msra.mxu0 0.0
      %4776 = vmatprep.subr.mxu0 0.0
      %4777 = vmatpush1.msra.mxu0 0.0
      %4778 = vmatprep.subr.mxu0 0.0
      %4779 = vmatpush1.msra.mxu0 0.0
      %4780 = vmatprep.subr.mxu0 0.0
      %4781 = vmatpush1.msra.mxu0 0.0
      %4782 = vmatprep.subr.mxu0 0.0
      %4783 = vmatpush1.msra.mxu0 0.0
      %4784 = vmatprep.subr.mxu0 0.0
      %4785 = vmatpush1.msra.mxu0 0.0
      %4786 = vmatprep.subr.mxu0 0.0
      %4787 = vmatpush1.msra.mxu0 0.0
      %4788 = vmatprep.subr.mxu0 0.0
      %4789 = vmatpush1.msra.mxu0 0.0
      %4790 = vmatprep.subr.mxu0 0.0
      %4791 = vmatpush1.msra.mxu0 0.0
      %4792 = vmatprep.mubr.f32.mxu0 0.0
      %4793 = vmatmul.mubr.f32.gmra.mrb[0].mxu0 %v1673
      %v4794 = vpop.f32.mrb[0].mxu0
      %v4795 = vadd.f32 0.0, %v4794
      %v4796 = vpop.f32.mrb[0].mxu0
      %4797 = vmatprep.mubr.f32.mxu0 0.0
      %4798 = vmatmul.mubr.f32.gmra.mrb[0].mxu0 %v1676
      %v4799 = vpop.f32.mrb[0].mxu0
      %v4800 = vadd.f32 0.0, %v4799
      %v4801 = vpop.f32.mrb[0].mxu0
      %4802 = vmatprep.mubr.f32.mxu0 0.0
      %4803 = vmatmul.mubr.f32.gmra.mrb[0].mxu0 %v1679
      %v4804 = vpop.f32.mrb[0].mxu0
      %v4805 = vadd.f32 0.0, %v4804
      %v4806 = vpop.f32.mrb[0].mxu0
      %4807 = vmatprep.mubr.f32.mxu0 0.0
      %4808 = vmatmul.mubr.f32.gmra.mrb[0].mxu0 %v1682
      %v4809 = vpop.f32.mrb[0].mxu0
      %v4810 = vadd.f32 0.0, %v4809
      %v4811 = vpop.f32.mrb[0].mxu0
      %4812 = vmatprep.mubr.f32.mxu0 0.0
      %4813 = vmatmul.mubr.f32.gmra.mrb[0].mxu0 %v1685
      %v4814 = vpop.f32.mrb[0].mxu0
      %v4815 = vadd.f32 0.0, %v4814
      %v4816 = vpop.f32.mrb[0].mxu0
      %4817 = vmatprep.mubr.f32.mxu0 0.0
      %4818 = vmatmul.mubr.f32.gmra.mrb[0].mxu0 %v1688
      %v4819 = vpop.f32.mrb[0].mxu0
      %v4820 = vadd.f32 0.0, %v4819
      %v4821 = vpop.f32.mrb[0].mxu0
      %4822 = vmatprep.mubr.f32.mxu0 0.0
      %4823 = vmatmul.mubr.f32.gmra.mrb[0].mxu0 %v1691
      %v4824 = vpop.f32.mrb[0].mxu0
      %v4825 = vadd.f32 0.0, %v4824
      %v4826 = vpop.f32.mrb[0].mxu0
      %4827 = vmatprep.mubr.f32.mxu0 0.0
      %4828 = vmatmul.mubr.f32.gmra.mrb[0].mxu0 %v1694
      %v4829 = vpop.f32.mrb[0].mxu0
      %v4830 = vadd.f32 0.0, %v4829
      %v4831 = vpop.f32.mrb[0].mxu0
      %4832 = vmatprep.mubr.f32.mxu0 0.0
      %4833 = vmatmul.mubr.f32.gmra.mrb[0].mxu0 %v1697
      %v4834 = vpop.f32.mrb[0].mxu0
      %v4835 = vadd.f32 0.0, %v4834
      %v4836 = vpop.f32.mrb[0].mxu0
      %4837 = vmatprep.mubr.f32.mxu0 0.0
      %4838 = vmatmul.mubr.f32.gmra.mrb[0].mxu0 %v1700
      %v4839 = vpop.f32.mrb[0].mxu0
      %v4840 = vadd.f32 0.0, %v4839
      %v4841 = vpop.f32.mrb[0].mxu0
      %4842 = vmatprep.mubr.f32.mxu0 0.0
      %4843 = vmatmul.mubr.f32.gmra.mrb[0].mxu0 %v1703
      %v4844 = vpop.f32.mrb[0].mxu0
      %v4845 = vadd.f32 0.0, %v4844
      %v4846 = vpop.f32.mrb[0].mxu0
      %4847 = vmatprep.mubr.f32.mxu0 0.0
      %4848 = vmatmul.mubr.f32.gmra.mrb[0].mxu0 %v1706
      %v4849 = vpop.f32.mrb[0].mxu0
      %v4850 = vadd.f32 0.0, %v4849
      %v4851 = vpop.f32.mrb[0].mxu0
      %4852 = vmatprep.mubr.f32.mxu0 0.0
      %4853 = vmatmul.mubr.f32.gmra.mrb[0].mxu0 %v1709
      %v4854 = vpop.f32.mrb[0].mxu0
      %v4855 = vadd.f32 0.0, %v4854
      %v4856 = vpop.f32.mrb[0].mxu0
      %4857 = vmatprep.mubr.f32.mxu0 0.0
      %4858 = vmatmul.mubr.f32.gmra.mrb[0].mxu0 %v1712
      %v4859 = vpop.f32.mrb[0].mxu0
      %v4860 = vadd.f32 0.0, %v4859
      %v4861 = vpop.f32.mrb[0].mxu0
      %4862 = vmatprep.mubr.f32.mxu0 0.0
      %4863 = vmatmul.mubr.f32.gmra.mrb[0].mxu0 %v1715
      %v4864 = vpop.f32.mrb[0].mxu0
      %v4865 = vadd.f32 0.0, %v4864
      %v4866 = vpop.f32.mrb[0].mxu0
      %4867 = vmatprep.mubr.f32.mxu0 0.0
      %4868 = vmatmul.mubr.f32.gmra.mrb[0].mxu0 %v1718
      %v4869 = vpop.f32.mrb[0].mxu0
      %v4870 = vadd.f32 0.0, %v4869
      %v4871 = vpop.f32.mrb[0].mxu0
      %4872 = vmatprep.mubr.f32.mxu0 0.0
      %4873 = vmatmul.mubr.f32.gmra.mrb[0].mxu0 %v1721
      %v4874 = vpop.f32.mrb[0].mxu0
      %v4875 = vadd.f32 0.0, %v4874
      %v4876 = vpop.f32.mrb[0].mxu0
      %4877 = vmatprep.mubr.f32.mxu0 0.0
      %4878 = vmatmul.mubr.f32.gmra.mrb[0].mxu0 %v1724
      %v4879 = vpop.f32.mrb[0].mxu0
      %v4880 = vadd.f32 0.0, %v4879
      %v4881 = vpop.f32.mrb[0].mxu0
      %4882 = vmatprep.mubr.f32.mxu0 0.0
      %4883 = vmatmul.mubr.f32.gmra.mrb[0].mxu0 %v1727
      %v4884 = vpop.f32.mrb[0].mxu0
      %v4885 = vadd.f32 0.0, %v4884
      %v4886 = vpop.f32.mrb[0].mxu0
      %4887 = vmatprep.mubr.f32.mxu0 0.0
      %4888 = vmatmul.mubr.f32.gmra.mrb[0].mxu0 %v1730
      %v4889 = vpop.f32.mrb[0].mxu0
      %v4890 = vadd.f32 0.0, %v4889
      %v4891 = vpop.f32.mrb[0].mxu0
      %4892 = vmatprep.mubr.f32.mxu0 0.0
      %4893 = vmatmul.mubr.f32.gmra.mrb[0].mxu0 %v1733
      %v4894 = vpop.f32.mrb[0].mxu0
      %v4895 = vadd.f32 0.0, %v4894
      %v4896 = vpop.f32.mrb[0].mxu0
      %4897 = vmatprep.mubr.f32.mxu0 0.0
      %4898 = vmatmul.mubr.f32.gmra.mrb[0].mxu0 %v1736
      %v4899 = vpop.f32.mrb[0].mxu0
      %v4900 = vadd.f32 0.0, %v4899
      %v4901 = vpop.f32.mrb[0].mxu0
      %4902 = vmatprep.mubr.f32.mxu0 0.0
      %4903 = vmatmul.mubr.f32.gmra.mrb[0].mxu0 %v1739
      %v4904 = vpop.f32.mrb[0].mxu0
      %v4905 = vadd.f32 0.0, %v4904
      %v4906 = vpop.f32.mrb[0].mxu0
      %4907 = vmatprep.mubr.f32.mxu0 0.0
      %4908 = vmatmul.mubr.f32.gmra.mrb[0].mxu0 %v1742
      %v4909 = vpop.f32.mrb[0].mxu0
      %v4910 = vadd.f32 0.0, %v4909
      %v4911 = vpop.f32.mrb[0].mxu0
      %4912 = vmatprep.mubr.f32.mxu0 0.0
      %4913 = vmatmul.mubr.f32.gmra.mrb[0].mxu0 %v1745
      %v4914 = vpop.f32.mrb[0].mxu0
      %v4915 = vadd.f32 0.0, %v4914
      %v4916 = vpop.f32.mrb[0].mxu0
      %4917 = vmatprep.mubr.f32.mxu0 0.0
      %4918 = vmatmul.mubr.f32.gmra.mrb[0].mxu0 %v1748
      %v4919 = vpop.f32.mrb[0].mxu0
      %v4920 = vadd.f32 0.0, %v4919
      %v4921 = vpop.f32.mrb[0].mxu0
      %4922 = vmatprep.mubr.f32.mxu0 0.0
      %4923 = vmatmul.mubr.f32.gmra.mrb[0].mxu0 %v1751
      %v4924 = vpop.f32.mrb[0].mxu0
      %v4925 = vadd.f32 0.0, %v4924
      %v4926 = vpop.f32.mrb[0].mxu0
      %4927 = vmatprep.mubr.f32.mxu0 0.0
      %4928 = vmatmul.mubr.f32.gmra.mrb[0].mxu0 %v1754
      %v4929 = vpop.f32.mrb[0].mxu0
      %v4930 = vadd.f32 0.0, %v4929
      %v4931 = vpop.f32.mrb[0].mxu0
      %4932 = vmatprep.mubr.f32.mxu0 0.0
      %4933 = vmatmul.mubr.f32.gmra.mrb[0].mxu0 %v2477
      %v4934 = vpop.f32.mrb[0].mxu0
      %v4935 = vadd.f32 0.0, %v4934
      %v4936 = vpop.f32.mrb[0].mxu0
      %4937 = vmatprep.mubr.f32.mxu0 0.0
      %4938 = vmatmul.mubr.f32.gmra.mrb[0].mxu0 %v2480
      %v4939 = vpop.f32.mrb[0].mxu0
      %v4940 = vadd.f32 0.0, %v4939
      %v4941 = vpop.f32.mrb[0].mxu0
      %4942 = vmatprep.mubr.f32.mxu0 0.0
      %4943 = vmatmul.mubr.f32.gmra.mrb[0].mxu0 %v4720
      %v4944 = vpop.f32.mrb[0].mxu0
      %v4945 = vadd.f32 0.0, %v4944
      %v4946 = vpop.f32.mrb[0].mxu0
      %4947 = vmatprep.mubr.f32.mxu0 0.0
      %4948 = vmatmul.mubr.f32.gmra.mrb[0].mxu0 %v4723
      %v4949 = vpop.f32.mrb[0].mxu0
      %v4950 = vadd.f32 0.0, %v4949
      %v4951 = vpop.f32.mrb[0].mxu0
      %4952 = vdwg.mxu0
      %v4953 = vadd.f32 %v4685, %v4795
      %v4954 = vadd.f32 %v4686, %v4800
      %v4955 = vadd.f32 %v4687, %v4805
      %v4956 = vadd.f32 %v4688, %v4810
      %v4957 = vadd.f32 %v4689, %v4815
      %v4958 = vadd.f32 %v4690, %v4820
      %v4959 = vadd.f32 %v4691, %v4825
      %v4960 = vadd.f32 %v4692, %v4830
      %v4961 = vadd.f32 %v4693, %v4835
      %v4962 = vadd.f32 %v4694, %v4840
      %v4963 = vadd.f32 %v4695, %v4845
      %v4964 = vadd.f32 %v4696, %v4850
      %v4965 = vadd.f32 %v4697, %v4855
      %v4966 = vadd.f32 %v4698, %v4860
      %v4967 = vadd.f32 %v4699, %v4865
      %v4968 = vadd.f32 %v4700, %v4870
      %v4969 = vadd.f32 %v4701, %v4875
      %v4970 = vadd.f32 %v4702, %v4880
      %v4971 = vadd.f32 %v4703, %v4885
      %v4972 = vadd.f32 %v4704, %v4890
      %v4973 = vadd.f32 %v4705, %v4895
      %v4974 = vadd.f32 %v4706, %v4900
      %v4975 = vadd.f32 %v4707, %v4905
      %v4976 = vadd.f32 %v4708, %v4910
      %v4977 = vadd.f32 %v4709, %v4915
      %v4978 = vadd.f32 %v4710, %v4920
      %v4979 = vadd.f32 %v4711, %v4925
      %v4980 = vadd.f32 %v4712, %v4930
      %v4981 = vadd.f32 %v4713, %v4935
      %v4982 = vadd.f32 %v4714, %v4940
      %v4983 = vadd.f32 %v4715, %v4945
      %v4984 = vadd.f32 %v4716, %v4950
      %v4985 = vadd.f32 %v4953, %v1622
      %v4986 = vadd.f32 %v4954, %v1622
      %v4987 = vadd.f32 %v4955, %v1622
      %v4988 = vadd.f32 %v4956, %v1622
      %v4989 = vadd.f32 %v4957, %v1622
      %v4990 = vadd.f32 %v4958, %v1622
      %v4991 = vadd.f32 %v4959, %v1622
      %v4992 = vadd.f32 %v4960, %v1622
      %v4993 = vadd.f32 %v4961, %v1622
      %v4994 = vadd.f32 %v4962, %v1622
      %v4995 = vadd.f32 %v4963, %v1622
      %v4996 = vadd.f32 %v4964, %v1622
      %v4997 = vadd.f32 %v4965, %v1622
      %v4998 = vadd.f32 %v4966, %v1622
      %v4999 = vadd.f32 %v4967, %v1622
      %v5000 = vadd.f32 %v4968, %v1622
      %v5001 = vadd.f32 %v4969, %v1622
      %v5002 = vadd.f32 %v4970, %v1622
      %v5003 = vadd.f32 %v4971, %v1622
      %v5004 = vadd.f32 %v4972, %v1622
      %v5005 = vadd.f32 %v4973, %v1622
      %v5006 = vadd.f32 %v4974, %v1622
      %v5007 = vadd.f32 %v4975, %v1622
      %v5008 = vadd.f32 %v4976, %v1622
      %v5009 = vadd.f32 %v4977, %v1622
      %v5010 = vadd.f32 %v4978, %v1622
      %v5011 = vadd.f32 %v4979, %v1622
      %v5012 = vadd.f32 %v4980, %v1622
      %v5013 = vadd.f32 %v4981, %v1622
      %v5014 = vadd.f32 %v4982, %v1622
      %v5015 = vadd.f32 %v4983, %v1622
      %v5016 = vadd.f32 %v4984, %v1622
      %5049 = vrot.lane.b32.xlu0 %v4985, 4
      %v5050 = vpop.permute.xlu0 %5049
      %5051 = vrot.lane.b32.xlu0 %v4986, 4
      %v5052 = vpop.permute.xlu0 %5051
      %5053 = vrot.lane.b32.xlu0 %v4987, 4
      %v5054 = vpop.permute.xlu0 %5053
      %5055 = vrot.lane.b32.xlu0 %v4988, 4
      %v5056 = vpop.permute.xlu0 %5055
      %5057 = vrot.lane.b32.xlu0 %v4989, 4
      %v5058 = vpop.permute.xlu0 %5057
      %5059 = vrot.lane.b32.xlu0 %v4990, 4
      %v5060 = vpop.permute.xlu0 %5059
      %5061 = vrot.lane.b32.xlu0 %v4991, 4
      %v5062 = vpop.permute.xlu0 %5061
      %5063 = vrot.lane.b32.xlu0 %v4992, 4
      %v5064 = vpop.permute.xlu0 %5063
      %5065 = vrot.lane.b32.xlu0 %v4993, 4
      %v5066 = vpop.permute.xlu0 %5065
      %5067 = vrot.lane.b32.xlu0 %v4994, 4
      %v5068 = vpop.permute.xlu0 %5067
      %5069 = vrot.lane.b32.xlu0 %v4995, 4
      %v5070 = vpop.permute.xlu0 %5069
      %5071 = vrot.lane.b32.xlu0 %v4996, 4
      %v5072 = vpop.permute.xlu0 %5071
      %5073 = vrot.lane.b32.xlu0 %v4997, 4
      %v5074 = vpop.permute.xlu0 %5073
      %5075 = vrot.lane.b32.xlu0 %v4998, 4
      %v5076 = vpop.permute.xlu0 %5075
      %5077 = vrot.lane.b32.xlu0 %v4999, 4
      %v5078 = vpop.permute.xlu0 %5077
      %5079 = vrot.lane.b32.xlu0 %v5000, 4
      %v5080 = vpop.permute.xlu0 %5079
      %5081 = vrot.lane.b32.xlu0 %v5001, 4
      %v5082 = vpop.permute.xlu0 %5081
      %5083 = vrot.lane.b32.xlu0 %v5002, 4
      %v5084 = vpop.permute.xlu0 %5083
      %5085 = vrot.lane.b32.xlu0 %v5003, 4
      %v5086 = vpop.permute.xlu0 %5085
      %5087 = vrot.lane.b32.xlu0 %v5004, 4
      %v5088 = vpop.permute.xlu0 %5087
      %5089 = vrot.lane.b32.xlu0 %v5005, 4
      %v5090 = vpop.permute.xlu0 %5089
      %5091 = vrot.lane.b32.xlu0 %v5006, 4
      %v5092 = vpop.permute.xlu0 %5091
      %5093 = vrot.lane.b32.xlu0 %v5007, 4
      %v5094 = vpop.permute.xlu0 %5093
      %5095 = vrot.lane.b32.xlu0 %v5008, 4
      %v5096 = vpop.permute.xlu0 %5095
      %5097 = vrot.lane.b32.xlu0 %v5009, 4
      %v5098 = vpop.permute.xlu0 %5097
      %5099 = vrot.lane.b32.xlu0 %v5010, 4
      %v5100 = vpop.permute.xlu0 %5099
      %5101 = vrot.lane.b32.xlu0 %v5011, 4
      %v5102 = vpop.permute.xlu0 %5101
      %5103 = vrot.lane.b32.xlu0 %v5012, 4
      %v5104 = vpop.permute.xlu0 %5103
      %5105 = vrot.lane.b32.xlu0 %v5013, 4
      %v5106 = vpop.permute.xlu0 %5105
      %5107 = vrot.lane.b32.xlu0 %v5014, 4
      %v5108 = vpop.permute.xlu0 %5107
      %5109 = vrot.lane.b32.xlu0 %v5015, 4
      %v5110 = vpop.permute.xlu0 %5109
      %5111 = vrot.lane.b32.xlu0 %v5016, 4
      %v5112 = vpop.permute.xlu0 %5111
      %v5145 = vsel %vm432, %v3963, %v5050
      %v5146 = vsel %vm432, %v3964, %v5052
      %v5147 = vsel %vm432, %v3965, %v5054
      %v5148 = vsel %vm432, %v3966, %v5056
      %v5149 = vsel %vm432, %v3967, %v5058
      %v5150 = vsel %vm432, %v3968, %v5060
      %v5151 = vsel %vm432, %v3969, %v5062
      %v5152 = vsel %vm432, %v3970, %v5064
      %v5153 = vsel %vm432, %v3971, %v5066
      %v5154 = vsel %vm432, %v3972, %v5068
      %v5155 = vsel %vm432, %v3973, %v5070
      %v5156 = vsel %vm432, %v3974, %v5072
      %v5157 = vsel %vm432, %v3975, %v5074
      %v5158 = vsel %vm432, %v3976, %v5076
      %v5159 = vsel %vm432, %v3977, %v5078
      %v5160 = vsel %vm432, %v3978, %v5080
      %v5161 = vsel %vm432, %v3979, %v5082
      %v5162 = vsel %vm432, %v3980, %v5084
      %v5163 = vsel %vm432, %v3981, %v5086
      %v5164 = vsel %vm432, %v3982, %v5088
      %v5165 = vsel %vm432, %v3983, %v5090
      %v5166 = vsel %vm432, %v3984, %v5092
      %v5167 = vsel %vm432, %v3985, %v5094
      %v5168 = vsel %vm432, %v3986, %v5096
      %v5169 = vsel %vm432, %v3987, %v5098
      %v5170 = vsel %vm432, %v3988, %v5100
      %v5171 = vsel %vm432, %v3989, %v5102
      %v5172 = vsel %vm432, %v3990, %v5104
      %v5173 = vsel %vm432, %v3991, %v5106
      %v5174 = vsel %vm432, %v3992, %v5108
      %v5175 = vsel %vm432, %v3993, %v5110
      %v5176 = vsel %vm432, %v3994, %v5112
      %s5177 = scalar_lea.vmem %s318, 16
      %5178 = vst.msk [vmem:[%s5177] sm:$0xff] %vm2934, %v5145
      %5179 = vst.msk [vmem:[%s5177 + $0x8] sm:$0xff] %vm2934, %v5146
      %5180 = vst.msk [vmem:[%s5177 + $0x20] sm:$0xff] %vm2934, %v5147
      %5181 = vst.msk [vmem:[%s5177 + $0x28] sm:$0xff] %vm2934, %v5148
      %5182 = vst.msk [vmem:[%s5177 + $0x40] sm:$0xff] %vm2934, %v5149
      %5183 = vst.msk [vmem:[%s5177 + $0x48] sm:$0xff] %vm2934, %v5150
      %5184 = vst.msk [vmem:[%s5177 + $0x60] sm:$0xff] %vm2934, %v5151
      %5185 = vst.msk [vmem:[%s5177 + $0x68] sm:$0xff] %vm2934, %v5152
      %5186 = vst.msk [vmem:[%s5177 + $0x80] sm:$0xff] %vm2934, %v5153
      %5187 = vst.msk [vmem:[%s5177 + $0x88] sm:$0xff] %vm2934, %v5154
      %5188 = vst.msk [vmem:[%s5177 + $0xa0] sm:$0xff] %vm2934, %v5155
      %5189 = vst.msk [vmem:[%s5177 + $0xa8] sm:$0xff] %vm2934, %v5156
      %5190 = vst.msk [vmem:[%s5177 + $0xc0] sm:$0xff] %vm2934, %v5157
      %5191 = vst.msk [vmem:[%s5177 + $0xc8] sm:$0xff] %vm2934, %v5158
      %5192 = vst.msk [vmem:[%s5177 + $0xe0] sm:$0xff] %vm2934, %v5159
      %5193 = vst.msk [vmem:[%s5177 + $0xe8] sm:$0xff] %vm2934, %v5160
      %5194 = vst.msk [vmem:[%s5177 + $0x100] sm:$0xff] %vm2934, %v5161
      %5195 = vst.msk [vmem:[%s5177 + $0x108] sm:$0xff] %vm2934, %v5162
      %5196 = vst.msk [vmem:[%s5177 + $0x120] sm:$0xff] %vm2934, %v5163
      %5197 = vst.msk [vmem:[%s5177 + $0x128] sm:$0xff] %vm2934, %v5164
      %5198 = vst.msk [vmem:[%s5177 + $0x140] sm:$0xff] %vm2934, %v5165
      %5199 = vst.msk [vmem:[%s5177 + $0x148] sm:$0xff] %vm2934, %v5166
      %5200 = vst.msk [vmem:[%s5177 + $0x160] sm:$0xff] %vm2934, %v5167
      %5201 = vst.msk [vmem:[%s5177 + $0x168] sm:$0xff] %vm2934, %v5168
      %5202 = vst.msk [vmem:[%s5177 + $0x180] sm:$0xff] %vm2934, %v5169
      %5203 = vst.msk [vmem:[%s5177 + $0x188] sm:$0xff] %vm2934, %v5170
      %5204 = vst.msk [vmem:[%s5177 + $0x1a0] sm:$0xff] %vm2934, %v5171
      %5205 = vst.msk [vmem:[%s5177 + $0x1a8] sm:$0xff] %vm2934, %v5172
      %5206 = vst.msk [vmem:[%s5177 + $0x1c0] sm:$0xff] %vm2934, %v5173
      %5207 = vst.msk [vmem:[%s5177 + $0x1c8] sm:$0xff] %vm2934, %v5174
      %5208 = vst.msk [vmem:[%s5177 + $0x1e0] sm:$0xff] %vm2934, %v5175
      %5209 = vst.msk [vmem:[%s5177 + $0x1e8] sm:$0xff] %vm2934, %v5176
      %s5210 = smul.u32 16, %s20
      %p5211 = scmp.lt.s32.totalorder %s19, 1
      %s5212 = scalar_select %p5211, %s19, 1
      %p5213 = scmp.lt.s32.totalorder %s5210, 15
      %s5214 = scalar_select %p5213, %s5210, 15
      %s5215 = smul.addr %s5214, 4
      %s5216 = smul.addr %s5212, 64
      %s5217 = sadd.s32 %s5215, %s5216
      %s5218 = smul.addr %s5217, 8
      %s5219 = scalar_lea.vmem %s4, %s5218
      // Predicated region
      $region37: #{upsample_forward.1} parent=35 // pred_check
        %p5220 = pneg %p149
      $region38: #{upsample_forward.1} parent=35 // pred_check_branch
        %5222 = sbr.rel (%p5220) target = $region40
      $region39: #{upsample_forward.1} parent=35 // pred_region
        %s5223 = smul.u32 16, %s20
      $region40: #{upsample_forward.1} parent=35 // pred_fallthru
        _
    $region36: #{upsample_forward.1} parent=5 // pred_fallthru
      _
    %p5224 = scmp.le.s32.totalorder 2, %s10
    // Predicated region
    $region41: #{upsample_forward.1} parent=5 // pred_check
      %p5225 = pneg %p5224
    $region42: #{upsample_forward.1} parent=5 // pred_check_branch
      %5227 = sbr.rel (%p5225) target = $region44
    $region43: #{upsample_forward.1} parent=5 // pred_region
      %s5228 = ssub.s32 %s10, 2
      // Predicated region
      $region45: #{upsample_forward.1} parent=43 // pred_check
        %p5229 = pneg %p155
      $region46: #{upsample_forward.1} parent=43 // pred_check_branch
        %5231 = sbr.rel (%p5229) target = $region48
      $region47: #{upsample_forward.1} parent=43 // pred_region
        %s5232 = smul.u32 16, %s22
        %p5233 = scmp.lt.s32.totalorder %s21, 1
        %s5234 = scalar_select %p5233, %s21, 1
        %p5235 = scmp.lt.s32.totalorder %s5232, 15
        %s5236 = scalar_select %p5235, %s5232, 15
        %s5237 = smul.addr %s5236, 4
        %s5238 = smul.addr %s5234, 64
        %s5239 = sadd.s32 %s5237, %s5238
        %s5240 = smul.addr %s5239, 8
        %s5241 = scalar_lea.vmem %s4, %s5240
      $region48: #{upsample_forward.1} parent=43 // pred_fallthru
        _
    $region44: #{upsample_forward.1} parent=5 // pred_fallthru
      _
  $region6: #{upsample_forward.1} parent=0 // loop_footer
    %s14 = sadd.s32 1, %s10
  $region7: #{upsample_forward.1} parent=0 // loop_footer_branch
    %9 = sbr.rel target = $region3
  $region8: #{upsample_forward.1} parent=0 // loop_exit
    _

</llo_original>
